<compile_context>
chip_gen: v7x
topology: tpu7x:2x2x1
jax: 0.10.0
libtpu: 0.0.40
codegen_flags: <defaults>
</compile_context>

<pallas_src>
import functools

import jax
import jax.numpy as jnp
from jax import lax
from jax.experimental import pallas as pl
from jax.experimental.pallas import tpu as pltpu

GATE_PAD = 128    # per-gate lane padding: one f32 vreg lane width
BATCH_TILE = 8    # sublane tile: batch padded to a multiple of 8


# ----------------------------- GRU cell math ------------------------------ #
def _gru_step(gi, h, w_hh_ref, b_hh_n, hp):
    """One nn.GRUCell update given the precomputed input projection.

    gi     : (1 or BB, 3*hp) f32   x @ W_ih + b_ih + [b_hr, b_hz, 0] (gate-padded)
    h      : (BB, hp)        f32   hidden state (pad lanes zero and stay zero:
                                   z_pad = 0.5, n_pad = 0 -> h'_pad = 0.5 * 0)
    b_hh_n : (1, hp)         f32   b_hn, kept separate (it sits inside r * (...))
    Gate order [r, z, n]; each gate slice lands on a 128-lane boundary.
    Matmul operands bf16 / f32 accumulation; elementwise math f32 (v5e-safe).
    """
    gh = jnp.dot(h.astype(jnp.bfloat16), w_hh_ref[...],
                 preferred_element_type=jnp.float32)                      # (BB, 3*hp)
    i_r, i_z, i_n = gi[:, :hp], gi[:, hp:2 * hp], gi[:, 2 * hp:]
    h_r, h_z, h_n = gh[:, :hp], gh[:, hp:2 * hp], gh[:, 2 * hp:]
    r = jax.nn.sigmoid(i_r + h_r)
    z = jax.nn.sigmoid(i_z + h_z)
    n = jnp.tanh(i_n + r * (h_n + b_hh_n))
    return (1.0 - z) * n + z * h


# ------------------------------ Pallas kernel ------------------------------ #
def decoder_kernel(seq_emb_ref, class_emb_ref,
                   w_ih_e_ref, w_hh_e_ref, b_enc_ref, b_hh_e_n_ref,
                   w_ih_d_ref, w_hh_d_ref, b_dec_ref, b_hh_d_n_ref,
                   w_cls_diff_ref, b_cls_diff_ref,
                   out_ref,
                   *, seq_len, bb, num_classes, hidden_pad):
    hp = hidden_pad
    b_enc = b_enc_ref[...]          # (1, 3*hp)
    b_hh_e_n = b_hh_e_n_ref[...]    # (1, hp)
    b_dec = b_dec_ref[...]
    b_hh_d_n = b_hh_d_n_ref[...]

    # ---- encoder input projection hoisted out of the recurrence ----
    # ONE (T*BB, E) bf16 matmul + one tanh pass; tanh computed in f32 (v5e EUP).
    x_all = jnp.tanh(seq_emb_ref[...].astype(jnp.float32))                # (T, BB, E)
    x_all = x_all.astype(jnp.bfloat16).reshape(seq_len * bb, -1)          # layout-preserving merge
    gi_enc = jnp.dot(x_all, w_ih_e_ref[...],
                     preferred_element_type=jnp.float32) + b_enc          # (T*BB, 3*hp)

    # ---- encoder recurrence (static unroll; all slices 8-row aligned) ----
    # NOTE(scaling): for large T use lax.fori_loop with capped unroll over a
    # pipelined VMEM scratch instead of a full Python unroll.
    h = jnp.zeros((bb, hp), jnp.float32)
    for t in range(seq_len):
        h = _gru_step(gi_enc[t * bb:(t + 1) * bb, :], h, w_hh_e_ref, b_hh_e_n, hp)

    # ---- decoder input projection hoisted out of the class loop ----
    gi_dec = jnp.dot(jnp.tanh(class_emb_ref[...]).astype(jnp.bfloat16),
                     w_ih_d_ref[...],
                     preferred_element_type=jnp.float32) + b_dec          # (C, 3*hp)

    # ---- decoder: one GRU step per class; hiddens stay in vregs ----
    hs = []
    for c in range(num_classes):                                          # static, small
        h = _gru_step(gi_dec[c:c + 1, :], h, w_hh_d_ref, b_hh_d_n, hp)
        h = jnp.tanh(h)              # tanh'd state is both carried and classified
        hs.append(h)
    h_all = jnp.concatenate(hs, axis=0)                                   # (C*BB, hp)

    # ---- 2-class classifier + log-softmax, closed form (no XLU reduce) ----
    # d = h @ (w1 - w0) + (b1 - b0), replicated across all 128 lanes.
    d = jnp.dot(h_all.astype(jnp.bfloat16), w_cls_diff_ref[...],
                preferred_element_type=jnp.float32) + b_cls_diff_ref[...]  # (C*BB, 128)
    a = jnp.log(1.0 + jnp.exp(-jnp.abs(d)))        # shared softplus tail (stable)
    logp0 = -(jnp.maximum(d, 0.0) + a)             # log_softmax(logits)[..., 0]
    logp1 = -(jnp.maximum(-d, 0.0) + a)            # log_softmax(logits)[..., 1]
    lane = lax.broadcasted_iota(jnp.int32, d.shape, 1)
    slab = jnp.where(lane == 0, logp0, logp1)      # lane-dense: lane0=logp0, rest=logp1
    out_ref[...] = slab.reshape(num_classes, bb, d.shape[-1])             # full-tile store


# --------------------------- wrapper / packing ------------------------------ #
def _pad_gate_cols(w, h_dim, hp):
    """(in, 3*h_dim) -> (in, 3*hp): each gate's columns at lane offset g*hp."""
    out = jnp.zeros((w.shape[0], 3 * hp), w.dtype)
    for g in range(3):
        out = out.at[:, g * hp:g * hp + h_dim].set(w[:, g * h_dim:(g + 1) * h_dim])
    return out


def _pad_rows(w, hp):
    """(h_dim, N) -> (hp, N), zero-padding the extra rows."""
    return jnp.zeros((hp, w.shape[1]), w.dtype).at[:w.shape[0], :].set(w)


def _fold_bias(b_ih, b_hh, h_dim, hp):
    """Fold r/z columns of b_hh into the hoisted input-projection bias.

    Returns (b_in, b_hn): b_in = gate-padded (b_ih + [b_hr, b_hz, 0]) (1, 3*hp),
    b_hn (1, hp) kept separate because PyTorch GRUCell uses r * (W_hn h + b_hn).
    Pad lanes stay exactly zero (required for pad-lane invariance of h).
    """
    b_rz = jnp.concatenate([b_hh[:, :2 * h_dim], jnp.zeros((1, h_dim), b_hh.dtype)], axis=1)
    b_in = _pad_gate_cols(b_ih + b_rz, h_dim, hp)
    b_hn = jnp.zeros((1, hp), b_hh.dtype).at[:, :h_dim].set(b_hh[:, 2 * h_dim:])
    return b_in, b_hn


def decoder_forward(seq_emb_tbe, class_emb, params, *, bb=BATCH_TILE):
    """seq_emb_tbe: (T, B, E) raw embed(seq), time-major; class_emb: (C, H)."""
    (w_ih_e, w_hh_e, b_ih_e, b_hh_e,
     w_ih_d, w_hh_d, b_ih_d, b_hh_d,
     w_cls, b_cls) = params
    T, B, E = seq_emb_tbe.shape
    C, H = class_emb.shape
    hp = GATE_PAD
    num_chunks = pl.cdiv(B, bb)
    B_pad = num_chunks * bb

    # Batch padded to a sublane multiple; bf16 halves HBM->VMEM DMA bytes.
    seq_pad = jnp.zeros((T, B_pad, E), jnp.bfloat16)
    seq_pad = seq_pad.at[:, :B, :].set(seq_emb_tbe.astype(jnp.bfloat16))

    # Gate-lane-padded bf16 weights (MXU operands); biases f32.
    w_ih_e_p = _pad_gate_cols(w_ih_e, H, hp).astype(jnp.bfloat16)                 # (E, 3*hp)
    w_hh_e_p = _pad_rows(_pad_gate_cols(w_hh_e, H, hp), hp).astype(jnp.bfloat16)  # (hp, 3*hp)
    w_ih_d_p = _pad_gate_cols(w_ih_d, H, hp).astype(jnp.bfloat16)                 # (H, 3*hp)
    w_hh_d_p = _pad_rows(_pad_gate_cols(w_hh_d, H, hp), hp).astype(jnp.bfloat16)
    b_enc, b_hh_e_n = _fold_bias(b_ih_e, b_hh_e, H, hp)                           # (1,3hp),(1,hp)
    b_dec, b_hh_d_n = _fold_bias(b_ih_d, b_hh_d, H, hp)

    # 2-class classifier -> closed-form logit difference, lane-replicated.
    w_diff = _pad_rows(w_cls[:, 1:2] - w_cls[:, 0:1], hp)                         # (hp, 1)
    w_diff = jnp.tile(w_diff, (1, 128)).astype(jnp.bfloat16)                      # (hp, 128)
    b_diff = jnp.full((1, 128), b_cls[0, 1] - b_cls[0, 0], jnp.float32)

    kernel = functools.partial(decoder_kernel, seq_len=T, bb=bb,
                               num_classes=C, hidden_pad=hp)

    def full(arr):
        shape = arr.shape
        return pl.BlockSpec(shape, lambda b, _s=shape: (0,) * len(_s))

    in_specs = [
        pl.BlockSpec((T, bb, E), lambda b: (0, b, 0)),      # per-batch-chunk seq block
        full(class_emb),
        full(w_ih_e_p), full(w_hh_e_p), full(b_enc), full(b_hh_e_n),
        full(w_ih_d_p), full(w_hh_d_p), full(b_dec), full(b_hh_d_n),
        full(w_diff), full(b_diff),
    ]
    out = pl.pallas_call(
        kernel,
        grid=(num_chunks,),                                 # batch chunks: independent GRUs
        out_shape=jax.ShapeDtypeStruct((C, B_pad, 128), jnp.float32),
        in_specs=in_specs,
        out_specs=pl.BlockSpec((C, bb, 128), lambda b: (0, b, 0)),
        compiler_params=pltpu.CompilerParams(
            dimension_semantics=("parallel",)),             # feeds both v7x TensorCores
    )(seq_pad, class_emb,
      w_ih_e_p, w_hh_e_p, b_enc, b_hh_e_n,
      w_ih_d_p, w_hh_d_p, b_dec, b_hh_d_n,
      w_diff, b_diff)
    # lane 0 = log p(class 0), lane 1 = log p(class 1)
    return out[:, :B, :2]                                   # (C, B, 2)


# --------------------------- pure-JAX reference ---------------------------- #
def _gru_cell_ref(x, h, w_ih, w_hh, b_ih, b_hh, hidden_dim):
    gi = x @ w_ih + b_ih
    gh = h @ w_hh + b_hh
    i_r = gi[:, :hidden_dim]
    i_z = gi[:, hidden_dim:2 * hidden_dim]
    i_n = gi[:, 2 * hidden_dim:]
    h_r = gh[:, :hidden_dim]
    h_z = gh[:, hidden_dim:2 * hidden_dim]
    h_n = gh[:, 2 * hidden_dim:]
    r = jax.nn.sigmoid(i_r + h_r)
    z = jax.nn.sigmoid(i_z + h_z)
    n = jnp.tanh(i_n + r * h_n)
    return (1.0 - z) * n + z * h


def reference_forward(seq, classes, embed, embed_class,
                      w_ih_e, w_hh_e, b_ih_e, b_hh_e,
                      w_ih_d, w_hh_d, b_ih_d, b_hh_d,
                      w_cls, b_cls, hidden_dim):
    B = seq.shape[0]
    seq_emb = jnp.tanh(embed[seq])                  # (B, T, E)
    seq_emb = jnp.transpose(seq_emb, (1, 0, 2))     # (T, B, E)
    h = jnp.zeros((B, hidden_dim), jnp.float32)
    for t in range(seq_emb.shape[0]):
        h = _gru_cell_ref(seq_emb[t], h, w_ih_e, w_hh_e, b_ih_e, b_hh_e, hidden_dim)
    outs = []
    for c in list(classes):
        ce = jnp.tanh(embed_class[int(c)])
        x = jnp.broadcast_to(ce[None, :], (B, hidden_dim))
        h = _gru_cell_ref(x, h, w_ih_d, w_hh_d, b_ih_d, b_hh_d, hidden_dim)
        h = jnp.tanh(h)
        logits = h @ w_cls + b_cls
        outs.append(jax.nn.log_softmax(logits, axis=-1))
    return jnp.stack(outs)                          # (C, B, 2)


# --------------------------------- main ------------------------------------ #
if __name__ == "__main__":
    # Small config consistent with the module's forward pass.
    input_vocab_size = 50
    output_vocab_size = 6          # toxic-comments: 6 output labels
    embed_dim = 32
    hidden_dim = 32
    batch = 2
    seq_len = 8

    key = jax.random.PRNGKey(0)
    ks = jax.random.split(key, 16)
    s = 1.0 / jnp.sqrt(hidden_dim)

    # nn.Embedding weights ~ N(0, 1)
    embed = jax.random.normal(ks[0], (input_vocab_size, embed_dim), jnp.float32)
    embed_class = jax.random.normal(ks[1], (output_vocab_size, hidden_dim), jnp.float32)
    # (embed_char exists in __init__ but is unused in forward; omitted.)

    # encoder GRUCell(embed_dim, hidden_dim); stored transposed: (in, 3H)
    w_ih_e = jax.random.uniform(ks[2], (embed_dim, 3 * hidden_dim), jnp.float32, -s, s)
    w_hh_e = jax.random.uniform(ks[3], (hidden_dim, 3 * hidden_dim), jnp.float32, -s, s)
    b_ih_e = jax.random.uniform(ks[4], (1, 3 * hidden_dim), jnp.float32, -s, s)
    b_hh_e = jax.random.uniform(ks[5], (1, 3 * hidden_dim), jnp.float32, -s, s)

    # decoder GRUCell(hidden_dim, hidden_dim)
    w_ih_d = jax.random.uniform(ks[6], (hidden_dim, 3 * hidden_dim), jnp.float32, -s, s)
    w_hh_d = jax.random.uniform(ks[7], (hidden_dim, 3 * hidden_dim), jnp.float32, -s, s)
    b_ih_d = jax.random.uniform(ks[8], (1, 3 * hidden_dim), jnp.float32, -s, s)
    b_hh_d = jax.random.uniform(ks[9], (1, 3 * hidden_dim), jnp.float32, -s, s)

    # classify = nn.Linear(hidden_dim, 2); stored transposed: (H, 2)
    w_cls = jax.random.uniform(ks[10], (hidden_dim, 2), jnp.float32, -s, s)
    b_cls = jax.random.uniform(ks[11], (1, 2), jnp.float32, -s, s)

    # Inputs: token ids (B, T) and class ids (OUTPUT_IDS = 0..5)
    seq = jax.random.randint(ks[12], (batch, seq_len), 1, input_vocab_size)
    classes = jnp.arange(output_vocab_size, dtype=jnp.int32)

    # Glue: embedding gathers + time-major transpose (tanh stays in-kernel).
    seq_emb_tbe = jnp.transpose(embed[seq], (1, 0, 2)).astype(jnp.float32)  # (T, B, E)
    class_emb = embed_class[classes].astype(jnp.float32)                    # (C, H)

    params = (w_ih_e, w_hh_e, b_ih_e, b_hh_e,
              w_ih_d, w_hh_d, b_ih_d, b_hh_d,
              w_cls, b_cls)

    out = decoder_forward(seq_emb_tbe, class_emb, params)
    out = jax.block_until_ready(out)

    ref = reference_forward(seq, classes, embed, embed_class,
                            w_ih_e, w_hh_e, b_ih_e, b_hh_e,
                            w_ih_d, w_hh_d, b_ih_d, b_hh_d,
                            w_cls, b_cls, hidden_dim)
    ref = jax.block_until_ready(ref)

    assert out.shape == (output_vocab_size, batch, 2), out.shape
    assert bool(jnp.all(jnp.isfinite(out)))
    # bf16 MXU operands (weights + seq embeddings) vs f32 reference: 1e-2 tolerance
    # is an intentional inference-precision choice.
    assert bool(jnp.allclose(out, ref, atol=1e-2, rtol=1e-2)), \
        f"max abs diff = {float(jnp.max(jnp.abs(out - ref)))}"

    print("KERNEL_OK")
</pallas_src>

<mosaic_0001>
module attributes {stable_mosaic.version = 11 : i64} {
  func.func @decoder_kernel(%arg0: i32, %arg1: memref<8x8x32xbf16, #tpu.memory_space<vmem>>, %arg2: memref<6x32xf32, #tpu.memory_space<vmem>>, %arg3: memref<32x384xbf16, #tpu.memory_space<vmem>>, %arg4: memref<128x384xbf16, #tpu.memory_space<vmem>>, %arg5: memref<1x384xf32, #tpu.memory_space<vmem>>, %arg6: memref<1x128xf32, #tpu.memory_space<vmem>>, %arg7: memref<32x384xbf16, #tpu.memory_space<vmem>>, %arg8: memref<128x384xbf16, #tpu.memory_space<vmem>>, %arg9: memref<1x384xf32, #tpu.memory_space<vmem>>, %arg10: memref<1x128xf32, #tpu.memory_space<vmem>>, %arg11: memref<128x128xbf16, #tpu.memory_space<vmem>>, %arg12: memref<1x128xf32, #tpu.memory_space<vmem>>, %arg13: memref<6x8x128xf32, #tpu.memory_space<vmem>>) attributes {dimension_semantics = [#tpu.dimension_semantics<parallel>], iteration_bounds = array<i64: 1>, scalar_prefetch = 0 : i64, scratch_operands = 0 : i64, tpu.core_type = #tpu.core_type<tc>, window_params = [{transform_indices = @transform_0, window_bounds = array<i64: 8, 8, 32>}, {pipeline_mode = #tpu.pipeline_mode<synchronous>, transform_indices = @transform_1, window_bounds = array<i64: 6, 32>}, {pipeline_mode = #tpu.pipeline_mode<synchronous>, transform_indices = @transform_2, window_bounds = array<i64: 32, 384>}, {pipeline_mode = #tpu.pipeline_mode<synchronous>, transform_indices = @transform_3, window_bounds = array<i64: 128, 384>}, {pipeline_mode = #tpu.pipeline_mode<synchronous>, transform_indices = @transform_4, window_bounds = array<i64: 1, 384>}, {pipeline_mode = #tpu.pipeline_mode<synchronous>, transform_indices = @transform_5, window_bounds = array<i64: 1, 128>}, {pipeline_mode = #tpu.pipeline_mode<synchronous>, transform_indices = @transform_6, window_bounds = array<i64: 32, 384>}, {pipeline_mode = #tpu.pipeline_mode<synchronous>, transform_indices = @transform_7, window_bounds = array<i64: 128, 384>}, {pipeline_mode = #tpu.pipeline_mode<synchronous>, transform_indices = @transform_8, window_bounds = array<i64: 1, 384>}, {pipeline_mode = #tpu.pipeline_mode<synchronous>, transform_indices = @transform_9, window_bounds = array<i64: 1, 128>}, {pipeline_mode = #tpu.pipeline_mode<synchronous>, transform_indices = @transform_10, window_bounds = array<i64: 128, 128>}, {pipeline_mode = #tpu.pipeline_mode<synchronous>, transform_indices = @transform_11, window_bounds = array<i64: 1, 128>}, {transform_indices = @transform_12, window_bounds = array<i64: 6, 8, 128>}]} {
    %c0 = arith.constant 0 : index
    %c0_0 = arith.constant 0 : index
    %0 = vector.load %arg5[%c0, %c0_0] : memref<1x384xf32, #tpu.memory_space<vmem>>, vector<1x384xf32>
    %c0_1 = arith.constant 0 : index
    %c0_2 = arith.constant 0 : index
    %1 = vector.load %arg6[%c0_1, %c0_2] : memref<1x128xf32, #tpu.memory_space<vmem>>, vector<1x128xf32>
    %c0_3 = arith.constant 0 : index
    %c0_4 = arith.constant 0 : index
    %2 = vector.load %arg9[%c0_3, %c0_4] : memref<1x384xf32, #tpu.memory_space<vmem>>, vector<1x384xf32>
    %c0_5 = arith.constant 0 : index
    %c0_6 = arith.constant 0 : index
    %3 = vector.load %arg10[%c0_5, %c0_6] : memref<1x128xf32, #tpu.memory_space<vmem>>, vector<1x128xf32>
    %c0_7 = arith.constant 0 : index
    %c0_8 = arith.constant 0 : index
    %c0_9 = arith.constant 0 : index
    %4 = vector.load %arg1[%c0_7, %c0_8, %c0_9] : memref<8x8x32xbf16, #tpu.memory_space<vmem>>, vector<8x8x32xbf16>
    %5 = arith.extf %4 : vector<8x8x32xbf16> to vector<8x8x32xf32>
    %6 = math.tanh %5 : vector<8x8x32xf32>
    %7 = arith.truncf %6 : vector<8x8x32xf32> to vector<8x8x32xbf16>
    %8 = vector.shape_cast %7 : vector<8x8x32xbf16> to vector<64x32xbf16>
    %c0_10 = arith.constant 0 : index
    %c0_11 = arith.constant 0 : index
    %9 = vector.load %arg3[%c0_10, %c0_11] : memref<32x384xbf16, #tpu.memory_space<vmem>>, vector<32x384xbf16>
    %cst = arith.constant dense<0.000000e+00> : vector<64x384xf32>
    %10 = tpu.matmul %8, %9, %cst {dimension_numbers = #tpu.dot_dimension_numbers<[1], [0], [0], [1], [0, 0, 1, 1], [], []>} : vector<64x32xbf16>, vector<32x384xbf16>, vector<64x384xf32> -> vector<64x384xf32>
    %11 = vector.broadcast %0 : vector<1x384xf32> to vector<64x384xf32>
    %12 = arith.addf %10, %11 : vector<64x384xf32>
    %cst_12 = arith.constant 0.000000e+00 : f32
    %13 = vector.broadcast %cst_12 : f32 to vector<8x128xf32>
    %14 = vector.extract_strided_slice %12 {offsets = [0, 0], sizes = [8, 384], strides = [1, 1]} : vector<64x384xf32> to vector<8x384xf32>
    %15 = arith.truncf %13 : vector<8x128xf32> to vector<8x128xbf16>
    %c0_13 = arith.constant 0 : index
    %c0_14 = arith.constant 0 : index
    %16 = vector.load %arg4[%c0_13, %c0_14] : memref<128x384xbf16, #tpu.memory_space<vmem>>, vector<128x384xbf16>
    %cst_15 = arith.constant dense<0.000000e+00> : vector<8x384xf32>
    %17 = tpu.matmul %15, %16, %cst_15 {dimension_numbers = #tpu.dot_dimension_numbers<[1], [0], [0], [1], [0, 0, 1, 1], [], []>} : vector<8x128xbf16>, vector<128x384xbf16>, vector<8x384xf32> -> vector<8x384xf32>
    %18 = vector.extract_strided_slice %14 {offsets = [0, 0], sizes = [8, 128], strides = [1, 1]} : vector<8x384xf32> to vector<8x128xf32>
    %19 = vector.extract_strided_slice %14 {offsets = [0, 128], sizes = [8, 128], strides = [1, 1]} : vector<8x384xf32> to vector<8x128xf32>
    %20 = vector.extract_strided_slice %14 {offsets = [0, 256], sizes = [8, 128], strides = [1, 1]} : vector<8x384xf32> to vector<8x128xf32>
    %21 = vector.extract_strided_slice %17 {offsets = [0, 0], sizes = [8, 128], strides = [1, 1]} : vector<8x384xf32> to vector<8x128xf32>
    %22 = vector.extract_strided_slice %17 {offsets = [0, 128], sizes = [8, 128], strides = [1, 1]} : vector<8x384xf32> to vector<8x128xf32>
    %23 = vector.extract_strided_slice %17 {offsets = [0, 256], sizes = [8, 128], strides = [1, 1]} : vector<8x384xf32> to vector<8x128xf32>
    %24 = arith.addf %18, %21 : vector<8x128xf32>
    %25 = arith.negf %24 : vector<8x128xf32>
    %26 = math.exp %25 : vector<8x128xf32>
    %cst_16 = arith.constant 1.000000e+00 : f32
    %27 = vector.broadcast %cst_16 : f32 to vector<8x128xf32>
    %28 = arith.addf %27, %26 : vector<8x128xf32>
    %29 = arith.divf %27, %28 : vector<8x128xf32>
    %30 = arith.addf %19, %22 : vector<8x128xf32>
    %31 = arith.negf %30 : vector<8x128xf32>
    %32 = math.exp %31 : vector<8x128xf32>
    %cst_17 = arith.constant 1.000000e+00 : f32
    %33 = vector.broadcast %cst_17 : f32 to vector<8x128xf32>
    %34 = arith.addf %33, %32 : vector<8x128xf32>
    %35 = arith.divf %33, %34 : vector<8x128xf32>
    %36 = vector.broadcast %1 : vector<1x128xf32> to vector<8x128xf32>
    %37 = arith.addf %23, %36 : vector<8x128xf32>
    %38 = arith.mulf %29, %37 : vector<8x128xf32>
    %39 = arith.addf %20, %38 : vector<8x128xf32>
    %40 = math.tanh %39 : vector<8x128xf32>
    %cst_18 = arith.constant 1.000000e+00 : f32
    %41 = vector.broadcast %cst_18 : f32 to vector<8x128xf32>
    %42 = arith.subf %41, %35 : vector<8x128xf32>
    %43 = arith.mulf %42, %40 : vector<8x128xf32>
    %44 = arith.mulf %35, %13 : vector<8x128xf32>
    %45 = arith.addf %43, %44 : vector<8x128xf32>
    %46 = vector.extract_strided_slice %12 {offsets = [8, 0], sizes = [8, 384], strides = [1, 1]} : vector<64x384xf32> to vector<8x384xf32>
    %47 = arith.truncf %45 : vector<8x128xf32> to vector<8x128xbf16>
    %c0_19 = arith.constant 0 : index
    %c0_20 = arith.constant 0 : index
    %48 = vector.load %arg4[%c0_19, %c0_20] : memref<128x384xbf16, #tpu.memory_space<vmem>>, vector<128x384xbf16>
    %cst_21 = arith.constant dense<0.000000e+00> : vector<8x384xf32>
    %49 = tpu.matmul %47, %48, %cst_21 {dimension_numbers = #tpu.dot_dimension_numbers<[1], [0], [0], [1], [0, 0, 1, 1], [], []>} : vector<8x128xbf16>, vector<128x384xbf16>, vector<8x384xf32> -> vector<8x384xf32>
    %50 = vector.extract_strided_slice %46 {offsets = [0, 0], sizes = [8, 128], strides = [1, 1]} : vector<8x384xf32> to vector<8x128xf32>
    %51 = vector.extract_strided_slice %46 {offsets = [0, 128], sizes = [8, 128], strides = [1, 1]} : vector<8x384xf32> to vector<8x128xf32>
    %52 = vector.extract_strided_slice %46 {offsets = [0, 256], sizes = [8, 128], strides = [1, 1]} : vector<8x384xf32> to vector<8x128xf32>
    %53 = vector.extract_strided_slice %49 {offsets = [0, 0], sizes = [8, 128], strides = [1, 1]} : vector<8x384xf32> to vector<8x128xf32>
    %54 = vector.extract_strided_slice %49 {offsets = [0, 128], sizes = [8, 128], strides = [1, 1]} : vector<8x384xf32> to vector<8x128xf32>
    %55 = vector.extract_strided_slice %49 {offsets = [0, 256], sizes = [8, 128], strides = [1, 1]} : vector<8x384xf32> to vector<8x128xf32>
    %56 = arith.addf %50, %53 : vector<8x128xf32>
    %57 = arith.negf %56 : vector<8x128xf32>
    %58 = math.exp %57 : vector<8x128xf32>
    %cst_22 = arith.constant 1.000000e+00 : f32
    %59 = vector.broadcast %cst_22 : f32 to vector<8x128xf32>
    %60 = arith.addf %59, %58 : vector<8x128xf32>
    %61 = arith.divf %59, %60 : vector<8x128xf32>
    %62 = arith.addf %51, %54 : vector<8x128xf32>
    %63 = arith.negf %62 : vector<8x128xf32>
    %64 = math.exp %63 : vector<8x128xf32>
    %cst_23 = arith.constant 1.000000e+00 : f32
    %65 = vector.broadcast %cst_23 : f32 to vector<8x128xf32>
    %66 = arith.addf %65, %64 : vector<8x128xf32>
    %67 = arith.divf %65, %66 : vector<8x128xf32>
    %68 = vector.broadcast %1 : vector<1x128xf32> to vector<8x128xf32>
    %69 = arith.addf %55, %68 : vector<8x128xf32>
    %70 = arith.mulf %61, %69 : vector<8x128xf32>
    %71 = arith.addf %52, %70 : vector<8x128xf32>
    %72 = math.tanh %71 : vector<8x128xf32>
    %cst_24 = arith.constant 1.000000e+00 : f32
    %73 = vector.broadcast %cst_24 : f32 to vector<8x128xf32>
    %74 = arith.subf %73, %67 : vector<8x128xf32>
    %75 = arith.mulf %74, %72 : vector<8x128xf32>
    %76 = arith.mulf %67, %45 : vector<8x128xf32>
    %77 = arith.addf %75, %76 : vector<8x128xf32>
    %78 = vector.extract_strided_slice %12 {offsets = [16, 0], sizes = [8, 384], strides = [1, 1]} : vector<64x384xf32> to vector<8x384xf32>
    %79 = arith.truncf %77 : vector<8x128xf32> to vector<8x128xbf16>
    %c0_25 = arith.constant 0 : index
    %c0_26 = arith.constant 0 : index
    %80 = vector.load %arg4[%c0_25, %c0_26] : memref<128x384xbf16, #tpu.memory_space<vmem>>, vector<128x384xbf16>
    %cst_27 = arith.constant dense<0.000000e+00> : vector<8x384xf32>
    %81 = tpu.matmul %79, %80, %cst_27 {dimension_numbers = #tpu.dot_dimension_numbers<[1], [0], [0], [1], [0, 0, 1, 1], [], []>} : vector<8x128xbf16>, vector<128x384xbf16>, vector<8x384xf32> -> vector<8x384xf32>
    %82 = vector.extract_strided_slice %78 {offsets = [0, 0], sizes = [8, 128], strides = [1, 1]} : vector<8x384xf32> to vector<8x128xf32>
    %83 = vector.extract_strided_slice %78 {offsets = [0, 128], sizes = [8, 128], strides = [1, 1]} : vector<8x384xf32> to vector<8x128xf32>
    %84 = vector.extract_strided_slice %78 {offsets = [0, 256], sizes = [8, 128], strides = [1, 1]} : vector<8x384xf32> to vector<8x128xf32>
    %85 = vector.extract_strided_slice %81 {offsets = [0, 0], sizes = [8, 128], strides = [1, 1]} : vector<8x384xf32> to vector<8x128xf32>
    %86 = vector.extract_strided_slice %81 {offsets = [0, 128], sizes = [8, 128], strides = [1, 1]} : vector<8x384xf32> to vector<8x128xf32>
    %87 = vector.extract_strided_slice %81 {offsets = [0, 256], sizes = [8, 128], strides = [1, 1]} : vector<8x384xf32> to vector<8x128xf32>
    %88 = arith.addf %82, %85 : vector<8x128xf32>
    %89 = arith.negf %88 : vector<8x128xf32>
    %90 = math.exp %89 : vector<8x128xf32>
    %cst_28 = arith.constant 1.000000e+00 : f32
    %91 = vector.broadcast %cst_28 : f32 to vector<8x128xf32>
    %92 = arith.addf %91, %90 : vector<8x128xf32>
    %93 = arith.divf %91, %92 : vector<8x128xf32>
    %94 = arith.addf %83, %86 : vector<8x128xf32>
    %95 = arith.negf %94 : vector<8x128xf32>
    %96 = math.exp %95 : vector<8x128xf32>
    %cst_29 = arith.constant 1.000000e+00 : f32
    %97 = vector.broadcast %cst_29 : f32 to vector<8x128xf32>
    %98 = arith.addf %97, %96 : vector<8x128xf32>
    %99 = arith.divf %97, %98 : vector<8x128xf32>
    %100 = vector.broadcast %1 : vector<1x128xf32> to vector<8x128xf32>
    %101 = arith.addf %87, %100 : vector<8x128xf32>
    %102 = arith.mulf %93, %101 : vector<8x128xf32>
    %103 = arith.addf %84, %102 : vector<8x128xf32>
    %104 = math.tanh %103 : vector<8x128xf32>
    %cst_30 = arith.constant 1.000000e+00 : f32
    %105 = vector.broadcast %cst_30 : f32 to vector<8x128xf32>
    %106 = arith.subf %105, %99 : vector<8x128xf32>
    %107 = arith.mulf %106, %104 : vector<8x128xf32>
    %108 = arith.mulf %99, %77 : vector<8x128xf32>
    %109 = arith.addf %107, %108 : vector<8x128xf32>
    %110 = vector.extract_strided_slice %12 {offsets = [24, 0], sizes = [8, 384], strides = [1, 1]} : vector<64x384xf32> to vector<8x384xf32>
    %111 = arith.truncf %109 : vector<8x128xf32> to vector<8x128xbf16>
    %c0_31 = arith.constant 0 : index
    %c0_32 = arith.constant 0 : index
    %112 = vector.load %arg4[%c0_31, %c0_32] : memref<128x384xbf16, #tpu.memory_space<vmem>>, vector<128x384xbf16>
    %cst_33 = arith.constant dense<0.000000e+00> : vector<8x384xf32>
    %113 = tpu.matmul %111, %112, %cst_33 {dimension_numbers = #tpu.dot_dimension_numbers<[1], [0], [0], [1], [0, 0, 1, 1], [], []>} : vector<8x128xbf16>, vector<128x384xbf16>, vector<8x384xf32> -> vector<8x384xf32>
    %114 = vector.extract_strided_slice %110 {offsets = [0, 0], sizes = [8, 128], strides = [1, 1]} : vector<8x384xf32> to vector<8x128xf32>
    %115 = vector.extract_strided_slice %110 {offsets = [0, 128], sizes = [8, 128], strides = [1, 1]} : vector<8x384xf32> to vector<8x128xf32>
    %116 = vector.extract_strided_slice %110 {offsets = [0, 256], sizes = [8, 128], strides = [1, 1]} : vector<8x384xf32> to vector<8x128xf32>
    %117 = vector.extract_strided_slice %113 {offsets = [0, 0], sizes = [8, 128], strides = [1, 1]} : vector<8x384xf32> to vector<8x128xf32>
    %118 = vector.extract_strided_slice %113 {offsets = [0, 128], sizes = [8, 128], strides = [1, 1]} : vector<8x384xf32> to vector<8x128xf32>
    %119 = vector.extract_strided_slice %113 {offsets = [0, 256], sizes = [8, 128], strides = [1, 1]} : vector<8x384xf32> to vector<8x128xf32>
    %120 = arith.addf %114, %117 : vector<8x128xf32>
    %121 = arith.negf %120 : vector<8x128xf32>
    %122 = math.exp %121 : vector<8x128xf32>
    %cst_34 = arith.constant 1.000000e+00 : f32
    %123 = vector.broadcast %cst_34 : f32 to vector<8x128xf32>
    %124 = arith.addf %123, %122 : vector<8x128xf32>
    %125 = arith.divf %123, %124 : vector<8x128xf32>
    %126 = arith.addf %115, %118 : vector<8x128xf32>
    %127 = arith.negf %126 : vector<8x128xf32>
    %128 = math.exp %127 : vector<8x128xf32>
    %cst_35 = arith.constant 1.000000e+00 : f32
    %129 = vector.broadcast %cst_35 : f32 to vector<8x128xf32>
    %130 = arith.addf %129, %128 : vector<8x128xf32>
    %131 = arith.divf %129, %130 : vector<8x128xf32>
    %132 = vector.broadcast %1 : vector<1x128xf32> to vector<8x128xf32>
    %133 = arith.addf %119, %132 : vector<8x128xf32>
    %134 = arith.mulf %125, %133 : vector<8x128xf32>
    %135 = arith.addf %116, %134 : vector<8x128xf32>
    %136 = math.tanh %135 : vector<8x128xf32>
    %cst_36 = arith.constant 1.000000e+00 : f32
    %137 = vector.broadcast %cst_36 : f32 to vector<8x128xf32>
    %138 = arith.subf %137, %131 : vector<8x128xf32>
    %139 = arith.mulf %138, %136 : vector<8x128xf32>
    %140 = arith.mulf %131, %109 : vector<8x128xf32>
    %141 = arith.addf %139, %140 : vector<8x128xf32>
    %142 = vector.extract_strided_slice %12 {offsets = [32, 0], sizes = [8, 384], strides = [1, 1]} : vector<64x384xf32> to vector<8x384xf32>
    %143 = arith.truncf %141 : vector<8x128xf32> to vector<8x128xbf16>
    %c0_37 = arith.constant 0 : index
    %c0_38 = arith.constant 0 : index
    %144 = vector.load %arg4[%c0_37, %c0_38] : memref<128x384xbf16, #tpu.memory_space<vmem>>, vector<128x384xbf16>
    %cst_39 = arith.constant dense<0.000000e+00> : vector<8x384xf32>
    %145 = tpu.matmul %143, %144, %cst_39 {dimension_numbers = #tpu.dot_dimension_numbers<[1], [0], [0], [1], [0, 0, 1, 1], [], []>} : vector<8x128xbf16>, vector<128x384xbf16>, vector<8x384xf32> -> vector<8x384xf32>
    %146 = vector.extract_strided_slice %142 {offsets = [0, 0], sizes = [8, 128], strides = [1, 1]} : vector<8x384xf32> to vector<8x128xf32>
    %147 = vector.extract_strided_slice %142 {offsets = [0, 128], sizes = [8, 128], strides = [1, 1]} : vector<8x384xf32> to vector<8x128xf32>
    %148 = vector.extract_strided_slice %142 {offsets = [0, 256], sizes = [8, 128], strides = [1, 1]} : vector<8x384xf32> to vector<8x128xf32>
    %149 = vector.extract_strided_slice %145 {offsets = [0, 0], sizes = [8, 128], strides = [1, 1]} : vector<8x384xf32> to vector<8x128xf32>
    %150 = vector.extract_strided_slice %145 {offsets = [0, 128], sizes = [8, 128], strides = [1, 1]} : vector<8x384xf32> to vector<8x128xf32>
    %151 = vector.extract_strided_slice %145 {offsets = [0, 256], sizes = [8, 128], strides = [1, 1]} : vector<8x384xf32> to vector<8x128xf32>
    %152 = arith.addf %146, %149 : vector<8x128xf32>
    %153 = arith.negf %152 : vector<8x128xf32>
    %154 = math.exp %153 : vector<8x128xf32>
    %cst_40 = arith.constant 1.000000e+00 : f32
    %155 = vector.broadcast %cst_40 : f32 to vector<8x128xf32>
    %156 = arith.addf %155, %154 : vector<8x128xf32>
    %157 = arith.divf %155, %156 : vector<8x128xf32>
    %158 = arith.addf %147, %150 : vector<8x128xf32>
    %159 = arith.negf %158 : vector<8x128xf32>
    %160 = math.exp %159 : vector<8x128xf32>
    %cst_41 = arith.constant 1.000000e+00 : f32
    %161 = vector.broadcast %cst_41 : f32 to vector<8x128xf32>
    %162 = arith.addf %161, %160 : vector<8x128xf32>
    %163 = arith.divf %161, %162 : vector<8x128xf32>
    %164 = vector.broadcast %1 : vector<1x128xf32> to vector<8x128xf32>
    %165 = arith.addf %151, %164 : vector<8x128xf32>
    %166 = arith.mulf %157, %165 : vector<8x128xf32>
    %167 = arith.addf %148, %166 : vector<8x128xf32>
    %168 = math.tanh %167 : vector<8x128xf32>
    %cst_42 = arith.constant 1.000000e+00 : f32
    %169 = vector.broadcast %cst_42 : f32 to vector<8x128xf32>
    %170 = arith.subf %169, %163 : vector<8x128xf32>
    %171 = arith.mulf %170, %168 : vector<8x128xf32>
    %172 = arith.mulf %163, %141 : vector<8x128xf32>
    %173 = arith.addf %171, %172 : vector<8x128xf32>
    %174 = vector.extract_strided_slice %12 {offsets = [40, 0], sizes = [8, 384], strides = [1, 1]} : vector<64x384xf32> to vector<8x384xf32>
    %175 = arith.truncf %173 : vector<8x128xf32> to vector<8x128xbf16>
    %c0_43 = arith.constant 0 : index
    %c0_44 = arith.constant 0 : index
    %176 = vector.load %arg4[%c0_43, %c0_44] : memref<128x384xbf16, #tpu.memory_space<vmem>>, vector<128x384xbf16>
    %cst_45 = arith.constant dense<0.000000e+00> : vector<8x384xf32>
    %177 = tpu.matmul %175, %176, %cst_45 {dimension_numbers = #tpu.dot_dimension_numbers<[1], [0], [0], [1], [0, 0, 1, 1], [], []>} : vector<8x128xbf16>, vector<128x384xbf16>, vector<8x384xf32> -> vector<8x384xf32>
    %178 = vector.extract_strided_slice %174 {offsets = [0, 0], sizes = [8, 128], strides = [1, 1]} : vector<8x384xf32> to vector<8x128xf32>
    %179 = vector.extract_strided_slice %174 {offsets = [0, 128], sizes = [8, 128], strides = [1, 1]} : vector<8x384xf32> to vector<8x128xf32>
    %180 = vector.extract_strided_slice %174 {offsets = [0, 256], sizes = [8, 128], strides = [1, 1]} : vector<8x384xf32> to vector<8x128xf32>
    %181 = vector.extract_strided_slice %177 {offsets = [0, 0], sizes = [8, 128], strides = [1, 1]} : vector<8x384xf32> to vector<8x128xf32>
    %182 = vector.extract_strided_slice %177 {offsets = [0, 128], sizes = [8, 128], strides = [1, 1]} : vector<8x384xf32> to vector<8x128xf32>
    %183 = vector.extract_strided_slice %177 {offsets = [0, 256], sizes = [8, 128], strides = [1, 1]} : vector<8x384xf32> to vector<8x128xf32>
    %184 = arith.addf %178, %181 : vector<8x128xf32>
    %185 = arith.negf %184 : vector<8x128xf32>
    %186 = math.exp %185 : vector<8x128xf32>
    %cst_46 = arith.constant 1.000000e+00 : f32
    %187 = vector.broadcast %cst_46 : f32 to vector<8x128xf32>
    %188 = arith.addf %187, %186 : vector<8x128xf32>
    %189 = arith.divf %187, %188 : vector<8x128xf32>
    %190 = arith.addf %179, %182 : vector<8x128xf32>
    %191 = arith.negf %190 : vector<8x128xf32>
    %192 = math.exp %191 : vector<8x128xf32>
    %cst_47 = arith.constant 1.000000e+00 : f32
    %193 = vector.broadcast %cst_47 : f32 to vector<8x128xf32>
    %194 = arith.addf %193, %192 : vector<8x128xf32>
    %195 = arith.divf %193, %194 : vector<8x128xf32>
    %196 = vector.broadcast %1 : vector<1x128xf32> to vector<8x128xf32>
    %197 = arith.addf %183, %196 : vector<8x128xf32>
    %198 = arith.mulf %189, %197 : vector<8x128xf32>
    %199 = arith.addf %180, %198 : vector<8x128xf32>
    %200 = math.tanh %199 : vector<8x128xf32>
    %cst_48 = arith.constant 1.000000e+00 : f32
    %201 = vector.broadcast %cst_48 : f32 to vector<8x128xf32>
    %202 = arith.subf %201, %195 : vector<8x128xf32>
    %203 = arith.mulf %202, %200 : vector<8x128xf32>
    %204 = arith.mulf %195, %173 : vector<8x128xf32>
    %205 = arith.addf %203, %204 : vector<8x128xf32>
    %206 = vector.extract_strided_slice %12 {offsets = [48, 0], sizes = [8, 384], strides = [1, 1]} : vector<64x384xf32> to vector<8x384xf32>
    %207 = arith.truncf %205 : vector<8x128xf32> to vector<8x128xbf16>
    %c0_49 = arith.constant 0 : index
    %c0_50 = arith.constant 0 : index
    %208 = vector.load %arg4[%c0_49, %c0_50] : memref<128x384xbf16, #tpu.memory_space<vmem>>, vector<128x384xbf16>
    %cst_51 = arith.constant dense<0.000000e+00> : vector<8x384xf32>
    %209 = tpu.matmul %207, %208, %cst_51 {dimension_numbers = #tpu.dot_dimension_numbers<[1], [0], [0], [1], [0, 0, 1, 1], [], []>} : vector<8x128xbf16>, vector<128x384xbf16>, vector<8x384xf32> -> vector<8x384xf32>
    %210 = vector.extract_strided_slice %206 {offsets = [0, 0], sizes = [8, 128], strides = [1, 1]} : vector<8x384xf32> to vector<8x128xf32>
    %211 = vector.extract_strided_slice %206 {offsets = [0, 128], sizes = [8, 128], strides = [1, 1]} : vector<8x384xf32> to vector<8x128xf32>
    %212 = vector.extract_strided_slice %206 {offsets = [0, 256], sizes = [8, 128], strides = [1, 1]} : vector<8x384xf32> to vector<8x128xf32>
    %213 = vector.extract_strided_slice %209 {offsets = [0, 0], sizes = [8, 128], strides = [1, 1]} : vector<8x384xf32> to vector<8x128xf32>
    %214 = vector.extract_strided_slice %209 {offsets = [0, 128], sizes = [8, 128], strides = [1, 1]} : vector<8x384xf32> to vector<8x128xf32>
    %215 = vector.extract_strided_slice %209 {offsets = [0, 256], sizes = [8, 128], strides = [1, 1]} : vector<8x384xf32> to vector<8x128xf32>
    %216 = arith.addf %210, %213 : vector<8x128xf32>
    %217 = arith.negf %216 : vector<8x128xf32>
    %218 = math.exp %217 : vector<8x128xf32>
    %cst_52 = arith.constant 1.000000e+00 : f32
    %219 = vector.broadcast %cst_52 : f32 to vector<8x128xf32>
    %220 = arith.addf %219, %218 : vector<8x128xf32>
    %221 = arith.divf %219, %220 : vector<8x128xf32>
    %222 = arith.addf %211, %214 : vector<8x128xf32>
    %223 = arith.negf %222 : vector<8x128xf32>
    %224 = math.exp %223 : vector<8x128xf32>
    %cst_53 = arith.constant 1.000000e+00 : f32
    %225 = vector.broadcast %cst_53 : f32 to vector<8x128xf32>
    %226 = arith.addf %225, %224 : vector<8x128xf32>
    %227 = arith.divf %225, %226 : vector<8x128xf32>
    %228 = vector.broadcast %1 : vector<1x128xf32> to vector<8x128xf32>
    %229 = arith.addf %215, %228 : vector<8x128xf32>
    %230 = arith.mulf %221, %229 : vector<8x128xf32>
    %231 = arith.addf %212, %230 : vector<8x128xf32>
    %232 = math.tanh %231 : vector<8x128xf32>
    %cst_54 = arith.constant 1.000000e+00 : f32
    %233 = vector.broadcast %cst_54 : f32 to vector<8x128xf32>
    %234 = arith.subf %233, %227 : vector<8x128xf32>
    %235 = arith.mulf %234, %232 : vector<8x128xf32>
    %236 = arith.mulf %227, %205 : vector<8x128xf32>
    %237 = arith.addf %235, %236 : vector<8x128xf32>
    %238 = vector.extract_strided_slice %12 {offsets = [56, 0], sizes = [8, 384], strides = [1, 1]} : vector<64x384xf32> to vector<8x384xf32>
    %239 = arith.truncf %237 : vector<8x128xf32> to vector<8x128xbf16>
    %c0_55 = arith.constant 0 : index
    %c0_56 = arith.constant 0 : index
    %240 = vector.load %arg4[%c0_55, %c0_56] : memref<128x384xbf16, #tpu.memory_space<vmem>>, vector<128x384xbf16>
    %cst_57 = arith.constant dense<0.000000e+00> : vector<8x384xf32>
    %241 = tpu.matmul %239, %240, %cst_57 {dimension_numbers = #tpu.dot_dimension_numbers<[1], [0], [0], [1], [0, 0, 1, 1], [], []>} : vector<8x128xbf16>, vector<128x384xbf16>, vector<8x384xf32> -> vector<8x384xf32>
    %242 = vector.extract_strided_slice %238 {offsets = [0, 0], sizes = [8, 128], strides = [1, 1]} : vector<8x384xf32> to vector<8x128xf32>
    %243 = vector.extract_strided_slice %238 {offsets = [0, 128], sizes = [8, 128], strides = [1, 1]} : vector<8x384xf32> to vector<8x128xf32>
    %244 = vector.extract_strided_slice %238 {offsets = [0, 256], sizes = [8, 128], strides = [1, 1]} : vector<8x384xf32> to vector<8x128xf32>
    %245 = vector.extract_strided_slice %241 {offsets = [0, 0], sizes = [8, 128], strides = [1, 1]} : vector<8x384xf32> to vector<8x128xf32>
    %246 = vector.extract_strided_slice %241 {offsets = [0, 128], sizes = [8, 128], strides = [1, 1]} : vector<8x384xf32> to vector<8x128xf32>
    %247 = vector.extract_strided_slice %241 {offsets = [0, 256], sizes = [8, 128], strides = [1, 1]} : vector<8x384xf32> to vector<8x128xf32>
    %248 = arith.addf %242, %245 : vector<8x128xf32>
    %249 = arith.negf %248 : vector<8x128xf32>
    %250 = math.exp %249 : vector<8x128xf32>
    %cst_58 = arith.constant 1.000000e+00 : f32
    %251 = vector.broadcast %cst_58 : f32 to vector<8x128xf32>
    %252 = arith.addf %251, %250 : vector<8x128xf32>
    %253 = arith.divf %251, %252 : vector<8x128xf32>
    %254 = arith.addf %243, %246 : vector<8x128xf32>
    %255 = arith.negf %254 : vector<8x128xf32>
    %256 = math.exp %255 : vector<8x128xf32>
    %cst_59 = arith.constant 1.000000e+00 : f32
    %257 = vector.broadcast %cst_59 : f32 to vector<8x128xf32>
    %258 = arith.addf %257, %256 : vector<8x128xf32>
    %259 = arith.divf %257, %258 : vector<8x128xf32>
    %260 = vector.broadcast %1 : vector<1x128xf32> to vector<8x128xf32>
    %261 = arith.addf %247, %260 : vector<8x128xf32>
    %262 = arith.mulf %253, %261 : vector<8x128xf32>
    %263 = arith.addf %244, %262 : vector<8x128xf32>
    %264 = math.tanh %263 : vector<8x128xf32>
    %cst_60 = arith.constant 1.000000e+00 : f32
    %265 = vector.broadcast %cst_60 : f32 to vector<8x128xf32>
    %266 = arith.subf %265, %259 : vector<8x128xf32>
    %267 = arith.mulf %266, %264 : vector<8x128xf32>
    %268 = arith.mulf %259, %237 : vector<8x128xf32>
    %269 = arith.addf %267, %268 : vector<8x128xf32>
    %c0_61 = arith.constant 0 : index
    %c0_62 = arith.constant 0 : index
    %270 = vector.load %arg2[%c0_61, %c0_62] : memref<6x32xf32, #tpu.memory_space<vmem>>, vector<6x32xf32>
    %271 = math.tanh %270 : vector<6x32xf32>
    %272 = arith.truncf %271 : vector<6x32xf32> to vector<6x32xbf16>
    %c0_63 = arith.constant 0 : index
    %c0_64 = arith.constant 0 : index
    %273 = vector.load %arg7[%c0_63, %c0_64] : memref<32x384xbf16, #tpu.memory_space<vmem>>, vector<32x384xbf16>
    %cst_65 = arith.constant dense<0.000000e+00> : vector<6x384xf32>
    %274 = tpu.matmul %272, %273, %cst_65 {dimension_numbers = #tpu.dot_dimension_numbers<[1], [0], [0], [1], [0, 0, 1, 1], [], []>} : vector<6x32xbf16>, vector<32x384xbf16>, vector<6x384xf32> -> vector<6x384xf32>
    %275 = vector.broadcast %2 : vector<1x384xf32> to vector<6x384xf32>
    %276 = arith.addf %274, %275 : vector<6x384xf32>
    %277 = vector.extract_strided_slice %276 {offsets = [0, 0], sizes = [1, 384], strides = [1, 1]} : vector<6x384xf32> to vector<1x384xf32>
    %278 = arith.truncf %269 : vector<8x128xf32> to vector<8x128xbf16>
    %c0_66 = arith.constant 0 : index
    %c0_67 = arith.constant 0 : index
    %279 = vector.load %arg8[%c0_66, %c0_67] : memref<128x384xbf16, #tpu.memory_space<vmem>>, vector<128x384xbf16>
    %cst_68 = arith.constant dense<0.000000e+00> : vector<8x384xf32>
    %280 = tpu.matmul %278, %279, %cst_68 {dimension_numbers = #tpu.dot_dimension_numbers<[1], [0], [0], [1], [0, 0, 1, 1], [], []>} : vector<8x128xbf16>, vector<128x384xbf16>, vector<8x384xf32> -> vector<8x384xf32>
    %281 = vector.extract_strided_slice %277 {offsets = [0, 0], sizes = [1, 128], strides = [1, 1]} : vector<1x384xf32> to vector<1x128xf32>
    %282 = vector.extract_strided_slice %277 {offsets = [0, 128], sizes = [1, 128], strides = [1, 1]} : vector<1x384xf32> to vector<1x128xf32>
    %283 = vector.extract_strided_slice %277 {offsets = [0, 256], sizes = [1, 128], strides = [1, 1]} : vector<1x384xf32> to vector<1x128xf32>
    %284 = vector.extract_strided_slice %280 {offsets = [0, 0], sizes = [8, 128], strides = [1, 1]} : vector<8x384xf32> to vector<8x128xf32>
    %285 = vector.extract_strided_slice %280 {offsets = [0, 128], sizes = [8, 128], strides = [1, 1]} : vector<8x384xf32> to vector<8x128xf32>
    %286 = vector.extract_strided_slice %280 {offsets = [0, 256], sizes = [8, 128], strides = [1, 1]} : vector<8x384xf32> to vector<8x128xf32>
    %287 = vector.broadcast %281 : vector<1x128xf32> to vector<8x128xf32>
    %288 = arith.addf %287, %284 : vector<8x128xf32>
    %289 = arith.negf %288 : vector<8x128xf32>
    %290 = math.exp %289 : vector<8x128xf32>
    %cst_69 = arith.constant 1.000000e+00 : f32
    %291 = vector.broadcast %cst_69 : f32 to vector<8x128xf32>
    %292 = arith.addf %291, %290 : vector<8x128xf32>
    %293 = arith.divf %291, %292 : vector<8x128xf32>
    %294 = vector.broadcast %282 : vector<1x128xf32> to vector<8x128xf32>
    %295 = arith.addf %294, %285 : vector<8x128xf32>
    %296 = arith.negf %295 : vector<8x128xf32>
    %297 = math.exp %296 : vector<8x128xf32>
    %cst_70 = arith.constant 1.000000e+00 : f32
    %298 = vector.broadcast %cst_70 : f32 to vector<8x128xf32>
    %299 = arith.addf %298, %297 : vector<8x128xf32>
    %300 = arith.divf %298, %299 : vector<8x128xf32>
    %301 = vector.broadcast %3 : vector<1x128xf32> to vector<8x128xf32>
    %302 = arith.addf %286, %301 : vector<8x128xf32>
    %303 = arith.mulf %293, %302 : vector<8x128xf32>
    %304 = vector.broadcast %283 : vector<1x128xf32> to vector<8x128xf32>
    %305 = arith.addf %304, %303 : vector<8x128xf32>
    %306 = math.tanh %305 : vector<8x128xf32>
    %cst_71 = arith.constant 1.000000e+00 : f32
    %307 = vector.broadcast %cst_71 : f32 to vector<8x128xf32>
    %308 = arith.subf %307, %300 : vector<8x128xf32>
    %309 = arith.mulf %308, %306 : vector<8x128xf32>
    %310 = arith.mulf %300, %269 : vector<8x128xf32>
    %311 = arith.addf %309, %310 : vector<8x128xf32>
    %312 = math.tanh %311 : vector<8x128xf32>
    %313 = vector.extract_strided_slice %276 {offsets = [1, 0], sizes = [1, 384], strides = [1, 1]} : vector<6x384xf32> to vector<1x384xf32>
    %314 = arith.truncf %312 : vector<8x128xf32> to vector<8x128xbf16>
    %c0_72 = arith.constant 0 : index
    %c0_73 = arith.constant 0 : index
    %315 = vector.load %arg8[%c0_72, %c0_73] : memref<128x384xbf16, #tpu.memory_space<vmem>>, vector<128x384xbf16>
    %cst_74 = arith.constant dense<0.000000e+00> : vector<8x384xf32>
    %316 = tpu.matmul %314, %315, %cst_74 {dimension_numbers = #tpu.dot_dimension_numbers<[1], [0], [0], [1], [0, 0, 1, 1], [], []>} : vector<8x128xbf16>, vector<128x384xbf16>, vector<8x384xf32> -> vector<8x384xf32>
    %317 = vector.extract_strided_slice %313 {offsets = [0, 0], sizes = [1, 128], strides = [1, 1]} : vector<1x384xf32> to vector<1x128xf32>
    %318 = vector.extract_strided_slice %313 {offsets = [0, 128], sizes = [1, 128], strides = [1, 1]} : vector<1x384xf32> to vector<1x128xf32>
    %319 = vector.extract_strided_slice %313 {offsets = [0, 256], sizes = [1, 128], strides = [1, 1]} : vector<1x384xf32> to vector<1x128xf32>
    %320 = vector.extract_strided_slice %316 {offsets = [0, 0], sizes = [8, 128], strides = [1, 1]} : vector<8x384xf32> to vector<8x128xf32>
    %321 = vector.extract_strided_slice %316 {offsets = [0, 128], sizes = [8, 128], strides = [1, 1]} : vector<8x384xf32> to vector<8x128xf32>
    %322 = vector.extract_strided_slice %316 {offsets = [0, 256], sizes = [8, 128], strides = [1, 1]} : vector<8x384xf32> to vector<8x128xf32>
    %323 = vector.broadcast %317 : vector<1x128xf32> to vector<8x128xf32>
    %324 = arith.addf %323, %320 : vector<8x128xf32>
    %325 = arith.negf %324 : vector<8x128xf32>
    %326 = math.exp %325 : vector<8x128xf32>
    %cst_75 = arith.constant 1.000000e+00 : f32
    %327 = vector.broadcast %cst_75 : f32 to vector<8x128xf32>
    %328 = arith.addf %327, %326 : vector<8x128xf32>
    %329 = arith.divf %327, %328 : vector<8x128xf32>
    %330 = vector.broadcast %318 : vector<1x128xf32> to vector<8x128xf32>
    %331 = arith.addf %330, %321 : vector<8x128xf32>
    %332 = arith.negf %331 : vector<8x128xf32>
    %333 = math.exp %332 : vector<8x128xf32>
    %cst_76 = arith.constant 1.000000e+00 : f32
    %334 = vector.broadcast %cst_76 : f32 to vector<8x128xf32>
    %335 = arith.addf %334, %333 : vector<8x128xf32>
    %336 = arith.divf %334, %335 : vector<8x128xf32>
    %337 = vector.broadcast %3 : vector<1x128xf32> to vector<8x128xf32>
    %338 = arith.addf %322, %337 : vector<8x128xf32>
    %339 = arith.mulf %329, %338 : vector<8x128xf32>
    %340 = vector.broadcast %319 : vector<1x128xf32> to vector<8x128xf32>
    %341 = arith.addf %340, %339 : vector<8x128xf32>
    %342 = math.tanh %341 : vector<8x128xf32>
    %cst_77 = arith.constant 1.000000e+00 : f32
    %343 = vector.broadcast %cst_77 : f32 to vector<8x128xf32>
    %344 = arith.subf %343, %336 : vector<8x128xf32>
    %345 = arith.mulf %344, %342 : vector<8x128xf32>
    %346 = arith.mulf %336, %312 : vector<8x128xf32>
    %347 = arith.addf %345, %346 : vector<8x128xf32>
    %348 = math.tanh %347 : vector<8x128xf32>
    %349 = vector.extract_strided_slice %276 {offsets = [2, 0], sizes = [1, 384], strides = [1, 1]} : vector<6x384xf32> to vector<1x384xf32>
    %350 = arith.truncf %348 : vector<8x128xf32> to vector<8x128xbf16>
    %c0_78 = arith.constant 0 : index
    %c0_79 = arith.constant 0 : index
    %351 = vector.load %arg8[%c0_78, %c0_79] : memref<128x384xbf16, #tpu.memory_space<vmem>>, vector<128x384xbf16>
    %cst_80 = arith.constant dense<0.000000e+00> : vector<8x384xf32>
    %352 = tpu.matmul %350, %351, %cst_80 {dimension_numbers = #tpu.dot_dimension_numbers<[1], [0], [0], [1], [0, 0, 1, 1], [], []>} : vector<8x128xbf16>, vector<128x384xbf16>, vector<8x384xf32> -> vector<8x384xf32>
    %353 = vector.extract_strided_slice %349 {offsets = [0, 0], sizes = [1, 128], strides = [1, 1]} : vector<1x384xf32> to vector<1x128xf32>
    %354 = vector.extract_strided_slice %349 {offsets = [0, 128], sizes = [1, 128], strides = [1, 1]} : vector<1x384xf32> to vector<1x128xf32>
    %355 = vector.extract_strided_slice %349 {offsets = [0, 256], sizes = [1, 128], strides = [1, 1]} : vector<1x384xf32> to vector<1x128xf32>
    %356 = vector.extract_strided_slice %352 {offsets = [0, 0], sizes = [8, 128], strides = [1, 1]} : vector<8x384xf32> to vector<8x128xf32>
    %357 = vector.extract_strided_slice %352 {offsets = [0, 128], sizes = [8, 128], strides = [1, 1]} : vector<8x384xf32> to vector<8x128xf32>
    %358 = vector.extract_strided_slice %352 {offsets = [0, 256], sizes = [8, 128], strides = [1, 1]} : vector<8x384xf32> to vector<8x128xf32>
    %359 = vector.broadcast %353 : vector<1x128xf32> to vector<8x128xf32>
    %360 = arith.addf %359, %356 : vector<8x128xf32>
    %361 = arith.negf %360 : vector<8x128xf32>
    %362 = math.exp %361 : vector<8x128xf32>
    %cst_81 = arith.constant 1.000000e+00 : f32
    %363 = vector.broadcast %cst_81 : f32 to vector<8x128xf32>
    %364 = arith.addf %363, %362 : vector<8x128xf32>
    %365 = arith.divf %363, %364 : vector<8x128xf32>
    %366 = vector.broadcast %354 : vector<1x128xf32> to vector<8x128xf32>
    %367 = arith.addf %366, %357 : vector<8x128xf32>
    %368 = arith.negf %367 : vector<8x128xf32>
    %369 = math.exp %368 : vector<8x128xf32>
    %cst_82 = arith.constant 1.000000e+00 : f32
    %370 = vector.broadcast %cst_82 : f32 to vector<8x128xf32>
    %371 = arith.addf %370, %369 : vector<8x128xf32>
    %372 = arith.divf %370, %371 : vector<8x128xf32>
    %373 = vector.broadcast %3 : vector<1x128xf32> to vector<8x128xf32>
    %374 = arith.addf %358, %373 : vector<8x128xf32>
    %375 = arith.mulf %365, %374 : vector<8x128xf32>
    %376 = vector.broadcast %355 : vector<1x128xf32> to vector<8x128xf32>
    %377 = arith.addf %376, %375 : vector<8x128xf32>
    %378 = math.tanh %377 : vector<8x128xf32>
    %cst_83 = arith.constant 1.000000e+00 : f32
    %379 = vector.broadcast %cst_83 : f32 to vector<8x128xf32>
    %380 = arith.subf %379, %372 : vector<8x128xf32>
    %381 = arith.mulf %380, %378 : vector<8x128xf32>
    %382 = arith.mulf %372, %348 : vector<8x128xf32>
    %383 = arith.addf %381, %382 : vector<8x128xf32>
    %384 = math.tanh %383 : vector<8x128xf32>
    %385 = vector.extract_strided_slice %276 {offsets = [3, 0], sizes = [1, 384], strides = [1, 1]} : vector<6x384xf32> to vector<1x384xf32>
    %386 = arith.truncf %384 : vector<8x128xf32> to vector<8x128xbf16>
    %c0_84 = arith.constant 0 : index
    %c0_85 = arith.constant 0 : index
    %387 = vector.load %arg8[%c0_84, %c0_85] : memref<128x384xbf16, #tpu.memory_space<vmem>>, vector<128x384xbf16>
    %cst_86 = arith.constant dense<0.000000e+00> : vector<8x384xf32>
    %388 = tpu.matmul %386, %387, %cst_86 {dimension_numbers = #tpu.dot_dimension_numbers<[1], [0], [0], [1], [0, 0, 1, 1], [], []>} : vector<8x128xbf16>, vector<128x384xbf16>, vector<8x384xf32> -> vector<8x384xf32>
    %389 = vector.extract_strided_slice %385 {offsets = [0, 0], sizes = [1, 128], strides = [1, 1]} : vector<1x384xf32> to vector<1x128xf32>
    %390 = vector.extract_strided_slice %385 {offsets = [0, 128], sizes = [1, 128], strides = [1, 1]} : vector<1x384xf32> to vector<1x128xf32>
    %391 = vector.extract_strided_slice %385 {offsets = [0, 256], sizes = [1, 128], strides = [1, 1]} : vector<1x384xf32> to vector<1x128xf32>
    %392 = vector.extract_strided_slice %388 {offsets = [0, 0], sizes = [8, 128], strides = [1, 1]} : vector<8x384xf32> to vector<8x128xf32>
    %393 = vector.extract_strided_slice %388 {offsets = [0, 128], sizes = [8, 128], strides = [1, 1]} : vector<8x384xf32> to vector<8x128xf32>
    %394 = vector.extract_strided_slice %388 {offsets = [0, 256], sizes = [8, 128], strides = [1, 1]} : vector<8x384xf32> to vector<8x128xf32>
    %395 = vector.broadcast %389 : vector<1x128xf32> to vector<8x128xf32>
    %396 = arith.addf %395, %392 : vector<8x128xf32>
    %397 = arith.negf %396 : vector<8x128xf32>
    %398 = math.exp %397 : vector<8x128xf32>
    %cst_87 = arith.constant 1.000000e+00 : f32
    %399 = vector.broadcast %cst_87 : f32 to vector<8x128xf32>
    %400 = arith.addf %399, %398 : vector<8x128xf32>
    %401 = arith.divf %399, %400 : vector<8x128xf32>
    %402 = vector.broadcast %390 : vector<1x128xf32> to vector<8x128xf32>
    %403 = arith.addf %402, %393 : vector<8x128xf32>
    %404 = arith.negf %403 : vector<8x128xf32>
    %405 = math.exp %404 : vector<8x128xf32>
    %cst_88 = arith.constant 1.000000e+00 : f32
    %406 = vector.broadcast %cst_88 : f32 to vector<8x128xf32>
    %407 = arith.addf %406, %405 : vector<8x128xf32>
    %408 = arith.divf %406, %407 : vector<8x128xf32>
    %409 = vector.broadcast %3 : vector<1x128xf32> to vector<8x128xf32>
    %410 = arith.addf %394, %409 : vector<8x128xf32>
    %411 = arith.mulf %401, %410 : vector<8x128xf32>
    %412 = vector.broadcast %391 : vector<1x128xf32> to vector<8x128xf32>
    %413 = arith.addf %412, %411 : vector<8x128xf32>
    %414 = math.tanh %413 : vector<8x128xf32>
    %cst_89 = arith.constant 1.000000e+00 : f32
    %415 = vector.broadcast %cst_89 : f32 to vector<8x128xf32>
    %416 = arith.subf %415, %408 : vector<8x128xf32>
    %417 = arith.mulf %416, %414 : vector<8x128xf32>
    %418 = arith.mulf %408, %384 : vector<8x128xf32>
    %419 = arith.addf %417, %418 : vector<8x128xf32>
    %420 = math.tanh %419 : vector<8x128xf32>
    %421 = vector.extract_strided_slice %276 {offsets = [4, 0], sizes = [1, 384], strides = [1, 1]} : vector<6x384xf32> to vector<1x384xf32>
    %422 = arith.truncf %420 : vector<8x128xf32> to vector<8x128xbf16>
    %c0_90 = arith.constant 0 : index
    %c0_91 = arith.constant 0 : index
    %423 = vector.load %arg8[%c0_90, %c0_91] : memref<128x384xbf16, #tpu.memory_space<vmem>>, vector<128x384xbf16>
    %cst_92 = arith.constant dense<0.000000e+00> : vector<8x384xf32>
    %424 = tpu.matmul %422, %423, %cst_92 {dimension_numbers = #tpu.dot_dimension_numbers<[1], [0], [0], [1], [0, 0, 1, 1], [], []>} : vector<8x128xbf16>, vector<128x384xbf16>, vector<8x384xf32> -> vector<8x384xf32>
    %425 = vector.extract_strided_slice %421 {offsets = [0, 0], sizes = [1, 128], strides = [1, 1]} : vector<1x384xf32> to vector<1x128xf32>
    %426 = vector.extract_strided_slice %421 {offsets = [0, 128], sizes = [1, 128], strides = [1, 1]} : vector<1x384xf32> to vector<1x128xf32>
    %427 = vector.extract_strided_slice %421 {offsets = [0, 256], sizes = [1, 128], strides = [1, 1]} : vector<1x384xf32> to vector<1x128xf32>
    %428 = vector.extract_strided_slice %424 {offsets = [0, 0], sizes = [8, 128], strides = [1, 1]} : vector<8x384xf32> to vector<8x128xf32>
    %429 = vector.extract_strided_slice %424 {offsets = [0, 128], sizes = [8, 128], strides = [1, 1]} : vector<8x384xf32> to vector<8x128xf32>
    %430 = vector.extract_strided_slice %424 {offsets = [0, 256], sizes = [8, 128], strides = [1, 1]} : vector<8x384xf32> to vector<8x128xf32>
    %431 = vector.broadcast %425 : vector<1x128xf32> to vector<8x128xf32>
    %432 = arith.addf %431, %428 : vector<8x128xf32>
    %433 = arith.negf %432 : vector<8x128xf32>
    %434 = math.exp %433 : vector<8x128xf32>
    %cst_93 = arith.constant 1.000000e+00 : f32
    %435 = vector.broadcast %cst_93 : f32 to vector<8x128xf32>
    %436 = arith.addf %435, %434 : vector<8x128xf32>
    %437 = arith.divf %435, %436 : vector<8x128xf32>
    %438 = vector.broadcast %426 : vector<1x128xf32> to vector<8x128xf32>
    %439 = arith.addf %438, %429 : vector<8x128xf32>
    %440 = arith.negf %439 : vector<8x128xf32>
    %441 = math.exp %440 : vector<8x128xf32>
    %cst_94 = arith.constant 1.000000e+00 : f32
    %442 = vector.broadcast %cst_94 : f32 to vector<8x128xf32>
    %443 = arith.addf %442, %441 : vector<8x128xf32>
    %444 = arith.divf %442, %443 : vector<8x128xf32>
    %445 = vector.broadcast %3 : vector<1x128xf32> to vector<8x128xf32>
    %446 = arith.addf %430, %445 : vector<8x128xf32>
    %447 = arith.mulf %437, %446 : vector<8x128xf32>
    %448 = vector.broadcast %427 : vector<1x128xf32> to vector<8x128xf32>
    %449 = arith.addf %448, %447 : vector<8x128xf32>
    %450 = math.tanh %449 : vector<8x128xf32>
    %cst_95 = arith.constant 1.000000e+00 : f32
    %451 = vector.broadcast %cst_95 : f32 to vector<8x128xf32>
    %452 = arith.subf %451, %444 : vector<8x128xf32>
    %453 = arith.mulf %452, %450 : vector<8x128xf32>
    %454 = arith.mulf %444, %420 : vector<8x128xf32>
    %455 = arith.addf %453, %454 : vector<8x128xf32>
    %456 = math.tanh %455 : vector<8x128xf32>
    %457 = vector.extract_strided_slice %276 {offsets = [5, 0], sizes = [1, 384], strides = [1, 1]} : vector<6x384xf32> to vector<1x384xf32>
    %458 = arith.truncf %456 : vector<8x128xf32> to vector<8x128xbf16>
    %c0_96 = arith.constant 0 : index
    %c0_97 = arith.constant 0 : index
    %459 = vector.load %arg8[%c0_96, %c0_97] : memref<128x384xbf16, #tpu.memory_space<vmem>>, vector<128x384xbf16>
    %cst_98 = arith.constant dense<0.000000e+00> : vector<8x384xf32>
    %460 = tpu.matmul %458, %459, %cst_98 {dimension_numbers = #tpu.dot_dimension_numbers<[1], [0], [0], [1], [0, 0, 1, 1], [], []>} : vector<8x128xbf16>, vector<128x384xbf16>, vector<8x384xf32> -> vector<8x384xf32>
    %461 = vector.extract_strided_slice %457 {offsets = [0, 0], sizes = [1, 128], strides = [1, 1]} : vector<1x384xf32> to vector<1x128xf32>
    %462 = vector.extract_strided_slice %457 {offsets = [0, 128], sizes = [1, 128], strides = [1, 1]} : vector<1x384xf32> to vector<1x128xf32>
    %463 = vector.extract_strided_slice %457 {offsets = [0, 256], sizes = [1, 128], strides = [1, 1]} : vector<1x384xf32> to vector<1x128xf32>
    %464 = vector.extract_strided_slice %460 {offsets = [0, 0], sizes = [8, 128], strides = [1, 1]} : vector<8x384xf32> to vector<8x128xf32>
    %465 = vector.extract_strided_slice %460 {offsets = [0, 128], sizes = [8, 128], strides = [1, 1]} : vector<8x384xf32> to vector<8x128xf32>
    %466 = vector.extract_strided_slice %460 {offsets = [0, 256], sizes = [8, 128], strides = [1, 1]} : vector<8x384xf32> to vector<8x128xf32>
    %467 = vector.broadcast %461 : vector<1x128xf32> to vector<8x128xf32>
    %468 = arith.addf %467, %464 : vector<8x128xf32>
    %469 = arith.negf %468 : vector<8x128xf32>
    %470 = math.exp %469 : vector<8x128xf32>
    %cst_99 = arith.constant 1.000000e+00 : f32
    %471 = vector.broadcast %cst_99 : f32 to vector<8x128xf32>
    %472 = arith.addf %471, %470 : vector<8x128xf32>
    %473 = arith.divf %471, %472 : vector<8x128xf32>
    %474 = vector.broadcast %462 : vector<1x128xf32> to vector<8x128xf32>
    %475 = arith.addf %474, %465 : vector<8x128xf32>
    %476 = arith.negf %475 : vector<8x128xf32>
    %477 = math.exp %476 : vector<8x128xf32>
    %cst_100 = arith.constant 1.000000e+00 : f32
    %478 = vector.broadcast %cst_100 : f32 to vector<8x128xf32>
    %479 = arith.addf %478, %477 : vector<8x128xf32>
    %480 = arith.divf %478, %479 : vector<8x128xf32>
    %481 = vector.broadcast %3 : vector<1x128xf32> to vector<8x128xf32>
    %482 = arith.addf %466, %481 : vector<8x128xf32>
    %483 = arith.mulf %473, %482 : vector<8x128xf32>
    %484 = vector.broadcast %463 : vector<1x128xf32> to vector<8x128xf32>
    %485 = arith.addf %484, %483 : vector<8x128xf32>
    %486 = math.tanh %485 : vector<8x128xf32>
    %cst_101 = arith.constant 1.000000e+00 : f32
    %487 = vector.broadcast %cst_101 : f32 to vector<8x128xf32>
    %488 = arith.subf %487, %480 : vector<8x128xf32>
    %489 = arith.mulf %488, %486 : vector<8x128xf32>
    %490 = arith.mulf %480, %456 : vector<8x128xf32>
    %491 = arith.addf %489, %490 : vector<8x128xf32>
    %492 = math.tanh %491 : vector<8x128xf32>
    %493 = tpu.concatenate %312, %348, %384, %420, %456, %492 in 0 : vector<8x128xf32>, vector<8x128xf32>, vector<8x128xf32>, vector<8x128xf32>, vector<8x128xf32>, vector<8x128xf32> -> vector<48x128xf32>
    %494 = arith.truncf %493 : vector<48x128xf32> to vector<48x128xbf16>
    %c0_102 = arith.constant 0 : index
    %c0_103 = arith.constant 0 : index
    %495 = vector.load %arg11[%c0_102, %c0_103] : memref<128x128xbf16, #tpu.memory_space<vmem>>, vector<128x128xbf16>
    %cst_104 = arith.constant dense<0.000000e+00> : vector<48x128xf32>
    %496 = tpu.matmul %494, %495, %cst_104 {dimension_numbers = #tpu.dot_dimension_numbers<[1], [0], [0], [1], [0, 0, 1, 1], [], []>} : vector<48x128xbf16>, vector<128x128xbf16>, vector<48x128xf32> -> vector<48x128xf32>
    %c0_105 = arith.constant 0 : index
    %c0_106 = arith.constant 0 : index
    %497 = vector.load %arg12[%c0_105, %c0_106] : memref<1x128xf32, #tpu.memory_space<vmem>>, vector<1x128xf32>
    %498 = vector.broadcast %497 : vector<1x128xf32> to vector<48x128xf32>
    %499 = arith.addf %496, %498 : vector<48x128xf32>
    %500 = math.absf %499 : vector<48x128xf32>
    %cst_107 = arith.constant 0.000000e+00 : f32
    %501 = vector.broadcast %cst_107 : f32 to vector<48x128xf32>
    %502 = arith.subf %501, %500 : vector<48x128xf32>
    %503 = math.exp %502 : vector<48x128xf32>
    %cst_108 = arith.constant 1.000000e+00 : f32
    %504 = vector.broadcast %cst_108 : f32 to vector<48x128xf32>
    %505 = arith.addf %504, %503 : vector<48x128xf32>
    %506 = math.log %505 : vector<48x128xf32>
    %cst_109 = arith.constant 0.000000e+00 : f32
    %507 = vector.broadcast %cst_109 : f32 to vector<48x128xf32>
    %508 = arith.maximumf %499, %507 : vector<48x128xf32>
    %509 = arith.addf %508, %506 : vector<48x128xf32>
    %cst_110 = arith.constant 0.000000e+00 : f32
    %510 = vector.broadcast %cst_110 : f32 to vector<48x128xf32>
    %511 = arith.subf %510, %509 : vector<48x128xf32>
    %cst_111 = arith.constant 0.000000e+00 : f32
    %512 = vector.broadcast %cst_111 : f32 to vector<48x128xf32>
    %513 = arith.subf %512, %499 : vector<48x128xf32>
    %cst_112 = arith.constant 0.000000e+00 : f32
    %514 = vector.broadcast %cst_112 : f32 to vector<48x128xf32>
    %515 = arith.maximumf %513, %514 : vector<48x128xf32>
    %516 = arith.addf %515, %506 : vector<48x128xf32>
    %cst_113 = arith.constant 0.000000e+00 : f32
    %517 = vector.broadcast %cst_113 : f32 to vector<48x128xf32>
    %518 = arith.subf %517, %516 : vector<48x128xf32>
    %519 = tpu.iota {dimensions = array<i32: 1>} : vector<48x128xi32>
    %c0_i32 = arith.constant 0 : i32
    %520 = vector.broadcast %c0_i32 : i32 to vector<48x128xi32>
    %521 = arith.cmpi eq, %519, %520 : vector<48x128xi32>
    %522 = arith.select %521, %511, %518 : vector<48x128xi1>, vector<48x128xf32>
    %523 = vector.shape_cast %522 : vector<48x128xf32> to vector<6x8x128xf32>
    %c0_114 = arith.constant 0 : index
    %c0_115 = arith.constant 0 : index
    %c0_116 = arith.constant 0 : index
    %524 = vector.load %arg13[%c0_114, %c0_115, %c0_116] : memref<6x8x128xf32, #tpu.memory_space<vmem>>, vector<6x8x128xf32>
    tpu.vector_store %arg13[%c0_114, %c0_115, %c0_116], %523 {strides = array<i32>} : memref<6x8x128xf32, #tpu.memory_space<vmem>>, vector<6x8x128xf32>,
    return
  }
  func.func @transform_0(%arg0: i32) -> (i32, i32, i32) {
    %c0_i32 = arith.constant 0 : i32
    %c0_i32_0 = arith.constant 0 : i32
    %c0_i32_1 = arith.constant 0 : i32
    return %c0_i32, %arg0, %c0_i32_0 : i32, i32, i32
  }
  func.func @transform_1(%arg0: i32) -> (i32, i32) {
    %c0_i32 = arith.constant 0 : i32
    %c0_i32_0 = arith.constant 0 : i32
    %c0_i32_1 = arith.constant 0 : i32
    return %c0_i32, %c0_i32_0 : i32, i32
  }
  func.func @transform_2(%arg0: i32) -> (i32, i32) {
    %c0_i32 = arith.constant 0 : i32
    %c0_i32_0 = arith.constant 0 : i32
    %c0_i32_1 = arith.constant 0 : i32
    return %c0_i32, %c0_i32_0 : i32, i32
  }
  func.func @transform_3(%arg0: i32) -> (i32, i32) {
    %c0_i32 = arith.constant 0 : i32
    %c0_i32_0 = arith.constant 0 : i32
    %c0_i32_1 = arith.constant 0 : i32
    return %c0_i32, %c0_i32_0 : i32, i32
  }
  func.func @transform_4(%arg0: i32) -> (i32, i32) {
    %c0_i32 = arith.constant 0 : i32
    %c0_i32_0 = arith.constant 0 : i32
    %c0_i32_1 = arith.constant 0 : i32
    return %c0_i32, %c0_i32_0 : i32, i32
  }
  func.func @transform_5(%arg0: i32) -> (i32, i32) {
    %c0_i32 = arith.constant 0 : i32
    %c0_i32_0 = arith.constant 0 : i32
    %c0_i32_1 = arith.constant 0 : i32
    return %c0_i32, %c0_i32_0 : i32, i32
  }
  func.func @transform_6(%arg0: i32) -> (i32, i32) {
    %c0_i32 = arith.constant 0 : i32
    %c0_i32_0 = arith.constant 0 : i32
    %c0_i32_1 = arith.constant 0 : i32
    return %c0_i32, %c0_i32_0 : i32, i32
  }
  func.func @transform_7(%arg0: i32) -> (i32, i32) {
    %c0_i32 = arith.constant 0 : i32
    %c0_i32_0 = arith.constant 0 : i32
    %c0_i32_1 = arith.constant 0 : i32
    return %c0_i32, %c0_i32_0 : i32, i32
  }
  func.func @transform_8(%arg0: i32) -> (i32, i32) {
    %c0_i32 = arith.constant 0 : i32
    %c0_i32_0 = arith.constant 0 : i32
    %c0_i32_1 = arith.constant 0 : i32
    return %c0_i32, %c0_i32_0 : i32, i32
  }
  func.func @transform_9(%arg0: i32) -> (i32, i32) {
    %c0_i32 = arith.constant 0 : i32
    %c0_i32_0 = arith.constant 0 : i32
    %c0_i32_1 = arith.constant 0 : i32
    return %c0_i32, %c0_i32_0 : i32, i32
  }
  func.func @transform_10(%arg0: i32) -> (i32, i32) {
    %c0_i32 = arith.constant 0 : i32
    %c0_i32_0 = arith.constant 0 : i32
    %c0_i32_1 = arith.constant 0 : i32
    return %c0_i32, %c0_i32_0 : i32, i32
  }
  func.func @transform_11(%arg0: i32) -> (i32, i32) {
    %c0_i32 = arith.constant 0 : i32
    %c0_i32_0 = arith.constant 0 : i32
    %c0_i32_1 = arith.constant 0 : i32
    return %c0_i32, %c0_i32_0 : i32, i32
  }
  func.func @transform_12(%arg0: i32) -> (i32, i32, i32) {
    %c0_i32 = arith.constant 0 : i32
    %c0_i32_0 = arith.constant 0 : i32
    %c0_i32_1 = arith.constant 0 : i32
    return %c0_i32, %arg0, %c0_i32_0 : i32, i32, i32
  }
}

</mosaic_0001>

<llo_original>
// kernel: tpu_custom_call.1
$region0: #{tpu_custom_call.1}
  #allocation0 [shape = 'u32[]', space=smem, size = 0x4, offset = 0x4, fixed_abs, tag = 'smem constant byte address 0x4 - core index']
  #allocation1 [shape = 'u32[144,128]{1,0:T(1,128)}', space=vmem, size = 0x12000, scoped, tag = 'internal scratch']
  %s0 = inlined_call_operand.hbm [shape: bf16[8,8,32], index: 0, kind: input, shape index: {}]
  %s1 = inlined_call_operand.hbm [shape: f32[6,32], index: 1, kind: input, shape index: {}]
  %s2 = inlined_call_operand.hbm [shape: bf16[32,384], index: 2, kind: input, shape index: {}]
  %s3 = inlined_call_operand.hbm [shape: bf16[128,384], index: 3, kind: input, shape index: {}]
  %s4 = inlined_call_operand.vmem [shape: f32[1,384], index: 4, kind: input, shape index: {}]
  %s5 = inlined_call_operand.vmem [shape: f32[1,128], index: 5, kind: input, shape index: {}]
  %s6 = inlined_call_operand.hbm [shape: bf16[32,384], index: 6, kind: input, shape index: {}]
  %s7 = inlined_call_operand.hbm [shape: bf16[128,384], index: 7, kind: input, shape index: {}]
  %s8 = inlined_call_operand.vmem [shape: f32[1,384], index: 8, kind: input, shape index: {}]
  %s9 = inlined_call_operand.vmem [shape: f32[1,128], index: 9, kind: input, shape index: {}]
  %s10 = inlined_call_operand.hbm [shape: bf16[128,128], index: 10, kind: input, shape index: {}]
  %s11 = inlined_call_operand.vmem [shape: f32[1,128], index: 11, kind: input, shape index: {}]
  %s12 = inlined_call_operand.hbm [shape: f32[6,8,128], index: 12, kind: output, shape index: {}]
  %s13 = sld [smem:[#allocation0]]
  $region86: #{tpu_custom_call.1} parent=0
    _
  %s15 = ssub.s32 1, %s13
  %s16 = scalar_select 0, %s15, %s13
  $region1: #{tpu_custom_call.1} parent=0
    #allocation2 [shape = 'u8[16384]{0}', space=vmem, size = 0x4000, scoped, tag = 'input window, operand 0, single buffered']
    #allocation3 [shape = 's32[1]{0}', space=sflag, size = 0x4, scoped, tag = 'scoped memory for tpu_custom_call.1']
    #allocation4 [shape = 's32[1]{0}', space=sflag, size = 0x4, scoped, tag = 'scoped memory for tpu_custom_call.1']
    #allocation5 [shape = 'u8[4096]{0}', space=vmem, size = 0x1000, scoped, tag = 'input window, operand 1, single buffered']
    #allocation6 [shape = 's32[1]{0}', space=sflag, size = 0x4, scoped, tag = 'scoped memory for tpu_custom_call.1']
    #allocation7 [shape = 'u8[24576]{0}', space=vmem, size = 0x6000, scoped, tag = 'input window, operand 2, single buffered']
    #allocation8 [shape = 'u8[98304]{0}', space=vmem, size = 0x18000, scoped, tag = 'input window, operand 3, single buffered']
    #allocation9 [shape = 's32[1]{0}', space=sflag, size = 0x4, scoped, tag = 'scoped memory for tpu_custom_call.1']
    #allocation10 [shape = 'u8[24576]{0}', space=vmem, size = 0x6000, scoped, tag = 'input window, operand 6, single buffered']
    #allocation11 [shape = 'u8[98304]{0}', space=vmem, size = 0x18000, scoped, tag = 'input window, operand 7, single buffered']
    #allocation12 [shape = 's32[1]{0}', space=sflag, size = 0x4, scoped, tag = 'scoped memory for tpu_custom_call.1']
    #allocation13 [shape = 'u8[32768]{0}', space=vmem, size = 0x8000, scoped, tag = 'input window, operand 10, single buffered']
    #allocation14 [shape = 'u8[24576]{0}', space=vmem, size = 0x6000, scoped, tag = 'output window, operand 0, single buffered']
    %17 = vsyncpa [#allocation3], 0
    %18 = vsyncpa [#allocation6], 0
    %19 = vsyncpa [#allocation9], 0
    %20 = vsyncpa [#allocation12], 0
    %21 = vsyncpa [#allocation4], 0
    // Predicated region
    $region2: #{tpu_custom_call.1} parent=1 // pred_check
      _
    $region3: #{tpu_custom_call.1} parent=1 // pred_check_branch
      %23 = sbr.rel (0) target = $region5
    $region4: #{tpu_custom_call.1} parent=1 // pred_region
      %s25 = ssub.s32 512, 512
      %26 = vsyncadd [#allocation3], %s25
      %s27 = sshll.u32 [#allocation2], 4
      %s28 = int_to_ptr.vmem [resolvable:$true] %s27
      %33 = dma.hbm_to_vmem [thread:$0]  %s0, 512, %s28, [#allocation3], 64, 64, 4
    $region5: #{tpu_custom_call.1} parent=1 // pred_fallthru
      _
    // Predicated region
    $region6: #{tpu_custom_call.1} parent=1 // pred_check
      _
    $region7: #{tpu_custom_call.1} parent=1 // pred_check_branch
      %35 = sbr.rel (0) target = $region9
    $region8: #{tpu_custom_call.1} parent=1 // pred_region
      %s37 = ssub.s32 128, 128
      %38 = vsyncadd [#allocation6], %s37
      %s40 = sshll.u32 [#allocation5], 4
      %s41 = int_to_ptr.vmem [resolvable:$true] %s40
      %43 = dma.hbm_to_vmem [thread:$0]  %s1, 128, %s41, [#allocation6]
    $region9: #{tpu_custom_call.1} parent=1 // pred_fallthru
      _
    // Predicated region
    $region10: #{tpu_custom_call.1} parent=1 // pred_check
      _
    $region11: #{tpu_custom_call.1} parent=1 // pred_check_branch
      %45 = sbr.rel (0) target = $region13
    $region12: #{tpu_custom_call.1} parent=1 // pred_region
      %s47 = ssub.s32 768, 768
      %48 = vsyncadd [#allocation6], %s47
      %s49 = sshll.u32 [#allocation7], 4
      %s50 = int_to_ptr.vmem [resolvable:$true] %s49
      %55 = dma.hbm_to_vmem [thread:$0]  %s2, 768, %s50, [#allocation6], 192, 192, 12
    $region13: #{tpu_custom_call.1} parent=1 // pred_fallthru
      _
    // Predicated region
    $region14: #{tpu_custom_call.1} parent=1 // pred_check
      _
    $region15: #{tpu_custom_call.1} parent=1 // pred_check_branch
      %57 = sbr.rel (0) target = $region17
    $region16: #{tpu_custom_call.1} parent=1 // pred_region
      %s59 = ssub.s32 3072, 3072
      %60 = vsyncadd [#allocation9], %s59
      %s61 = sshll.u32 [#allocation8], 4
      %s62 = int_to_ptr.vmem [resolvable:$true] %s61
      %67 = dma.hbm_to_vmem [thread:$0]  %s3, 3072, %s62, [#allocation9], 192, 192, 12
    $region17: #{tpu_custom_call.1} parent=1 // pred_fallthru
      _
    // Predicated region
    $region18: #{tpu_custom_call.1} parent=1 // pred_check
      _
    $region19: #{tpu_custom_call.1} parent=1 // pred_check_branch
      %69 = sbr.rel (0) target = $region21
    $region20: #{tpu_custom_call.1} parent=1 // pred_region
      _
    $region21: #{tpu_custom_call.1} parent=1 // pred_fallthru
      _
    // Predicated region
    $region22: #{tpu_custom_call.1} parent=1 // pred_check
      _
    $region23: #{tpu_custom_call.1} parent=1 // pred_check_branch
      %71 = sbr.rel (0) target = $region25
    $region24: #{tpu_custom_call.1} parent=1 // pred_region
      _
    $region25: #{tpu_custom_call.1} parent=1 // pred_fallthru
      _
    // Predicated region
    $region26: #{tpu_custom_call.1} parent=1 // pred_check
      _
    $region27: #{tpu_custom_call.1} parent=1 // pred_check_branch
      %73 = sbr.rel (0) target = $region29
    $region28: #{tpu_custom_call.1} parent=1 // pred_region
      %s75 = ssub.s32 768, 768
      %76 = vsyncadd [#allocation9], %s75
      %s77 = sshll.u32 [#allocation10], 4
      %s78 = int_to_ptr.vmem [resolvable:$true] %s77
      %83 = dma.hbm_to_vmem [thread:$0]  %s6, 768, %s78, [#allocation9], 192, 192, 12
    $region29: #{tpu_custom_call.1} parent=1 // pred_fallthru
      _
    // Predicated region
    $region30: #{tpu_custom_call.1} parent=1 // pred_check
      _
    $region31: #{tpu_custom_call.1} parent=1 // pred_check_branch
      %85 = sbr.rel (0) target = $region33
    $region32: #{tpu_custom_call.1} parent=1 // pred_region
      %s87 = ssub.s32 3072, 3072
      %88 = vsyncadd [#allocation12], %s87
      %s89 = sshll.u32 [#allocation11], 4
      %s90 = int_to_ptr.vmem [resolvable:$true] %s89
      %95 = dma.hbm_to_vmem [thread:$0]  %s7, 3072, %s90, [#allocation12], 192, 192, 12
    $region33: #{tpu_custom_call.1} parent=1 // pred_fallthru
      _
    // Predicated region
    $region34: #{tpu_custom_call.1} parent=1 // pred_check
      _
    $region35: #{tpu_custom_call.1} parent=1 // pred_check_branch
      %97 = sbr.rel (0) target = $region37
    $region36: #{tpu_custom_call.1} parent=1 // pred_region
      _
    $region37: #{tpu_custom_call.1} parent=1 // pred_fallthru
      _
    // Predicated region
    $region38: #{tpu_custom_call.1} parent=1 // pred_check
      _
    $region39: #{tpu_custom_call.1} parent=1 // pred_check_branch
      %99 = sbr.rel (0) target = $region41
    $region40: #{tpu_custom_call.1} parent=1 // pred_region
      _
    $region41: #{tpu_custom_call.1} parent=1 // pred_fallthru
      _
    // Predicated region
    $region42: #{tpu_custom_call.1} parent=1 // pred_check
      _
    $region43: #{tpu_custom_call.1} parent=1 // pred_check_branch
      %101 = sbr.rel (0) target = $region45
    $region44: #{tpu_custom_call.1} parent=1 // pred_region
      %s103 = ssub.s32 1024, 1024
      %104 = vsyncadd [#allocation12], %s103
      %s105 = sshll.u32 [#allocation13], 4
      %s106 = int_to_ptr.vmem [resolvable:$true] %s105
      %111 = dma.hbm_to_vmem [thread:$0]  %s10, 1024, %s106, [#allocation12], 64, 64, 4
    $region45: #{tpu_custom_call.1} parent=1 // pred_fallthru
      _
    // Predicated region
    $region46: #{tpu_custom_call.1} parent=1 // pred_check
      _
    $region47: #{tpu_custom_call.1} parent=1 // pred_check_branch
      %113 = sbr.rel (0) target = $region49
    $region48: #{tpu_custom_call.1} parent=1 // pred_region
      _
    $region49: #{tpu_custom_call.1} parent=1 // pred_fallthru
      _
    // Predicated region
    $region50: #{tpu_custom_call.1} parent=1 // pred_check
      _
    $region51: #{tpu_custom_call.1} parent=1 // pred_check_branch
      %115 = sbr.rel (0) target = $region53
    $region52: #{tpu_custom_call.1} parent=1 // pred_region
      %116 = dma.done [#allocation3], 512
    $region53: #{tpu_custom_call.1} parent=1 // pred_fallthru
      _
    // Predicated region
    $region54: #{tpu_custom_call.1} parent=1 // pred_check
      _
    $region55: #{tpu_custom_call.1} parent=1 // pred_check_branch
      %118 = sbr.rel (0) target = $region57
    $region56: #{tpu_custom_call.1} parent=1 // pred_region
      %119 = dma.done [#allocation6], 128
    $region57: #{tpu_custom_call.1} parent=1 // pred_fallthru
      _
    // Predicated region
    $region58: #{tpu_custom_call.1} parent=1 // pred_check
      _
    $region59: #{tpu_custom_call.1} parent=1 // pred_check_branch
      %121 = sbr.rel (0) target = $region61
    $region60: #{tpu_custom_call.1} parent=1 // pred_region
      %122 = dma.done [#allocation6], 768
    $region61: #{tpu_custom_call.1} parent=1 // pred_fallthru
      _
    // Predicated region
    $region62: #{tpu_custom_call.1} parent=1 // pred_check
      _
    $region63: #{tpu_custom_call.1} parent=1 // pred_check_branch
      %124 = sbr.rel (0) target = $region65
    $region64: #{tpu_custom_call.1} parent=1 // pred_region
      %125 = dma.done [#allocation9], 3072
    $region65: #{tpu_custom_call.1} parent=1 // pred_fallthru
      _
    // Predicated region
    $region66: #{tpu_custom_call.1} parent=1 // pred_check
      _
    $region67: #{tpu_custom_call.1} parent=1 // pred_check_branch
      %127 = sbr.rel (0) target = $region69
    $region68: #{tpu_custom_call.1} parent=1 // pred_region
      %128 = dma.done [#allocation9], 768
    $region69: #{tpu_custom_call.1} parent=1 // pred_fallthru
      _
    // Predicated region
    $region70: #{tpu_custom_call.1} parent=1 // pred_check
      _
    $region71: #{tpu_custom_call.1} parent=1 // pred_check_branch
      %130 = sbr.rel (0) target = $region73
    $region72: #{tpu_custom_call.1} parent=1 // pred_region
      %131 = dma.done [#allocation12], 3072
    $region73: #{tpu_custom_call.1} parent=1 // pred_fallthru
      _
    // Predicated region
    $region74: #{tpu_custom_call.1} parent=1 // pred_check
      _
    $region75: #{tpu_custom_call.1} parent=1 // pred_check_branch
      %133 = sbr.rel (0) target = $region77
    $region76: #{tpu_custom_call.1} parent=1 // pred_region
      %134 = dma.done [#allocation12], 1024
    $region77: #{tpu_custom_call.1} parent=1 // pred_fallthru
      _
    %v136 = vld [vmem:[%s4] sm:$0x7]
    %v137 = vld [vmem:[%s5] sm:$0x1]
    %v138 = vld [vmem:[%s8] sm:$0x7]
    %v139 = vld [vmem:[%s9] sm:$0x1]
    %v140 = vld [vmem:[#allocation2] sm:$0xf]
    %v141 = vld [vmem:[#allocation2 + $0x4] sm:$0xf]
    %v142 = vld [vmem:[#allocation2 + $0x8] sm:$0xf]
    %v143 = vld [vmem:[#allocation2 + $0xc] sm:$0xf]
    %v144 = vld [vmem:[#allocation2 + $0x10] sm:$0xf]
    %v145 = vld [vmem:[#allocation2 + $0x14] sm:$0xf]
    %v146 = vld [vmem:[#allocation2 + $0x18] sm:$0xf]
    %v147 = vld [vmem:[#allocation2 + $0x1c] sm:$0xf]
    %v148 = vunpack.c.l.bf16 %v140
    %v149 = vunpack.c.l.bf16 %v141
    %v150 = vunpack.c.l.bf16 %v142
    %v151 = vunpack.c.l.bf16 %v143
    %v152 = vunpack.c.l.bf16 %v144
    %v153 = vunpack.c.l.bf16 %v145
    %v154 = vunpack.c.l.bf16 %v146
    %v155 = vunpack.c.l.bf16 %v147
    %v156 = vtanh.pop %v148
    %v157 = vtanh.pop %v149
    %v158 = vtanh.pop %v150
    %v159 = vtanh.pop %v151
    %v160 = vtanh.pop %v152
    %v161 = vtanh.pop %v153
    %v162 = vtanh.pop %v154
    %v163 = vtanh.pop %v155
    %v164 = vpack.c.bf16 %v156, %v156
    %v165 = vpack.c.bf16 %v157, %v157
    %v166 = vpack.c.bf16 %v158, %v158
    %v167 = vpack.c.bf16 %v159, %v159
    %v168 = vpack.c.bf16 %v160, %v160
    %v169 = vpack.c.bf16 %v161, %v161
    %v170 = vpack.c.bf16 %v162, %v162
    %v171 = vpack.c.bf16 %v163, %v163
    %v172 = vld [vmem:[#allocation7] sm:$0xff]
    %v173 = vld [vmem:[#allocation7 + $0x8] sm:$0xf]
    %v174 = vld [vmem:[#allocation7 + $0xc] sm:$0xff]
    %v175 = vld [vmem:[#allocation7 + $0x14] sm:$0xf]
    %v176 = vld [vmem:[#allocation7 + $0x18] sm:$0xff]
    %v177 = vld [vmem:[#allocation7 + $0x20] sm:$0xf]
    %v178 = vld [vmem:[#allocation7 + $0x24] sm:$0xff]
    %v179 = vld [vmem:[#allocation7 + $0x2c] sm:$0xf]
    %v181 = vlaneseq
    %v182 = vshrl.u32 %v181, 7
    %v183 = vsub.s32 0, %v182
    %v184 = vrot.slane %v136, %v183
    %v185 = vlaneseq
    %v186 = vshrl.u32 %v185, 7
    %v187 = vsub.s32 1, %v186
    %v188 = vrot.slane %v136, %v187
    %v189 = vlaneseq
    %v190 = vshrl.u32 %v189, 7
    %v191 = vsub.s32 2, %v190
    %v192 = vrot.slane %v136, %v191
    %v204 = vunpack.c.l.b16 %v164
    %v205 = vunpack.c.l.b16 %v165
    %v206 = vunpack.c.l.b16 %v166
    %v207 = vunpack.c.l.b16 %v167
    %v208 = vunpack.c.l.b16 %v168
    %v209 = vunpack.c.l.b16 %v169
    %v210 = vunpack.c.l.b16 %v170
    %v211 = vunpack.c.l.b16 %v171
    %v212 = vpack.c.b16 %v205, %v204
    %v213 = vpack.c.b16 %v207, %v206
    %v214 = vpack.c.b16 %v209, %v208
    %v215 = vpack.c.b16 %v211, %v210
    %v224 = vunpack.c.l.b16 %v172
    %v225 = vunpack.c.h.b16 %v172
    %v226 = vunpack.c.l.b16 %v173
    %v227 = vunpack.c.l.b16 %v174
    %v228 = vunpack.c.h.b16 %v174
    %v229 = vunpack.c.l.b16 %v175
    %v230 = vunpack.c.l.b16 %v176
    %v231 = vunpack.c.h.b16 %v176
    %v232 = vunpack.c.l.b16 %v177
    %v233 = vunpack.c.l.b16 %v178
    %v234 = vunpack.c.h.b16 %v178
    %v235 = vunpack.c.l.b16 %v179
    %v236 = vpack.c.b16 %v227, %v224
    %v237 = vpack.c.b16 %v228, %v225
    %v238 = vpack.c.b16 %v229, %v226
    %v239 = vpack.c.b16 %v233, %v230
    %v240 = vpack.c.b16 %v234, %v231
    %v241 = vpack.c.b16 %v235, %v232
    %vm248 = vcmask 261120
    %v250 = vsel %vm248, %v212, 0
    %v253 = vsel %vm248, %v213, 0
    %v256 = vsel %vm248, %v214, 0
    %v259 = vsel %vm248, %v215, 0
    %261 = vmatprep.subr.bf16.mxu0 %v237
    %262 = vmatpush1.bf16.msra.mxu0 %v236
    %263 = vmatprep.subr.bf16.mxu0 %v240
    %264 = vmatpush1.bf16.msra.mxu0 %v239
    %265 = vmatprep.subr.bf16.mxu0 0
    %266 = vmatpush1.bf16.msra.mxu0 0
    %267 = vmatprep.subr.bf16.mxu0 0
    %268 = vmatpush1.bf16.msra.mxu0 0
    %269 = vmatprep.subr.bf16.mxu0 0
    %270 = vmatpush1.bf16.msra.mxu0 0
    %271 = vmatprep.subr.bf16.mxu0 0
    %272 = vmatpush1.bf16.msra.mxu0 0
    %273 = vmatprep.subr.bf16.mxu0 0
    %274 = vmatpush1.bf16.msra.mxu0 0
    %275 = vmatprep.subr.bf16.mxu0 0
    %276 = vmatpush1.bf16.msra.mxu0 0
    %277 = vmatprep.subr.bf16.mxu0 0
    %278 = vmatpush1.bf16.msra.mxu0 0
    %279 = vmatprep.subr.bf16.mxu0 0
    %280 = vmatpush1.bf16.msra.mxu0 0
    %281 = vmatprep.subr.bf16.mxu0 0
    %282 = vmatpush1.bf16.msra.mxu0 0
    %283 = vmatprep.subr.bf16.mxu0 0
    %284 = vmatpush1.bf16.msra.mxu0 0
    %285 = vmatprep.subr.bf16.mxu0 0
    %286 = vmatpush1.bf16.msra.mxu0 0
    %287 = vmatprep.subr.bf16.mxu0 0
    %288 = vmatpush1.bf16.msra.mxu0 0
    %289 = vmatprep.subr.bf16.mxu0 0
    %290 = vmatpush1.bf16.msra.mxu0 0
    %291 = vmatprep.subr.bf16.mxu0 0
    %292 = vmatpush1.bf16.msra.mxu0 0
    %293 = vmatprep.mubr.bf16.mxu0 0
    %294 = vmatmul.mubr.bf16.gmra.mrb[0].mxu0 %v250
    %v295 = vpop.f32.mrb[0].mxu0
    %v296 = vadd.f32 %v184, %v295
    %v297 = vpop.f32.mrb[0].mxu0
    %v298 = vadd.f32 %v188, %v297
    %v299 = vpop.f32.mrb[0].mxu0
    %v300 = vadd.f32 %v184, %v299
    %v301 = vpop.f32.mrb[0].mxu0
    %v302 = vadd.f32 %v188, %v301
    %303 = vmatprep.mubr.bf16.mxu0 0
    %304 = vmatmul.mubr.bf16.gmra.mrb[0].mxu0 %v253
    %v305 = vpop.f32.mrb[0].mxu0
    %v306 = vadd.f32 %v184, %v305
    %v307 = vpop.f32.mrb[0].mxu0
    %v308 = vadd.f32 %v188, %v307
    %v309 = vpop.f32.mrb[0].mxu0
    %v310 = vadd.f32 %v184, %v309
    %v311 = vpop.f32.mrb[0].mxu0
    %v312 = vadd.f32 %v188, %v311
    %313 = vmatprep.mubr.bf16.mxu0 0
    %314 = vmatmul.mubr.bf16.gmra.mrb[0].mxu0 %v256
    %v315 = vpop.f32.mrb[0].mxu0
    %v316 = vadd.f32 %v184, %v315
    %v317 = vpop.f32.mrb[0].mxu0
    %v318 = vadd.f32 %v188, %v317
    %v319 = vpop.f32.mrb[0].mxu0
    %v320 = vadd.f32 %v184, %v319
    %v321 = vpop.f32.mrb[0].mxu0
    %v322 = vadd.f32 %v188, %v321
    %323 = vmatprep.mubr.bf16.mxu0 0
    %324 = vmatmul.mubr.bf16.gmra.mrb[0].mxu0 %v259
    %v325 = vpop.f32.mrb[0].mxu0
    %v326 = vadd.f32 %v184, %v325
    %v327 = vpop.f32.mrb[0].mxu0
    %v328 = vadd.f32 %v188, %v327
    %v329 = vpop.f32.mrb[0].mxu0
    %v330 = vadd.f32 %v184, %v329
    %v331 = vpop.f32.mrb[0].mxu0
    %v332 = vadd.f32 %v188, %v331
    %333 = vdwg.mxu0
    %334 = vmatprep.subr.bf16.mxu0 0
    %335 = vmatpush1.bf16.msra.mxu0 %v238
    %336 = vmatprep.subr.bf16.mxu0 0
    %337 = vmatpush1.bf16.msra.mxu0 %v241
    %338 = vmatprep.subr.bf16.mxu0 0
    %339 = vmatpush1.bf16.msra.mxu0 0
    %340 = vmatprep.subr.bf16.mxu0 0
    %341 = vmatpush1.bf16.msra.mxu0 0
    %342 = vmatprep.subr.bf16.mxu0 0
    %343 = vmatpush1.bf16.msra.mxu0 0
    %344 = vmatprep.subr.bf16.mxu0 0
    %345 = vmatpush1.bf16.msra.mxu0 0
    %346 = vmatprep.subr.bf16.mxu0 0
    %347 = vmatpush1.bf16.msra.mxu0 0
    %348 = vmatprep.subr.bf16.mxu0 0
    %349 = vmatpush1.bf16.msra.mxu0 0
    %350 = vmatprep.subr.bf16.mxu0 0
    %351 = vmatpush1.bf16.msra.mxu0 0
    %352 = vmatprep.subr.bf16.mxu0 0
    %353 = vmatpush1.bf16.msra.mxu0 0
    %354 = vmatprep.subr.bf16.mxu0 0
    %355 = vmatpush1.bf16.msra.mxu0 0
    %356 = vmatprep.subr.bf16.mxu0 0
    %357 = vmatpush1.bf16.msra.mxu0 0
    %358 = vmatprep.subr.bf16.mxu0 0
    %359 = vmatpush1.bf16.msra.mxu0 0
    %360 = vmatprep.subr.bf16.mxu0 0
    %361 = vmatpush1.bf16.msra.mxu0 0
    %362 = vmatprep.subr.bf16.mxu0 0
    %363 = vmatpush1.bf16.msra.mxu0 0
    %364 = vmatprep.subr.bf16.mxu0 0
    %365 = vmatpush1.bf16.msra.mxu0 0
    %366 = vmatprep.mubr.bf16.mxu0 0
    %367 = vmatmul.mubr.bf16.gmra.mrb[0].mxu0 %v250
    %v368 = vpop.f32.mrb[0].mxu0
    %v369 = vadd.f32 %v192, %v368
    %v370 = vpop.f32.mrb[0].mxu0
    %v371 = vpop.f32.mrb[0].mxu0
    %v372 = vadd.f32 %v192, %v371
    %v373 = vpop.f32.mrb[0].mxu0
    %374 = vmatprep.mubr.bf16.mxu0 0
    %375 = vmatmul.mubr.bf16.gmra.mrb[0].mxu0 %v253
    %v376 = vpop.f32.mrb[0].mxu0
    %v377 = vadd.f32 %v192, %v376
    %v378 = vpop.f32.mrb[0].mxu0
    %v379 = vpop.f32.mrb[0].mxu0
    %v380 = vadd.f32 %v192, %v379
    %v381 = vpop.f32.mrb[0].mxu0
    %382 = vmatprep.mubr.bf16.mxu0 0
    %383 = vmatmul.mubr.bf16.gmra.mrb[0].mxu0 %v256
    %v384 = vpop.f32.mrb[0].mxu0
    %v385 = vadd.f32 %v192, %v384
    %v386 = vpop.f32.mrb[0].mxu0
    %v387 = vpop.f32.mrb[0].mxu0
    %v388 = vadd.f32 %v192, %v387
    %v389 = vpop.f32.mrb[0].mxu0
    %390 = vmatprep.mubr.bf16.mxu0 0
    %391 = vmatmul.mubr.bf16.gmra.mrb[0].mxu0 %v259
    %v392 = vpop.f32.mrb[0].mxu0
    %v393 = vadd.f32 %v192, %v392
    %v394 = vpop.f32.mrb[0].mxu0
    %v395 = vpop.f32.mrb[0].mxu0
    %v396 = vadd.f32 %v192, %v395
    %v397 = vpop.f32.mrb[0].mxu0
    %398 = vdwg.mxu0
    %v399 = vld [vmem:[#allocation8] sm:$0xff]
    %v400 = vld [vmem:[#allocation8 + $0x8] sm:$0xf]
    %v401 = vld [vmem:[#allocation8 + $0xc] sm:$0xff]
    %v402 = vld [vmem:[#allocation8 + $0x14] sm:$0xf]
    %v403 = vld [vmem:[#allocation8 + $0x18] sm:$0xff]
    %v404 = vld [vmem:[#allocation8 + $0x20] sm:$0xf]
    %v405 = vld [vmem:[#allocation8 + $0x24] sm:$0xff]
    %v406 = vld [vmem:[#allocation8 + $0x2c] sm:$0xf]
    %v407 = vld [vmem:[#allocation8 + $0x30] sm:$0xff]
    %v408 = vld [vmem:[#allocation8 + $0x38] sm:$0xf]
    %v409 = vld [vmem:[#allocation8 + $0x3c] sm:$0xff]
    %v410 = vld [vmem:[#allocation8 + $0x44] sm:$0xf]
    %v411 = vld [vmem:[#allocation8 + $0x48] sm:$0xff]
    %v412 = vld [vmem:[#allocation8 + $0x50] sm:$0xf]
    %v413 = vld [vmem:[#allocation8 + $0x54] sm:$0xff]
    %v414 = vld [vmem:[#allocation8 + $0x5c] sm:$0xf]
    %v415 = vld [vmem:[#allocation8 + $0x60] sm:$0xff]
    %v416 = vld [vmem:[#allocation8 + $0x68] sm:$0xf]
    %v417 = vld [vmem:[#allocation8 + $0x6c] sm:$0xff]
    %v418 = vld [vmem:[#allocation8 + $0x74] sm:$0xf]
    %v419 = vld [vmem:[#allocation8 + $0x78] sm:$0xff]
    %v420 = vld [vmem:[#allocation8 + $0x80] sm:$0xf]
    %v421 = vld [vmem:[#allocation8 + $0x84] sm:$0xff]
    %v422 = vld [vmem:[#allocation8 + $0x8c] sm:$0xf]
    %v423 = vld [vmem:[#allocation8 + $0x90] sm:$0xff]
    %v424 = vld [vmem:[#allocation8 + $0x98] sm:$0xf]
    %v425 = vld [vmem:[#allocation8 + $0x9c] sm:$0xff]
    %v426 = vld [vmem:[#allocation8 + $0xa4] sm:$0xf]
    %v427 = vld [vmem:[#allocation8 + $0xa8] sm:$0xff]
    %v428 = vld [vmem:[#allocation8 + $0xb0] sm:$0xf]
    %v429 = vld [vmem:[#allocation8 + $0xb4] sm:$0xff]
    %v430 = vld [vmem:[#allocation8 + $0xbc] sm:$0xf]
    %v463 = vunpack.c.l.b16 %v399
    %v464 = vunpack.c.h.b16 %v399
    %v465 = vunpack.c.l.b16 %v400
    %v466 = vunpack.c.l.b16 %v401
    %v467 = vunpack.c.h.b16 %v401
    %v468 = vunpack.c.l.b16 %v402
    %v469 = vunpack.c.l.b16 %v403
    %v470 = vunpack.c.h.b16 %v403
    %v471 = vunpack.c.l.b16 %v404
    %v472 = vunpack.c.l.b16 %v405
    %v473 = vunpack.c.h.b16 %v405
    %v474 = vunpack.c.l.b16 %v406
    %v475 = vunpack.c.l.b16 %v407
    %v476 = vunpack.c.h.b16 %v407
    %v477 = vunpack.c.l.b16 %v408
    %v478 = vunpack.c.l.b16 %v409
    %v479 = vunpack.c.h.b16 %v409
    %v480 = vunpack.c.l.b16 %v410
    %v481 = vunpack.c.l.b16 %v411
    %v482 = vunpack.c.h.b16 %v411
    %v483 = vunpack.c.l.b16 %v412
    %v484 = vunpack.c.l.b16 %v413
    %v485 = vunpack.c.h.b16 %v413
    %v486 = vunpack.c.l.b16 %v414
    %v487 = vunpack.c.l.b16 %v415
    %v488 = vunpack.c.h.b16 %v415
    %v489 = vunpack.c.l.b16 %v416
    %v490 = vunpack.c.l.b16 %v417
    %v491 = vunpack.c.h.b16 %v417
    %v492 = vunpack.c.l.b16 %v418
    %v493 = vunpack.c.l.b16 %v419
    %v494 = vunpack.c.h.b16 %v419
    %v495 = vunpack.c.l.b16 %v420
    %v496 = vunpack.c.l.b16 %v421
    %v497 = vunpack.c.h.b16 %v421
    %v498 = vunpack.c.l.b16 %v422
    %v499 = vunpack.c.l.b16 %v423
    %v500 = vunpack.c.h.b16 %v423
    %v501 = vunpack.c.l.b16 %v424
    %v502 = vunpack.c.l.b16 %v425
    %v503 = vunpack.c.h.b16 %v425
    %v504 = vunpack.c.l.b16 %v426
    %v505 = vunpack.c.l.b16 %v427
    %v506 = vunpack.c.h.b16 %v427
    %v507 = vunpack.c.l.b16 %v428
    %v508 = vunpack.c.l.b16 %v429
    %v509 = vunpack.c.h.b16 %v429
    %v510 = vunpack.c.l.b16 %v430
    %v511 = vpack.c.b16 %v466, %v463
    %v512 = vpack.c.b16 %v467, %v464
    %v513 = vpack.c.b16 %v468, %v465
    %v514 = vpack.c.b16 %v472, %v469
    %v515 = vpack.c.b16 %v473, %v470
    %v516 = vpack.c.b16 %v474, %v471
    %v517 = vpack.c.b16 %v478, %v475
    %v518 = vpack.c.b16 %v479, %v476
    %v519 = vpack.c.b16 %v480, %v477
    %v520 = vpack.c.b16 %v484, %v481
    %v521 = vpack.c.b16 %v485, %v482
    %v522 = vpack.c.b16 %v486, %v483
    %v523 = vpack.c.b16 %v490, %v487
    %v524 = vpack.c.b16 %v491, %v488
    %v525 = vpack.c.b16 %v492, %v489
    %v526 = vpack.c.b16 %v496, %v493
    %v527 = vpack.c.b16 %v497, %v494
    %v528 = vpack.c.b16 %v498, %v495
    %v529 = vpack.c.b16 %v502, %v499
    %v530 = vpack.c.b16 %v503, %v500
    %v531 = vpack.c.b16 %v504, %v501
    %v532 = vpack.c.b16 %v508, %v505
    %v533 = vpack.c.b16 %v509, %v506
    %v534 = vpack.c.b16 %v510, %v507
    %559 = vmatprep.subr.bf16.mxu0 %v512
    %560 = vmatpush1.bf16.msra.mxu0 %v511
    %561 = vmatprep.subr.bf16.mxu0 %v515
    %562 = vmatpush1.bf16.msra.mxu0 %v514
    %563 = vmatprep.subr.bf16.mxu0 %v518
    %564 = vmatpush1.bf16.msra.mxu0 %v517
    %565 = vmatprep.subr.bf16.mxu0 %v521
    %566 = vmatpush1.bf16.msra.mxu0 %v520
    %567 = vmatprep.subr.bf16.mxu0 %v524
    %568 = vmatpush1.bf16.msra.mxu0 %v523
    %569 = vmatprep.subr.bf16.mxu0 %v527
    %570 = vmatpush1.bf16.msra.mxu0 %v526
    %571 = vmatprep.subr.bf16.mxu0 %v530
    %572 = vmatpush1.bf16.msra.mxu0 %v529
    %573 = vmatprep.subr.bf16.mxu0 %v533
    %574 = vmatpush1.bf16.msra.mxu0 %v532
    %575 = vmatprep.subr.bf16.mxu0 0
    %576 = vmatpush1.bf16.msra.mxu0 0
    %577 = vmatprep.subr.bf16.mxu0 0
    %578 = vmatpush1.bf16.msra.mxu0 0
    %579 = vmatprep.subr.bf16.mxu0 0
    %580 = vmatpush1.bf16.msra.mxu0 0
    %581 = vmatprep.subr.bf16.mxu0 0
    %582 = vmatpush1.bf16.msra.mxu0 0
    %583 = vmatprep.subr.bf16.mxu0 0
    %584 = vmatpush1.bf16.msra.mxu0 0
    %585 = vmatprep.subr.bf16.mxu0 0
    %586 = vmatpush1.bf16.msra.mxu0 0
    %587 = vmatprep.subr.bf16.mxu0 0
    %588 = vmatpush1.bf16.msra.mxu0 0
    %589 = vmatprep.subr.bf16.mxu0 0
    %590 = vmatpush1.bf16.msra.mxu0 0
    %591 = vmatprep.mubr.bf16.mxu0 0
    %592 = vmatmul.mubr.bf16.gmra.mrb[0].mxu0 0
    %v593 = vpop.f32.mrb[0].mxu0
    %v594 = vadd.f32 0.0, %v593
    %v595 = vpop.f32.mrb[0].mxu0
    %v596 = vadd.f32 0.0, %v595
    %v597 = vpop.f32.mrb[0].mxu0
    %v598 = vpop.f32.mrb[0].mxu0
    %599 = vdwg.mxu0
    %600 = vmatprep.subr.bf16.mxu0 0
    %601 = vmatpush1.bf16.msra.mxu0 %v513
    %602 = vmatprep.subr.bf16.mxu0 0
    %603 = vmatpush1.bf16.msra.mxu0 %v516
    %604 = vmatprep.subr.bf16.mxu0 0
    %605 = vmatpush1.bf16.msra.mxu0 %v519
    %606 = vmatprep.subr.bf16.mxu0 0
    %607 = vmatpush1.bf16.msra.mxu0 %v522
    %608 = vmatprep.subr.bf16.mxu0 0
    %609 = vmatpush1.bf16.msra.mxu0 %v525
    %610 = vmatprep.subr.bf16.mxu0 0
    %611 = vmatpush1.bf16.msra.mxu0 %v528
    %612 = vmatprep.subr.bf16.mxu0 0
    %613 = vmatpush1.bf16.msra.mxu0 %v531
    %614 = vmatprep.subr.bf16.mxu0 0
    %615 = vmatpush1.bf16.msra.mxu0 %v534
    %616 = vmatprep.subr.bf16.mxu0 0
    %617 = vmatpush1.bf16.msra.mxu0 0
    %618 = vmatprep.subr.bf16.mxu0 0
    %619 = vmatpush1.bf16.msra.mxu0 0
    %620 = vmatprep.subr.bf16.mxu0 0
    %621 = vmatpush1.bf16.msra.mxu0 0
    %622 = vmatprep.subr.bf16.mxu0 0
    %623 = vmatpush1.bf16.msra.mxu0 0
    %624 = vmatprep.subr.bf16.mxu0 0
    %625 = vmatpush1.bf16.msra.mxu0 0
    %626 = vmatprep.subr.bf16.mxu0 0
    %627 = vmatpush1.bf16.msra.mxu0 0
    %628 = vmatprep.subr.bf16.mxu0 0
    %629 = vmatpush1.bf16.msra.mxu0 0
    %630 = vmatprep.subr.bf16.mxu0 0
    %631 = vmatpush1.bf16.msra.mxu0 0
    %632 = vmatprep.mubr.bf16.mxu0 0
    %633 = vmatmul.mubr.bf16.gmra.mrb[0].mxu0 0
    %v634 = vpop.f32.mrb[0].mxu0
    %v635 = vadd.f32 0.0, %v634
    %v636 = vpop.f32.mrb[0].mxu0
    %v637 = vpop.f32.mrb[0].mxu0
    %v638 = vpop.f32.mrb[0].mxu0
    %639 = vdwg.mxu0
    %v640 = vadd.f32 %v296, %v594
    %v641 = vxor.u32 %v640, 2147483648
    %v642 = vmul.f32 %v641, 1.442695
    %v643 = vpow.pop %v642
    %v644 = vadd.f32 %v643, 1.0
    %v645 = vrcp.pop %v644
    %v646 = vmul.f32 1.0, %v645
    %v647 = vadd.f32 %v298, %v596
    %v648 = vxor.u32 %v647, 2147483648
    %v649 = vmul.f32 %v648, 1.442695
    %v650 = vpow.pop %v649
    %v651 = vadd.f32 %v650, 1.0
    %v652 = vrcp.pop %v651
    %v653 = vmul.f32 1.0, %v652
    %v655 = vlaneseq
    %v656 = vshrl.u32 %v655, 7
    %v657 = vsub.s32 0, %v656
    %v658 = vrot.slane %v137, %v657
    %v660 = vadd.f32 %v635, %v658
    %v661 = vmul.f32 %v646, %v660
    %v662 = vadd.f32 %v369, %v661
    %v663 = vtanh.pop %v662
    %v664 = vsub.f32 1.0, %v653
    %v665 = vmul.f32 %v664, %v663
    %v666 = vmul.f32 %v653, 0.0
    %v667 = vadd.f32 %v665, %v666
    %v668 = vpack.c.bf16 %v667, %v667
    %669 = vmatprep.subr.bf16.mxu0 %v512
    %670 = vmatpush1.bf16.msra.mxu0 %v511
    %671 = vmatprep.subr.bf16.mxu0 %v515
    %672 = vmatpush1.bf16.msra.mxu0 %v514
    %673 = vmatprep.subr.bf16.mxu0 %v518
    %674 = vmatpush1.bf16.msra.mxu0 %v517
    %675 = vmatprep.subr.bf16.mxu0 %v521
    %676 = vmatpush1.bf16.msra.mxu0 %v520
    %677 = vmatprep.subr.bf16.mxu0 %v524
    %678 = vmatpush1.bf16.msra.mxu0 %v523
    %679 = vmatprep.subr.bf16.mxu0 %v527
    %680 = vmatpush1.bf16.msra.mxu0 %v526
    %681 = vmatprep.subr.bf16.mxu0 %v530
    %682 = vmatpush1.bf16.msra.mxu0 %v529
    %683 = vmatprep.subr.bf16.mxu0 %v533
    %684 = vmatpush1.bf16.msra.mxu0 %v532
    %685 = vmatprep.subr.bf16.mxu0 0
    %686 = vmatpush1.bf16.msra.mxu0 0
    %687 = vmatprep.subr.bf16.mxu0 0
    %688 = vmatpush1.bf16.msra.mxu0 0
    %689 = vmatprep.subr.bf16.mxu0 0
    %690 = vmatpush1.bf16.msra.mxu0 0
    %691 = vmatprep.subr.bf16.mxu0 0
    %692 = vmatpush1.bf16.msra.mxu0 0
    %693 = vmatprep.subr.bf16.mxu0 0
    %694 = vmatpush1.bf16.msra.mxu0 0
    %695 = vmatprep.subr.bf16.mxu0 0
    %696 = vmatpush1.bf16.msra.mxu0 0
    %697 = vmatprep.subr.bf16.mxu0 0
    %698 = vmatpush1.bf16.msra.mxu0 0
    %699 = vmatprep.subr.bf16.mxu0 0
    %700 = vmatpush1.bf16.msra.mxu0 0
    %701 = vmatprep.mubr.bf16.mxu0 0
    %702 = vmatmul.mubr.bf16.gmra.mrb[0].mxu0 %v668
    %v703 = vpop.f32.mrb[0].mxu0
    %v704 = vadd.f32 0.0, %v703
    %v705 = vpop.f32.mrb[0].mxu0
    %v706 = vadd.f32 0.0, %v705
    %v707 = vpop.f32.mrb[0].mxu0
    %v708 = vpop.f32.mrb[0].mxu0
    %709 = vdwg.mxu0
    %710 = vmatprep.subr.bf16.mxu0 0
    %711 = vmatpush1.bf16.msra.mxu0 %v513
    %712 = vmatprep.subr.bf16.mxu0 0
    %713 = vmatpush1.bf16.msra.mxu0 %v516
    %714 = vmatprep.subr.bf16.mxu0 0
    %715 = vmatpush1.bf16.msra.mxu0 %v519
    %716 = vmatprep.subr.bf16.mxu0 0
    %717 = vmatpush1.bf16.msra.mxu0 %v522
    %718 = vmatprep.subr.bf16.mxu0 0
    %719 = vmatpush1.bf16.msra.mxu0 %v525
    %720 = vmatprep.subr.bf16.mxu0 0
    %721 = vmatpush1.bf16.msra.mxu0 %v528
    %722 = vmatprep.subr.bf16.mxu0 0
    %723 = vmatpush1.bf16.msra.mxu0 %v531
    %724 = vmatprep.subr.bf16.mxu0 0
    %725 = vmatpush1.bf16.msra.mxu0 %v534
    %726 = vmatprep.subr.bf16.mxu0 0
    %727 = vmatpush1.bf16.msra.mxu0 0
    %728 = vmatprep.subr.bf16.mxu0 0
    %729 = vmatpush1.bf16.msra.mxu0 0
    %730 = vmatprep.subr.bf16.mxu0 0
    %731 = vmatpush1.bf16.msra.mxu0 0
    %732 = vmatprep.subr.bf16.mxu0 0
    %733 = vmatpush1.bf16.msra.mxu0 0
    %734 = vmatprep.subr.bf16.mxu0 0
    %735 = vmatpush1.bf16.msra.mxu0 0
    %736 = vmatprep.subr.bf16.mxu0 0
    %737 = vmatpush1.bf16.msra.mxu0 0
    %738 = vmatprep.subr.bf16.mxu0 0
    %739 = vmatpush1.bf16.msra.mxu0 0
    %740 = vmatprep.subr.bf16.mxu0 0
    %741 = vmatpush1.bf16.msra.mxu0 0
    %742 = vmatprep.mubr.bf16.mxu0 0
    %743 = vmatmul.mubr.bf16.gmra.mrb[0].mxu0 %v668
    %v744 = vpop.f32.mrb[0].mxu0
    %v745 = vadd.f32 0.0, %v744
    %v746 = vpop.f32.mrb[0].mxu0
    %v747 = vpop.f32.mrb[0].mxu0
    %v748 = vpop.f32.mrb[0].mxu0
    %749 = vdwg.mxu0
    %v750 = vadd.f32 %v300, %v704
    %v751 = vxor.u32 %v750, 2147483648
    %v752 = vmul.f32 %v751, 1.442695
    %v753 = vpow.pop %v752
    %v754 = vadd.f32 %v753, 1.0
    %v755 = vrcp.pop %v754
    %v756 = vmul.f32 1.0, %v755
    %v757 = vadd.f32 %v302, %v706
    %v758 = vxor.u32 %v757, 2147483648
    %v759 = vmul.f32 %v758, 1.442695
    %v760 = vpow.pop %v759
    %v761 = vadd.f32 %v760, 1.0
    %v762 = vrcp.pop %v761
    %v763 = vmul.f32 1.0, %v762
    %v764 = vadd.f32 %v745, %v658
    %v765 = vmul.f32 %v756, %v764
    %v766 = vadd.f32 %v372, %v765
    %v767 = vtanh.pop %v766
    %v768 = vsub.f32 1.0, %v763
    %v769 = vmul.f32 %v768, %v767
    %v770 = vmul.f32 %v763, %v667
    %v771 = vadd.f32 %v769, %v770
    %v772 = vpack.c.bf16 %v771, %v771
    %773 = vmatprep.subr.bf16.mxu0 %v512
    %774 = vmatpush1.bf16.msra.mxu0 %v511
    %775 = vmatprep.subr.bf16.mxu0 %v515
    %776 = vmatpush1.bf16.msra.mxu0 %v514
    %777 = vmatprep.subr.bf16.mxu0 %v518
    %778 = vmatpush1.bf16.msra.mxu0 %v517
    %779 = vmatprep.subr.bf16.mxu0 %v521
    %780 = vmatpush1.bf16.msra.mxu0 %v520
    %781 = vmatprep.subr.bf16.mxu0 %v524
    %782 = vmatpush1.bf16.msra.mxu0 %v523
    %783 = vmatprep.subr.bf16.mxu0 %v527
    %784 = vmatpush1.bf16.msra.mxu0 %v526
    %785 = vmatprep.subr.bf16.mxu0 %v530
    %786 = vmatpush1.bf16.msra.mxu0 %v529
    %787 = vmatprep.subr.bf16.mxu0 %v533
    %788 = vmatpush1.bf16.msra.mxu0 %v532
    %789 = vmatprep.subr.bf16.mxu0 0
    %790 = vmatpush1.bf16.msra.mxu0 0
    %791 = vmatprep.subr.bf16.mxu0 0
    %792 = vmatpush1.bf16.msra.mxu0 0
    %793 = vmatprep.subr.bf16.mxu0 0
    %794 = vmatpush1.bf16.msra.mxu0 0
    %795 = vmatprep.subr.bf16.mxu0 0
    %796 = vmatpush1.bf16.msra.mxu0 0
    %797 = vmatprep.subr.bf16.mxu0 0
    %798 = vmatpush1.bf16.msra.mxu0 0
    %799 = vmatprep.subr.bf16.mxu0 0
    %800 = vmatpush1.bf16.msra.mxu0 0
    %801 = vmatprep.subr.bf16.mxu0 0
    %802 = vmatpush1.bf16.msra.mxu0 0
    %803 = vmatprep.subr.bf16.mxu0 0
    %804 = vmatpush1.bf16.msra.mxu0 0
    %805 = vmatprep.mubr.bf16.mxu0 0
    %806 = vmatmul.mubr.bf16.gmra.mrb[0].mxu0 %v772
    %v807 = vpop.f32.mrb[0].mxu0
    %v808 = vadd.f32 0.0, %v807
    %v809 = vpop.f32.mrb[0].mxu0
    %v810 = vadd.f32 0.0, %v809
    %v811 = vpop.f32.mrb[0].mxu0
    %v812 = vpop.f32.mrb[0].mxu0
    %813 = vdwg.mxu0
    %814 = vmatprep.subr.bf16.mxu0 0
    %815 = vmatpush1.bf16.msra.mxu0 %v513
    %816 = vmatprep.subr.bf16.mxu0 0
    %817 = vmatpush1.bf16.msra.mxu0 %v516
    %818 = vmatprep.subr.bf16.mxu0 0
    %819 = vmatpush1.bf16.msra.mxu0 %v519
    %820 = vmatprep.subr.bf16.mxu0 0
    %821 = vmatpush1.bf16.msra.mxu0 %v522
    %822 = vmatprep.subr.bf16.mxu0 0
    %823 = vmatpush1.bf16.msra.mxu0 %v525
    %824 = vmatprep.subr.bf16.mxu0 0
    %825 = vmatpush1.bf16.msra.mxu0 %v528
    %826 = vmatprep.subr.bf16.mxu0 0
    %827 = vmatpush1.bf16.msra.mxu0 %v531
    %828 = vmatprep.subr.bf16.mxu0 0
    %829 = vmatpush1.bf16.msra.mxu0 %v534
    %830 = vmatprep.subr.bf16.mxu0 0
    %831 = vmatpush1.bf16.msra.mxu0 0
    %832 = vmatprep.subr.bf16.mxu0 0
    %833 = vmatpush1.bf16.msra.mxu0 0
    %834 = vmatprep.subr.bf16.mxu0 0
    %835 = vmatpush1.bf16.msra.mxu0 0
    %836 = vmatprep.subr.bf16.mxu0 0
    %837 = vmatpush1.bf16.msra.mxu0 0
    %838 = vmatprep.subr.bf16.mxu0 0
    %839 = vmatpush1.bf16.msra.mxu0 0
    %840 = vmatprep.subr.bf16.mxu0 0
    %841 = vmatpush1.bf16.msra.mxu0 0
    %842 = vmatprep.subr.bf16.mxu0 0
    %843 = vmatpush1.bf16.msra.mxu0 0
    %844 = vmatprep.subr.bf16.mxu0 0
    %845 = vmatpush1.bf16.msra.mxu0 0
    %846 = vmatprep.mubr.bf16.mxu0 0
    %847 = vmatmul.mubr.bf16.gmra.mrb[0].mxu0 %v772
    %v848 = vpop.f32.mrb[0].mxu0
    %v849 = vadd.f32 0.0, %v848
    %v850 = vpop.f32.mrb[0].mxu0
    %v851 = vpop.f32.mrb[0].mxu0
    %v852 = vpop.f32.mrb[0].mxu0
    %853 = vdwg.mxu0
    %v854 = vadd.f32 %v306, %v808
    %v855 = vxor.u32 %v854, 2147483648
    %v856 = vmul.f32 %v855, 1.442695
    %v857 = vpow.pop %v856
    %v858 = vadd.f32 %v857, 1.0
    %v859 = vrcp.pop %v858
    %v860 = vmul.f32 1.0, %v859
    %v861 = vadd.f32 %v308, %v810
    %v862 = vxor.u32 %v861, 2147483648
    %v863 = vmul.f32 %v862, 1.442695
    %v864 = vpow.pop %v863
    %v865 = vadd.f32 %v864, 1.0
    %v866 = vrcp.pop %v865
    %v867 = vmul.f32 1.0, %v866
    %v868 = vadd.f32 %v849, %v658
    %v869 = vmul.f32 %v860, %v868
    %v870 = vadd.f32 %v377, %v869
    %v871 = vtanh.pop %v870
    %v872 = vsub.f32 1.0, %v867
    %v873 = vmul.f32 %v872, %v871
    %v874 = vmul.f32 %v867, %v771
    %v875 = vadd.f32 %v873, %v874
    %v876 = vpack.c.bf16 %v875, %v875
    %877 = vmatprep.subr.bf16.mxu0 %v512
    %878 = vmatpush1.bf16.msra.mxu0 %v511
    %879 = vmatprep.subr.bf16.mxu0 %v515
    %880 = vmatpush1.bf16.msra.mxu0 %v514
    %881 = vmatprep.subr.bf16.mxu0 %v518
    %882 = vmatpush1.bf16.msra.mxu0 %v517
    %883 = vmatprep.subr.bf16.mxu0 %v521
    %884 = vmatpush1.bf16.msra.mxu0 %v520
    %885 = vmatprep.subr.bf16.mxu0 %v524
    %886 = vmatpush1.bf16.msra.mxu0 %v523
    %887 = vmatprep.subr.bf16.mxu0 %v527
    %888 = vmatpush1.bf16.msra.mxu0 %v526
    %889 = vmatprep.subr.bf16.mxu0 %v530
    %890 = vmatpush1.bf16.msra.mxu0 %v529
    %891 = vmatprep.subr.bf16.mxu0 %v533
    %892 = vmatpush1.bf16.msra.mxu0 %v532
    %893 = vmatprep.subr.bf16.mxu0 0
    %894 = vmatpush1.bf16.msra.mxu0 0
    %895 = vmatprep.subr.bf16.mxu0 0
    %896 = vmatpush1.bf16.msra.mxu0 0
    %897 = vmatprep.subr.bf16.mxu0 0
    %898 = vmatpush1.bf16.msra.mxu0 0
    %899 = vmatprep.subr.bf16.mxu0 0
    %900 = vmatpush1.bf16.msra.mxu0 0
    %901 = vmatprep.subr.bf16.mxu0 0
    %902 = vmatpush1.bf16.msra.mxu0 0
    %903 = vmatprep.subr.bf16.mxu0 0
    %904 = vmatpush1.bf16.msra.mxu0 0
    %905 = vmatprep.subr.bf16.mxu0 0
    %906 = vmatpush1.bf16.msra.mxu0 0
    %907 = vmatprep.subr.bf16.mxu0 0
    %908 = vmatpush1.bf16.msra.mxu0 0
    %909 = vmatprep.mubr.bf16.mxu0 0
    %910 = vmatmul.mubr.bf16.gmra.mrb[0].mxu0 %v876
    %v911 = vpop.f32.mrb[0].mxu0
    %v912 = vadd.f32 0.0, %v911
    %v913 = vpop.f32.mrb[0].mxu0
    %v914 = vadd.f32 0.0, %v913
    %v915 = vpop.f32.mrb[0].mxu0
    %v916 = vpop.f32.mrb[0].mxu0
    %917 = vdwg.mxu0
    %918 = vmatprep.subr.bf16.mxu0 0
    %919 = vmatpush1.bf16.msra.mxu0 %v513
    %920 = vmatprep.subr.bf16.mxu0 0
    %921 = vmatpush1.bf16.msra.mxu0 %v516
    %922 = vmatprep.subr.bf16.mxu0 0
    %923 = vmatpush1.bf16.msra.mxu0 %v519
    %924 = vmatprep.subr.bf16.mxu0 0
    %925 = vmatpush1.bf16.msra.mxu0 %v522
    %926 = vmatprep.subr.bf16.mxu0 0
    %927 = vmatpush1.bf16.msra.mxu0 %v525
    %928 = vmatprep.subr.bf16.mxu0 0
    %929 = vmatpush1.bf16.msra.mxu0 %v528
    %930 = vmatprep.subr.bf16.mxu0 0
    %931 = vmatpush1.bf16.msra.mxu0 %v531
    %932 = vmatprep.subr.bf16.mxu0 0
    %933 = vmatpush1.bf16.msra.mxu0 %v534
    %934 = vmatprep.subr.bf16.mxu0 0
    %935 = vmatpush1.bf16.msra.mxu0 0
    %936 = vmatprep.subr.bf16.mxu0 0
    %937 = vmatpush1.bf16.msra.mxu0 0
    %938 = vmatprep.subr.bf16.mxu0 0
    %939 = vmatpush1.bf16.msra.mxu0 0
    %940 = vmatprep.subr.bf16.mxu0 0
    %941 = vmatpush1.bf16.msra.mxu0 0
    %942 = vmatprep.subr.bf16.mxu0 0
    %943 = vmatpush1.bf16.msra.mxu0 0
    %944 = vmatprep.subr.bf16.mxu0 0
    %945 = vmatpush1.bf16.msra.mxu0 0
    %946 = vmatprep.subr.bf16.mxu0 0
    %947 = vmatpush1.bf16.msra.mxu0 0
    %948 = vmatprep.subr.bf16.mxu0 0
    %949 = vmatpush1.bf16.msra.mxu0 0
    %950 = vmatprep.mubr.bf16.mxu0 0
    %951 = vmatmul.mubr.bf16.gmra.mrb[0].mxu0 %v876
    %v952 = vpop.f32.mrb[0].mxu0
    %v953 = vadd.f32 0.0, %v952
    %v954 = vpop.f32.mrb[0].mxu0
    %v955 = vpop.f32.mrb[0].mxu0
    %v956 = vpop.f32.mrb[0].mxu0
    %957 = vdwg.mxu0
    %v958 = vadd.f32 %v310, %v912
    %v959 = vxor.u32 %v958, 2147483648
    %v960 = vmul.f32 %v959, 1.442695
    %v961 = vpow.pop %v960
    %v962 = vadd.f32 %v961, 1.0
    %v963 = vrcp.pop %v962
    %v964 = vmul.f32 1.0, %v963
    %v965 = vadd.f32 %v312, %v914
    %v966 = vxor.u32 %v965, 2147483648
    %v967 = vmul.f32 %v966, 1.442695
    %v968 = vpow.pop %v967
    %v969 = vadd.f32 %v968, 1.0
    %v970 = vrcp.pop %v969
    %v971 = vmul.f32 1.0, %v970
    %v972 = vadd.f32 %v953, %v658
    %v973 = vmul.f32 %v964, %v972
    %v974 = vadd.f32 %v380, %v973
    %v975 = vtanh.pop %v974
    %v976 = vsub.f32 1.0, %v971
    %v977 = vmul.f32 %v976, %v975
    %v978 = vmul.f32 %v971, %v875
    %v979 = vadd.f32 %v977, %v978
    %v980 = vpack.c.bf16 %v979, %v979
    %981 = vmatprep.subr.bf16.mxu0 %v512
    %982 = vmatpush1.bf16.msra.mxu0 %v511
    %983 = vmatprep.subr.bf16.mxu0 %v515
    %984 = vmatpush1.bf16.msra.mxu0 %v514
    %985 = vmatprep.subr.bf16.mxu0 %v518
    %986 = vmatpush1.bf16.msra.mxu0 %v517
    %987 = vmatprep.subr.bf16.mxu0 %v521
    %988 = vmatpush1.bf16.msra.mxu0 %v520
    %989 = vmatprep.subr.bf16.mxu0 %v524
    %990 = vmatpush1.bf16.msra.mxu0 %v523
    %991 = vmatprep.subr.bf16.mxu0 %v527
    %992 = vmatpush1.bf16.msra.mxu0 %v526
    %993 = vmatprep.subr.bf16.mxu0 %v530
    %994 = vmatpush1.bf16.msra.mxu0 %v529
    %995 = vmatprep.subr.bf16.mxu0 %v533
    %996 = vmatpush1.bf16.msra.mxu0 %v532
    %997 = vmatprep.subr.bf16.mxu0 0
    %998 = vmatpush1.bf16.msra.mxu0 0
    %999 = vmatprep.subr.bf16.mxu0 0
    %1000 = vmatpush1.bf16.msra.mxu0 0
    %1001 = vmatprep.subr.bf16.mxu0 0
    %1002 = vmatpush1.bf16.msra.mxu0 0
    %1003 = vmatprep.subr.bf16.mxu0 0
    %1004 = vmatpush1.bf16.msra.mxu0 0
    %1005 = vmatprep.subr.bf16.mxu0 0
    %1006 = vmatpush1.bf16.msra.mxu0 0
    %1007 = vmatprep.subr.bf16.mxu0 0
    %1008 = vmatpush1.bf16.msra.mxu0 0
    %1009 = vmatprep.subr.bf16.mxu0 0
    %1010 = vmatpush1.bf16.msra.mxu0 0
    %1011 = vmatprep.subr.bf16.mxu0 0
    %1012 = vmatpush1.bf16.msra.mxu0 0
    %1013 = vmatprep.mubr.bf16.mxu0 0
    %1014 = vmatmul.mubr.bf16.gmra.mrb[0].mxu0 %v980
    %v1015 = vpop.f32.mrb[0].mxu0
    %v1016 = vadd.f32 0.0, %v1015
    %v1017 = vpop.f32.mrb[0].mxu0
    %v1018 = vadd.f32 0.0, %v1017
    %v1019 = vpop.f32.mrb[0].mxu0
    %v1020 = vpop.f32.mrb[0].mxu0
    %1021 = vdwg.mxu0
    %1022 = vmatprep.subr.bf16.mxu0 0
    %1023 = vmatpush1.bf16.msra.mxu0 %v513
    %1024 = vmatprep.subr.bf16.mxu0 0
    %1025 = vmatpush1.bf16.msra.mxu0 %v516
    %1026 = vmatprep.subr.bf16.mxu0 0
    %1027 = vmatpush1.bf16.msra.mxu0 %v519
    %1028 = vmatprep.subr.bf16.mxu0 0
    %1029 = vmatpush1.bf16.msra.mxu0 %v522
    %1030 = vmatprep.subr.bf16.mxu0 0
    %1031 = vmatpush1.bf16.msra.mxu0 %v525
    %1032 = vmatprep.subr.bf16.mxu0 0
    %1033 = vmatpush1.bf16.msra.mxu0 %v528
    %1034 = vmatprep.subr.bf16.mxu0 0
    %1035 = vmatpush1.bf16.msra.mxu0 %v531
    %1036 = vmatprep.subr.bf16.mxu0 0
    %1037 = vmatpush1.bf16.msra.mxu0 %v534
    %1038 = vmatprep.subr.bf16.mxu0 0
    %1039 = vmatpush1.bf16.msra.mxu0 0
    %1040 = vmatprep.subr.bf16.mxu0 0
    %1041 = vmatpush1.bf16.msra.mxu0 0
    %1042 = vmatprep.subr.bf16.mxu0 0
    %1043 = vmatpush1.bf16.msra.mxu0 0
    %1044 = vmatprep.subr.bf16.mxu0 0
    %1045 = vmatpush1.bf16.msra.mxu0 0
    %1046 = vmatprep.subr.bf16.mxu0 0
    %1047 = vmatpush1.bf16.msra.mxu0 0
    %1048 = vmatprep.subr.bf16.mxu0 0
    %1049 = vmatpush1.bf16.msra.mxu0 0
    %1050 = vmatprep.subr.bf16.mxu0 0
    %1051 = vmatpush1.bf16.msra.mxu0 0
    %1052 = vmatprep.subr.bf16.mxu0 0
    %1053 = vmatpush1.bf16.msra.mxu0 0
    %1054 = vmatprep.mubr.bf16.mxu0 0
    %1055 = vmatmul.mubr.bf16.gmra.mrb[0].mxu0 %v980
    %v1056 = vpop.f32.mrb[0].mxu0
    %v1057 = vadd.f32 0.0, %v1056
    %v1058 = vpop.f32.mrb[0].mxu0
    %v1059 = vpop.f32.mrb[0].mxu0
    %v1060 = vpop.f32.mrb[0].mxu0
    %1061 = vdwg.mxu0
    %v1062 = vadd.f32 %v316, %v1016
    %v1063 = vxor.u32 %v1062, 2147483648
    %v1064 = vmul.f32 %v1063, 1.442695
    %v1065 = vpow.pop %v1064
    %v1066 = vadd.f32 %v1065, 1.0
    %v1067 = vrcp.pop %v1066
    %v1068 = vmul.f32 1.0, %v1067
    %v1069 = vadd.f32 %v318, %v1018
    %v1070 = vxor.u32 %v1069, 2147483648
    %v1071 = vmul.f32 %v1070, 1.442695
    %v1072 = vpow.pop %v1071
    %v1073 = vadd.f32 %v1072, 1.0
    %v1074 = vrcp.pop %v1073
    %v1075 = vmul.f32 1.0, %v1074
    %v1076 = vadd.f32 %v1057, %v658
    %v1077 = vmul.f32 %v1068, %v1076
    %v1078 = vadd.f32 %v385, %v1077
    %v1079 = vtanh.pop %v1078
    %v1080 = vsub.f32 1.0, %v1075
    %v1081 = vmul.f32 %v1080, %v1079
    %v1082 = vmul.f32 %v1075, %v979
    %v1083 = vadd.f32 %v1081, %v1082
    %v1084 = vpack.c.bf16 %v1083, %v1083
    %1085 = vmatprep.subr.bf16.mxu0 %v512
    %1086 = vmatpush1.bf16.msra.mxu0 %v511
    %1087 = vmatprep.subr.bf16.mxu0 %v515
    %1088 = vmatpush1.bf16.msra.mxu0 %v514
    %1089 = vmatprep.subr.bf16.mxu0 %v518
    %1090 = vmatpush1.bf16.msra.mxu0 %v517
    %1091 = vmatprep.subr.bf16.mxu0 %v521
    %1092 = vmatpush1.bf16.msra.mxu0 %v520
    %1093 = vmatprep.subr.bf16.mxu0 %v524
    %1094 = vmatpush1.bf16.msra.mxu0 %v523
    %1095 = vmatprep.subr.bf16.mxu0 %v527
    %1096 = vmatpush1.bf16.msra.mxu0 %v526
    %1097 = vmatprep.subr.bf16.mxu0 %v530
    %1098 = vmatpush1.bf16.msra.mxu0 %v529
    %1099 = vmatprep.subr.bf16.mxu0 %v533
    %1100 = vmatpush1.bf16.msra.mxu0 %v532
    %1101 = vmatprep.subr.bf16.mxu0 0
    %1102 = vmatpush1.bf16.msra.mxu0 0
    %1103 = vmatprep.subr.bf16.mxu0 0
    %1104 = vmatpush1.bf16.msra.mxu0 0
    %1105 = vmatprep.subr.bf16.mxu0 0
    %1106 = vmatpush1.bf16.msra.mxu0 0
    %1107 = vmatprep.subr.bf16.mxu0 0
    %1108 = vmatpush1.bf16.msra.mxu0 0
    %1109 = vmatprep.subr.bf16.mxu0 0
    %1110 = vmatpush1.bf16.msra.mxu0 0
    %1111 = vmatprep.subr.bf16.mxu0 0
    %1112 = vmatpush1.bf16.msra.mxu0 0
    %1113 = vmatprep.subr.bf16.mxu0 0
    %1114 = vmatpush1.bf16.msra.mxu0 0
    %1115 = vmatprep.subr.bf16.mxu0 0
    %1116 = vmatpush1.bf16.msra.mxu0 0
    %1117 = vmatprep.mubr.bf16.mxu0 0
    %1118 = vmatmul.mubr.bf16.gmra.mrb[0].mxu0 %v1084
    %v1119 = vpop.f32.mrb[0].mxu0
    %v1120 = vadd.f32 0.0, %v1119
    %v1121 = vpop.f32.mrb[0].mxu0
    %v1122 = vadd.f32 0.0, %v1121
    %v1123 = vpop.f32.mrb[0].mxu0
    %v1124 = vpop.f32.mrb[0].mxu0
    %1125 = vdwg.mxu0
    %1126 = vmatprep.subr.bf16.mxu0 0
    %1127 = vmatpush1.bf16.msra.mxu0 %v513
    %1128 = vmatprep.subr.bf16.mxu0 0
    %1129 = vmatpush1.bf16.msra.mxu0 %v516
    %1130 = vmatprep.subr.bf16.mxu0 0
    %1131 = vmatpush1.bf16.msra.mxu0 %v519
    %1132 = vmatprep.subr.bf16.mxu0 0
    %1133 = vmatpush1.bf16.msra.mxu0 %v522
    %1134 = vmatprep.subr.bf16.mxu0 0
    %1135 = vmatpush1.bf16.msra.mxu0 %v525
    %1136 = vmatprep.subr.bf16.mxu0 0
    %1137 = vmatpush1.bf16.msra.mxu0 %v528
    %1138 = vmatprep.subr.bf16.mxu0 0
    %1139 = vmatpush1.bf16.msra.mxu0 %v531
    %1140 = vmatprep.subr.bf16.mxu0 0
    %1141 = vmatpush1.bf16.msra.mxu0 %v534
    %1142 = vmatprep.subr.bf16.mxu0 0
    %1143 = vmatpush1.bf16.msra.mxu0 0
    %1144 = vmatprep.subr.bf16.mxu0 0
    %1145 = vmatpush1.bf16.msra.mxu0 0
    %1146 = vmatprep.subr.bf16.mxu0 0
    %1147 = vmatpush1.bf16.msra.mxu0 0
    %1148 = vmatprep.subr.bf16.mxu0 0
    %1149 = vmatpush1.bf16.msra.mxu0 0
    %1150 = vmatprep.subr.bf16.mxu0 0
    %1151 = vmatpush1.bf16.msra.mxu0 0
    %1152 = vmatprep.subr.bf16.mxu0 0
    %1153 = vmatpush1.bf16.msra.mxu0 0
    %1154 = vmatprep.subr.bf16.mxu0 0
    %1155 = vmatpush1.bf16.msra.mxu0 0
    %1156 = vmatprep.subr.bf16.mxu0 0
    %1157 = vmatpush1.bf16.msra.mxu0 0
    %1158 = vmatprep.mubr.bf16.mxu0 0
    %1159 = vmatmul.mubr.bf16.gmra.mrb[0].mxu0 %v1084
    %v1160 = vpop.f32.mrb[0].mxu0
    %v1161 = vadd.f32 0.0, %v1160
    %v1162 = vpop.f32.mrb[0].mxu0
    %v1163 = vpop.f32.mrb[0].mxu0
    %v1164 = vpop.f32.mrb[0].mxu0
    %1165 = vdwg.mxu0
    %v1166 = vadd.f32 %v320, %v1120
    %v1167 = vxor.u32 %v1166, 2147483648
    %v1168 = vmul.f32 %v1167, 1.442695
    %v1169 = vpow.pop %v1168
    %v1170 = vadd.f32 %v1169, 1.0
    %v1171 = vrcp.pop %v1170
    %v1172 = vmul.f32 1.0, %v1171
    %v1173 = vadd.f32 %v322, %v1122
    %v1174 = vxor.u32 %v1173, 2147483648
    %v1175 = vmul.f32 %v1174, 1.442695
    %v1176 = vpow.pop %v1175
    %v1177 = vadd.f32 %v1176, 1.0
    %v1178 = vrcp.pop %v1177
    %v1179 = vmul.f32 1.0, %v1178
    %v1180 = vadd.f32 %v1161, %v658
    %v1181 = vmul.f32 %v1172, %v1180
    %v1182 = vadd.f32 %v388, %v1181
    %v1183 = vtanh.pop %v1182
    %v1184 = vsub.f32 1.0, %v1179
    %v1185 = vmul.f32 %v1184, %v1183
    %v1186 = vmul.f32 %v1179, %v1083
    %v1187 = vadd.f32 %v1185, %v1186
    %v1188 = vpack.c.bf16 %v1187, %v1187
    %1189 = vmatprep.subr.bf16.mxu0 %v512
    %1190 = vmatpush1.bf16.msra.mxu0 %v511
    %1191 = vmatprep.subr.bf16.mxu0 %v515
    %1192 = vmatpush1.bf16.msra.mxu0 %v514
    %1193 = vmatprep.subr.bf16.mxu0 %v518
    %1194 = vmatpush1.bf16.msra.mxu0 %v517
    %1195 = vmatprep.subr.bf16.mxu0 %v521
    %1196 = vmatpush1.bf16.msra.mxu0 %v520
    %1197 = vmatprep.subr.bf16.mxu0 %v524
    %1198 = vmatpush1.bf16.msra.mxu0 %v523
    %1199 = vmatprep.subr.bf16.mxu0 %v527
    %1200 = vmatpush1.bf16.msra.mxu0 %v526
    %1201 = vmatprep.subr.bf16.mxu0 %v530
    %1202 = vmatpush1.bf16.msra.mxu0 %v529
    %1203 = vmatprep.subr.bf16.mxu0 %v533
    %1204 = vmatpush1.bf16.msra.mxu0 %v532
    %1205 = vmatprep.subr.bf16.mxu0 0
    %1206 = vmatpush1.bf16.msra.mxu0 0
    %1207 = vmatprep.subr.bf16.mxu0 0
    %1208 = vmatpush1.bf16.msra.mxu0 0
    %1209 = vmatprep.subr.bf16.mxu0 0
    %1210 = vmatpush1.bf16.msra.mxu0 0
    %1211 = vmatprep.subr.bf16.mxu0 0
    %1212 = vmatpush1.bf16.msra.mxu0 0
    %1213 = vmatprep.subr.bf16.mxu0 0
    %1214 = vmatpush1.bf16.msra.mxu0 0
    %1215 = vmatprep.subr.bf16.mxu0 0
    %1216 = vmatpush1.bf16.msra.mxu0 0
    %1217 = vmatprep.subr.bf16.mxu0 0
    %1218 = vmatpush1.bf16.msra.mxu0 0
    %1219 = vmatprep.subr.bf16.mxu0 0
    %1220 = vmatpush1.bf16.msra.mxu0 0
    %1221 = vmatprep.mubr.bf16.mxu0 0
    %1222 = vmatmul.mubr.bf16.gmra.mrb[0].mxu0 %v1188
    %v1223 = vpop.f32.mrb[0].mxu0
    %v1224 = vadd.f32 0.0, %v1223
    %v1225 = vpop.f32.mrb[0].mxu0
    %v1226 = vadd.f32 0.0, %v1225
    %v1227 = vpop.f32.mrb[0].mxu0
    %v1228 = vpop.f32.mrb[0].mxu0
    %1229 = vdwg.mxu0
    %1230 = vmatprep.subr.bf16.mxu0 0
    %1231 = vmatpush1.bf16.msra.mxu0 %v513
    %1232 = vmatprep.subr.bf16.mxu0 0
    %1233 = vmatpush1.bf16.msra.mxu0 %v516
    %1234 = vmatprep.subr.bf16.mxu0 0
    %1235 = vmatpush1.bf16.msra.mxu0 %v519
    %1236 = vmatprep.subr.bf16.mxu0 0
    %1237 = vmatpush1.bf16.msra.mxu0 %v522
    %1238 = vmatprep.subr.bf16.mxu0 0
    %1239 = vmatpush1.bf16.msra.mxu0 %v525
    %1240 = vmatprep.subr.bf16.mxu0 0
    %1241 = vmatpush1.bf16.msra.mxu0 %v528
    %1242 = vmatprep.subr.bf16.mxu0 0
    %1243 = vmatpush1.bf16.msra.mxu0 %v531
    %1244 = vmatprep.subr.bf16.mxu0 0
    %1245 = vmatpush1.bf16.msra.mxu0 %v534
    %1246 = vmatprep.subr.bf16.mxu0 0
    %1247 = vmatpush1.bf16.msra.mxu0 0
    %1248 = vmatprep.subr.bf16.mxu0 0
    %1249 = vmatpush1.bf16.msra.mxu0 0
    %1250 = vmatprep.subr.bf16.mxu0 0
    %1251 = vmatpush1.bf16.msra.mxu0 0
    %1252 = vmatprep.subr.bf16.mxu0 0
    %1253 = vmatpush1.bf16.msra.mxu0 0
    %1254 = vmatprep.subr.bf16.mxu0 0
    %1255 = vmatpush1.bf16.msra.mxu0 0
    %1256 = vmatprep.subr.bf16.mxu0 0
    %1257 = vmatpush1.bf16.msra.mxu0 0
    %1258 = vmatprep.subr.bf16.mxu0 0
    %1259 = vmatpush1.bf16.msra.mxu0 0
    %1260 = vmatprep.subr.bf16.mxu0 0
    %1261 = vmatpush1.bf16.msra.mxu0 0
    %1262 = vmatprep.mubr.bf16.mxu0 0
    %1263 = vmatmul.mubr.bf16.gmra.mrb[0].mxu0 %v1188
    %v1264 = vpop.f32.mrb[0].mxu0
    %v1265 = vadd.f32 0.0, %v1264
    %v1266 = vpop.f32.mrb[0].mxu0
    %v1267 = vpop.f32.mrb[0].mxu0
    %v1268 = vpop.f32.mrb[0].mxu0
    %1269 = vdwg.mxu0
    %v1270 = vadd.f32 %v326, %v1224
    %v1271 = vxor.u32 %v1270, 2147483648
    %v1272 = vmul.f32 %v1271, 1.442695
    %v1273 = vpow.pop %v1272
    %v1274 = vadd.f32 %v1273, 1.0
    %v1275 = vrcp.pop %v1274
    %v1276 = vmul.f32 1.0, %v1275
    %v1277 = vadd.f32 %v328, %v1226
    %v1278 = vxor.u32 %v1277, 2147483648
    %v1279 = vmul.f32 %v1278, 1.442695
    %v1280 = vpow.pop %v1279
    %v1281 = vadd.f32 %v1280, 1.0
    %v1282 = vrcp.pop %v1281
    %v1283 = vmul.f32 1.0, %v1282
    %v1284 = vadd.f32 %v1265, %v658
    %v1285 = vmul.f32 %v1276, %v1284
    %v1286 = vadd.f32 %v393, %v1285
    %v1287 = vtanh.pop %v1286
    %v1288 = vsub.f32 1.0, %v1283
    %v1289 = vmul.f32 %v1288, %v1287
    %v1290 = vmul.f32 %v1283, %v1187
    %v1291 = vadd.f32 %v1289, %v1290
    %v1292 = vpack.c.bf16 %v1291, %v1291
    %1293 = vmatprep.subr.bf16.mxu0 %v512
    %1294 = vmatpush1.bf16.msra.mxu0 %v511
    %1295 = vmatprep.subr.bf16.mxu0 %v515
    %1296 = vmatpush1.bf16.msra.mxu0 %v514
    %1297 = vmatprep.subr.bf16.mxu0 %v518
    %1298 = vmatpush1.bf16.msra.mxu0 %v517
    %1299 = vmatprep.subr.bf16.mxu0 %v521
    %1300 = vmatpush1.bf16.msra.mxu0 %v520
    %1301 = vmatprep.subr.bf16.mxu0 %v524
    %1302 = vmatpush1.bf16.msra.mxu0 %v523
    %1303 = vmatprep.subr.bf16.mxu0 %v527
    %1304 = vmatpush1.bf16.msra.mxu0 %v526
    %1305 = vmatprep.subr.bf16.mxu0 %v530
    %1306 = vmatpush1.bf16.msra.mxu0 %v529
    %1307 = vmatprep.subr.bf16.mxu0 %v533
    %1308 = vmatpush1.bf16.msra.mxu0 %v532
    %1309 = vmatprep.subr.bf16.mxu0 0
    %1310 = vmatpush1.bf16.msra.mxu0 0
    %1311 = vmatprep.subr.bf16.mxu0 0
    %1312 = vmatpush1.bf16.msra.mxu0 0
    %1313 = vmatprep.subr.bf16.mxu0 0
    %1314 = vmatpush1.bf16.msra.mxu0 0
    %1315 = vmatprep.subr.bf16.mxu0 0
    %1316 = vmatpush1.bf16.msra.mxu0 0
    %1317 = vmatprep.subr.bf16.mxu0 0
    %1318 = vmatpush1.bf16.msra.mxu0 0
    %1319 = vmatprep.subr.bf16.mxu0 0
    %1320 = vmatpush1.bf16.msra.mxu0 0
    %1321 = vmatprep.subr.bf16.mxu0 0
    %1322 = vmatpush1.bf16.msra.mxu0 0
    %1323 = vmatprep.subr.bf16.mxu0 0
    %1324 = vmatpush1.bf16.msra.mxu0 0
    %1325 = vmatprep.mubr.bf16.mxu0 0
    %1326 = vmatmul.mubr.bf16.gmra.mrb[0].mxu0 %v1292
    %v1327 = vpop.f32.mrb[0].mxu0
    %v1328 = vadd.f32 0.0, %v1327
    %v1329 = vpop.f32.mrb[0].mxu0
    %v1330 = vadd.f32 0.0, %v1329
    %v1331 = vpop.f32.mrb[0].mxu0
    %v1332 = vpop.f32.mrb[0].mxu0
    %1333 = vdwg.mxu0
    %1334 = vmatprep.subr.bf16.mxu0 0
    %1335 = vmatpush1.bf16.msra.mxu0 %v513
    %1336 = vmatprep.subr.bf16.mxu0 0
    %1337 = vmatpush1.bf16.msra.mxu0 %v516
    %1338 = vmatprep.subr.bf16.mxu0 0
    %1339 = vmatpush1.bf16.msra.mxu0 %v519
    %1340 = vmatprep.subr.bf16.mxu0 0
    %1341 = vmatpush1.bf16.msra.mxu0 %v522
    %1342 = vmatprep.subr.bf16.mxu0 0
    %1343 = vmatpush1.bf16.msra.mxu0 %v525
    %1344 = vmatprep.subr.bf16.mxu0 0
    %1345 = vmatpush1.bf16.msra.mxu0 %v528
    %1346 = vmatprep.subr.bf16.mxu0 0
    %1347 = vmatpush1.bf16.msra.mxu0 %v531
    %1348 = vmatprep.subr.bf16.mxu0 0
    %1349 = vmatpush1.bf16.msra.mxu0 %v534
    %1350 = vmatprep.subr.bf16.mxu0 0
    %1351 = vmatpush1.bf16.msra.mxu0 0
    %1352 = vmatprep.subr.bf16.mxu0 0
    %1353 = vmatpush1.bf16.msra.mxu0 0
    %1354 = vmatprep.subr.bf16.mxu0 0
    %1355 = vmatpush1.bf16.msra.mxu0 0
    %1356 = vmatprep.subr.bf16.mxu0 0
    %1357 = vmatpush1.bf16.msra.mxu0 0
    %1358 = vmatprep.subr.bf16.mxu0 0
    %1359 = vmatpush1.bf16.msra.mxu0 0
    %1360 = vmatprep.subr.bf16.mxu0 0
    %1361 = vmatpush1.bf16.msra.mxu0 0
    %1362 = vmatprep.subr.bf16.mxu0 0
    %1363 = vmatpush1.bf16.msra.mxu0 0
    %1364 = vmatprep.subr.bf16.mxu0 0
    %1365 = vmatpush1.bf16.msra.mxu0 0
    %1366 = vmatprep.mubr.bf16.mxu0 0
    %1367 = vmatmul.mubr.bf16.gmra.mrb[0].mxu0 %v1292
    %v1368 = vpop.f32.mrb[0].mxu0
    %v1369 = vadd.f32 0.0, %v1368
    %v1370 = vpop.f32.mrb[0].mxu0
    %v1371 = vpop.f32.mrb[0].mxu0
    %v1372 = vpop.f32.mrb[0].mxu0
    %1373 = vdwg.mxu0
    %v1374 = vadd.f32 %v330, %v1328
    %v1375 = vxor.u32 %v1374, 2147483648
    %v1376 = vmul.f32 %v1375, 1.442695
    %v1377 = vpow.pop %v1376
    %v1378 = vadd.f32 %v1377, 1.0
    %v1379 = vrcp.pop %v1378
    %v1380 = vmul.f32 1.0, %v1379
    %v1381 = vadd.f32 %v332, %v1330
    %v1382 = vxor.u32 %v1381, 2147483648
    %v1383 = vmul.f32 %v1382, 1.442695
    %v1384 = vpow.pop %v1383
    %v1385 = vadd.f32 %v1384, 1.0
    %v1386 = vrcp.pop %v1385
    %v1387 = vmul.f32 1.0, %v1386
    %v1388 = vadd.f32 %v1369, %v658
    %v1389 = vmul.f32 %v1380, %v1388
    %v1390 = vadd.f32 %v396, %v1389
    %v1391 = vtanh.pop %v1390
    %v1392 = vsub.f32 1.0, %v1387
    %v1393 = vmul.f32 %v1392, %v1391
    %v1394 = vmul.f32 %v1387, %v1291
    %v1395 = vadd.f32 %v1393, %v1394
    %v1396 = vld [vmem:[#allocation5] sm:$0x3f]
    %v1397 = vtanh.pop %v1396
    %v1398 = vpack.c.bf16 %v1397, %v1397
    %v1399 = vld [vmem:[#allocation10] sm:$0xff]
    %v1400 = vld [vmem:[#allocation10 + $0x8] sm:$0xf]
    %v1401 = vld [vmem:[#allocation10 + $0xc] sm:$0xff]
    %v1402 = vld [vmem:[#allocation10 + $0x14] sm:$0xf]
    %v1403 = vld [vmem:[#allocation10 + $0x18] sm:$0xff]
    %v1404 = vld [vmem:[#allocation10 + $0x20] sm:$0xf]
    %v1405 = vld [vmem:[#allocation10 + $0x24] sm:$0xff]
    %v1406 = vld [vmem:[#allocation10 + $0x2c] sm:$0xf]
    %v1408 = vlaneseq
    %v1409 = vshrl.u32 %v1408, 7
    %v1410 = vsub.s32 0, %v1409
    %v1411 = vrot.slane %v138, %v1410
    %v1412 = vlaneseq
    %v1413 = vshrl.u32 %v1412, 7
    %v1414 = vsub.s32 1, %v1413
    %v1415 = vrot.slane %v138, %v1414
    %v1416 = vlaneseq
    %v1417 = vshrl.u32 %v1416, 7
    %v1418 = vsub.s32 2, %v1417
    %v1419 = vrot.slane %v138, %v1418
    %v1431 = vunpack.c.l.b16 %v1399
    %v1432 = vunpack.c.h.b16 %v1399
    %v1433 = vunpack.c.l.b16 %v1400
    %v1434 = vunpack.c.l.b16 %v1401
    %v1435 = vunpack.c.h.b16 %v1401
    %v1436 = vunpack.c.l.b16 %v1402
    %v1437 = vunpack.c.l.b16 %v1403
    %v1438 = vunpack.c.h.b16 %v1403
    %v1439 = vunpack.c.l.b16 %v1404
    %v1440 = vunpack.c.l.b16 %v1405
    %v1441 = vunpack.c.h.b16 %v1405
    %v1442 = vunpack.c.l.b16 %v1406
    %v1443 = vpack.c.b16 %v1434, %v1431
    %v1444 = vpack.c.b16 %v1435, %v1432
    %v1445 = vpack.c.b16 %v1436, %v1433
    %v1446 = vpack.c.b16 %v1440, %v1437
    %v1447 = vpack.c.b16 %v1441, %v1438
    %v1448 = vpack.c.b16 %v1442, %v1439
    %v1456 = vsel %vm248, %v1398, 0
    %1458 = vmatprep.subr.bf16.mxu0 %v1444
    %1459 = vmatpush1.bf16.msra.mxu0 %v1443
    %1460 = vmatprep.subr.bf16.mxu0 %v1447
    %1461 = vmatpush1.bf16.msra.mxu0 %v1446
    %1462 = vmatprep.subr.bf16.mxu0 0
    %1463 = vmatpush1.bf16.msra.mxu0 0
    %1464 = vmatprep.subr.bf16.mxu0 0
    %1465 = vmatpush1.bf16.msra.mxu0 0
    %1466 = vmatprep.subr.bf16.mxu0 0
    %1467 = vmatpush1.bf16.msra.mxu0 0
    %1468 = vmatprep.subr.bf16.mxu0 0
    %1469 = vmatpush1.bf16.msra.mxu0 0
    %1470 = vmatprep.subr.bf16.mxu0 0
    %1471 = vmatpush1.bf16.msra.mxu0 0
    %1472 = vmatprep.subr.bf16.mxu0 0
    %1473 = vmatpush1.bf16.msra.mxu0 0
    %1474 = vmatprep.subr.bf16.mxu0 0
    %1475 = vmatpush1.bf16.msra.mxu0 0
    %1476 = vmatprep.subr.bf16.mxu0 0
    %1477 = vmatpush1.bf16.msra.mxu0 0
    %1478 = vmatprep.subr.bf16.mxu0 0
    %1479 = vmatpush1.bf16.msra.mxu0 0
    %1480 = vmatprep.subr.bf16.mxu0 0
    %1481 = vmatpush1.bf16.msra.mxu0 0
    %1482 = vmatprep.subr.bf16.mxu0 0
    %1483 = vmatpush1.bf16.msra.mxu0 0
    %1484 = vmatprep.subr.bf16.mxu0 0
    %1485 = vmatpush1.bf16.msra.mxu0 0
    %1486 = vmatprep.subr.bf16.mxu0 0
    %1487 = vmatpush1.bf16.msra.mxu0 0
    %1488 = vmatprep.subr.bf16.mxu0 0
    %1489 = vmatpush1.bf16.msra.mxu0 0
    %1490 = vmatprep.mubr.bf16.mxu0 0
    %1491 = vmatmul.mubr.bf16.gmra.mrb[0].mxu0 %v1456
    %v1492 = vpop.f32.mrb[0].mxu0
    %v1493 = vadd.f32 %v1411, %v1492
    %v1494 = vpop.f32.mrb[0].mxu0
    %v1495 = vadd.f32 %v1415, %v1494
    %v1496 = vpop.f32.mrb[0].mxu0
    %v1497 = vpop.f32.mrb[0].mxu0
    %1498 = vdwg.mxu0
    %1499 = vmatprep.subr.bf16.mxu0 0
    %1500 = vmatpush1.bf16.msra.mxu0 %v1445
    %1501 = vmatprep.subr.bf16.mxu0 0
    %1502 = vmatpush1.bf16.msra.mxu0 %v1448
    %1503 = vmatprep.subr.bf16.mxu0 0
    %1504 = vmatpush1.bf16.msra.mxu0 0
    %1505 = vmatprep.subr.bf16.mxu0 0
    %1506 = vmatpush1.bf16.msra.mxu0 0
    %1507 = vmatprep.subr.bf16.mxu0 0
    %1508 = vmatpush1.bf16.msra.mxu0 0
    %1509 = vmatprep.subr.bf16.mxu0 0
    %1510 = vmatpush1.bf16.msra.mxu0 0
    %1511 = vmatprep.subr.bf16.mxu0 0
    %1512 = vmatpush1.bf16.msra.mxu0 0
    %1513 = vmatprep.subr.bf16.mxu0 0
    %1514 = vmatpush1.bf16.msra.mxu0 0
    %1515 = vmatprep.subr.bf16.mxu0 0
    %1516 = vmatpush1.bf16.msra.mxu0 0
    %1517 = vmatprep.subr.bf16.mxu0 0
    %1518 = vmatpush1.bf16.msra.mxu0 0
    %1519 = vmatprep.subr.bf16.mxu0 0
    %1520 = vmatpush1.bf16.msra.mxu0 0
    %1521 = vmatprep.subr.bf16.mxu0 0
    %1522 = vmatpush1.bf16.msra.mxu0 0
    %1523 = vmatprep.subr.bf16.mxu0 0
    %1524 = vmatpush1.bf16.msra.mxu0 0
    %1525 = vmatprep.subr.bf16.mxu0 0
    %1526 = vmatpush1.bf16.msra.mxu0 0
    %1527 = vmatprep.subr.bf16.mxu0 0
    %1528 = vmatpush1.bf16.msra.mxu0 0
    %1529 = vmatprep.subr.bf16.mxu0 0
    %1530 = vmatpush1.bf16.msra.mxu0 0
    %1531 = vmatprep.mubr.bf16.mxu0 0
    %1532 = vmatmul.mubr.bf16.gmra.mrb[0].mxu0 %v1456
    %v1533 = vpop.f32.mrb[0].mxu0
    %v1534 = vadd.f32 %v1419, %v1533
    %v1535 = vpop.f32.mrb[0].mxu0
    %v1536 = vpop.f32.mrb[0].mxu0
    %v1537 = vpop.f32.mrb[0].mxu0
    %1538 = vdwg.mxu0
    %v1539 = vpack.c.bf16 %v1395, %v1395
    %v1540 = vld [vmem:[#allocation11] sm:$0xff]
    %v1541 = vld [vmem:[#allocation11 + $0x8] sm:$0xf]
    %v1542 = vld [vmem:[#allocation11 + $0xc] sm:$0xff]
    %v1543 = vld [vmem:[#allocation11 + $0x14] sm:$0xf]
    %v1544 = vld [vmem:[#allocation11 + $0x18] sm:$0xff]
    %v1545 = vld [vmem:[#allocation11 + $0x20] sm:$0xf]
    %v1546 = vld [vmem:[#allocation11 + $0x24] sm:$0xff]
    %v1547 = vld [vmem:[#allocation11 + $0x2c] sm:$0xf]
    %v1548 = vld [vmem:[#allocation11 + $0x30] sm:$0xff]
    %v1549 = vld [vmem:[#allocation11 + $0x38] sm:$0xf]
    %v1550 = vld [vmem:[#allocation11 + $0x3c] sm:$0xff]
    %v1551 = vld [vmem:[#allocation11 + $0x44] sm:$0xf]
    %v1552 = vld [vmem:[#allocation11 + $0x48] sm:$0xff]
    %v1553 = vld [vmem:[#allocation11 + $0x50] sm:$0xf]
    %v1554 = vld [vmem:[#allocation11 + $0x54] sm:$0xff]
    %v1555 = vld [vmem:[#allocation11 + $0x5c] sm:$0xf]
    %v1556 = vld [vmem:[#allocation11 + $0x60] sm:$0xff]
    %v1557 = vld [vmem:[#allocation11 + $0x68] sm:$0xf]
    %v1558 = vld [vmem:[#allocation11 + $0x6c] sm:$0xff]
    %v1559 = vld [vmem:[#allocation11 + $0x74] sm:$0xf]
    %v1560 = vld [vmem:[#allocation11 + $0x78] sm:$0xff]
    %v1561 = vld [vmem:[#allocation11 + $0x80] sm:$0xf]
    %v1562 = vld [vmem:[#allocation11 + $0x84] sm:$0xff]
    %v1563 = vld [vmem:[#allocation11 + $0x8c] sm:$0xf]
    %v1564 = vld [vmem:[#allocation11 + $0x90] sm:$0xff]
    %v1565 = vld [vmem:[#allocation11 + $0x98] sm:$0xf]
    %v1566 = vld [vmem:[#allocation11 + $0x9c] sm:$0xff]
    %v1567 = vld [vmem:[#allocation11 + $0xa4] sm:$0xf]
    %v1568 = vld [vmem:[#allocation11 + $0xa8] sm:$0xff]
    %v1569 = vld [vmem:[#allocation11 + $0xb0] sm:$0xf]
    %v1570 = vld [vmem:[#allocation11 + $0xb4] sm:$0xff]
    %v1571 = vld [vmem:[#allocation11 + $0xbc] sm:$0xf]
    %v1604 = vunpack.c.l.b16 %v1540
    %v1605 = vunpack.c.h.b16 %v1540
    %v1606 = vunpack.c.l.b16 %v1541
    %v1607 = vunpack.c.l.b16 %v1542
    %v1608 = vunpack.c.h.b16 %v1542
    %v1609 = vunpack.c.l.b16 %v1543
    %v1610 = vunpack.c.l.b16 %v1544
    %v1611 = vunpack.c.h.b16 %v1544
    %v1612 = vunpack.c.l.b16 %v1545
    %v1613 = vunpack.c.l.b16 %v1546
    %v1614 = vunpack.c.h.b16 %v1546
    %v1615 = vunpack.c.l.b16 %v1547
    %v1616 = vunpack.c.l.b16 %v1548
    %v1617 = vunpack.c.h.b16 %v1548
    %v1618 = vunpack.c.l.b16 %v1549
    %v1619 = vunpack.c.l.b16 %v1550
    %v1620 = vunpack.c.h.b16 %v1550
    %v1621 = vunpack.c.l.b16 %v1551
    %v1622 = vunpack.c.l.b16 %v1552
    %v1623 = vunpack.c.h.b16 %v1552
    %v1624 = vunpack.c.l.b16 %v1553
    %v1625 = vunpack.c.l.b16 %v1554
    %v1626 = vunpack.c.h.b16 %v1554
    %v1627 = vunpack.c.l.b16 %v1555
    %v1628 = vunpack.c.l.b16 %v1556
    %v1629 = vunpack.c.h.b16 %v1556
    %v1630 = vunpack.c.l.b16 %v1557
    %v1631 = vunpack.c.l.b16 %v1558
    %v1632 = vunpack.c.h.b16 %v1558
    %v1633 = vunpack.c.l.b16 %v1559
    %v1634 = vunpack.c.l.b16 %v1560
    %v1635 = vunpack.c.h.b16 %v1560
    %v1636 = vunpack.c.l.b16 %v1561
    %v1637 = vunpack.c.l.b16 %v1562
    %v1638 = vunpack.c.h.b16 %v1562
    %v1639 = vunpack.c.l.b16 %v1563
    %v1640 = vunpack.c.l.b16 %v1564
    %v1641 = vunpack.c.h.b16 %v1564
    %v1642 = vunpack.c.l.b16 %v1565
    %v1643 = vunpack.c.l.b16 %v1566
    %v1644 = vunpack.c.h.b16 %v1566
    %v1645 = vunpack.c.l.b16 %v1567
    %v1646 = vunpack.c.l.b16 %v1568
    %v1647 = vunpack.c.h.b16 %v1568
    %v1648 = vunpack.c.l.b16 %v1569
    %v1649 = vunpack.c.l.b16 %v1570
    %v1650 = vunpack.c.h.b16 %v1570
    %v1651 = vunpack.c.l.b16 %v1571
    %v1652 = vpack.c.b16 %v1607, %v1604
    %v1653 = vpack.c.b16 %v1608, %v1605
    %v1654 = vpack.c.b16 %v1609, %v1606
    %v1655 = vpack.c.b16 %v1613, %v1610
    %v1656 = vpack.c.b16 %v1614, %v1611
    %v1657 = vpack.c.b16 %v1615, %v1612
    %v1658 = vpack.c.b16 %v1619, %v1616
    %v1659 = vpack.c.b16 %v1620, %v1617
    %v1660 = vpack.c.b16 %v1621, %v1618
    %v1661 = vpack.c.b16 %v1625, %v1622
    %v1662 = vpack.c.b16 %v1626, %v1623
    %v1663 = vpack.c.b16 %v1627, %v1624
    %v1664 = vpack.c.b16 %v1631, %v1628
    %v1665 = vpack.c.b16 %v1632, %v1629
    %v1666 = vpack.c.b16 %v1633, %v1630
    %v1667 = vpack.c.b16 %v1637, %v1634
    %v1668 = vpack.c.b16 %v1638, %v1635
    %v1669 = vpack.c.b16 %v1639, %v1636
    %v1670 = vpack.c.b16 %v1643, %v1640
    %v1671 = vpack.c.b16 %v1644, %v1641
    %v1672 = vpack.c.b16 %v1645, %v1642
    %v1673 = vpack.c.b16 %v1649, %v1646
    %v1674 = vpack.c.b16 %v1650, %v1647
    %v1675 = vpack.c.b16 %v1651, %v1648
    %1700 = vmatprep.subr.bf16.mxu0 %v1653
    %1701 = vmatpush1.bf16.msra.mxu0 %v1652
    %1702 = vmatprep.subr.bf16.mxu0 %v1656
    %1703 = vmatpush1.bf16.msra.mxu0 %v1655
    %1704 = vmatprep.subr.bf16.mxu0 %v1659
    %1705 = vmatpush1.bf16.msra.mxu0 %v1658
    %1706 = vmatprep.subr.bf16.mxu0 %v1662
    %1707 = vmatpush1.bf16.msra.mxu0 %v1661
    %1708 = vmatprep.subr.bf16.mxu0 %v1665
    %1709 = vmatpush1.bf16.msra.mxu0 %v1664
    %1710 = vmatprep.subr.bf16.mxu0 %v1668
    %1711 = vmatpush1.bf16.msra.mxu0 %v1667
    %1712 = vmatprep.subr.bf16.mxu0 %v1671
    %1713 = vmatpush1.bf16.msra.mxu0 %v1670
    %1714 = vmatprep.subr.bf16.mxu0 %v1674
    %1715 = vmatpush1.bf16.msra.mxu0 %v1673
    %1716 = vmatprep.subr.bf16.mxu0 0
    %1717 = vmatpush1.bf16.msra.mxu0 0
    %1718 = vmatprep.subr.bf16.mxu0 0
    %1719 = vmatpush1.bf16.msra.mxu0 0
    %1720 = vmatprep.subr.bf16.mxu0 0
    %1721 = vmatpush1.bf16.msra.mxu0 0
    %1722 = vmatprep.subr.bf16.mxu0 0
    %1723 = vmatpush1.bf16.msra.mxu0 0
    %1724 = vmatprep.subr.bf16.mxu0 0
    %1725 = vmatpush1.bf16.msra.mxu0 0
    %1726 = vmatprep.subr.bf16.mxu0 0
    %1727 = vmatpush1.bf16.msra.mxu0 0
    %1728 = vmatprep.subr.bf16.mxu0 0
    %1729 = vmatpush1.bf16.msra.mxu0 0
    %1730 = vmatprep.subr.bf16.mxu0 0
    %1731 = vmatpush1.bf16.msra.mxu0 0
    %1732 = vmatprep.mubr.bf16.mxu0 0
    %1733 = vmatmul.mubr.bf16.gmra.mrb[0].mxu0 %v1539
    %v1734 = vpop.f32.mrb[0].mxu0
    %v1735 = vadd.f32 0.0, %v1734
    %v1736 = vpop.f32.mrb[0].mxu0
    %v1737 = vadd.f32 0.0, %v1736
    %v1738 = vpop.f32.mrb[0].mxu0
    %v1739 = vpop.f32.mrb[0].mxu0
    %1740 = vdwg.mxu0
    %1741 = vmatprep.subr.bf16.mxu0 0
    %1742 = vmatpush1.bf16.msra.mxu0 %v1654
    %1743 = vmatprep.subr.bf16.mxu0 0
    %1744 = vmatpush1.bf16.msra.mxu0 %v1657
    %1745 = vmatprep.subr.bf16.mxu0 0
    %1746 = vmatpush1.bf16.msra.mxu0 %v1660
    %1747 = vmatprep.subr.bf16.mxu0 0
    %1748 = vmatpush1.bf16.msra.mxu0 %v1663
    %1749 = vmatprep.subr.bf16.mxu0 0
    %1750 = vmatpush1.bf16.msra.mxu0 %v1666
    %1751 = vmatprep.subr.bf16.mxu0 0
    %1752 = vmatpush1.bf16.msra.mxu0 %v1669
    %1753 = vmatprep.subr.bf16.mxu0 0
    %1754 = vmatpush1.bf16.msra.mxu0 %v1672
    %1755 = vmatprep.subr.bf16.mxu0 0
    %1756 = vmatpush1.bf16.msra.mxu0 %v1675
    %1757 = vmatprep.subr.bf16.mxu0 0
    %1758 = vmatpush1.bf16.msra.mxu0 0
    %1759 = vmatprep.subr.bf16.mxu0 0
    %1760 = vmatpush1.bf16.msra.mxu0 0
    %1761 = vmatprep.subr.bf16.mxu0 0
    %1762 = vmatpush1.bf16.msra.mxu0 0
    %1763 = vmatprep.subr.bf16.mxu0 0
    %1764 = vmatpush1.bf16.msra.mxu0 0
    %1765 = vmatprep.subr.bf16.mxu0 0
    %1766 = vmatpush1.bf16.msra.mxu0 0
    %1767 = vmatprep.subr.bf16.mxu0 0
    %1768 = vmatpush1.bf16.msra.mxu0 0
    %1769 = vmatprep.subr.bf16.mxu0 0
    %1770 = vmatpush1.bf16.msra.mxu0 0
    %1771 = vmatprep.subr.bf16.mxu0 0
    %1772 = vmatpush1.bf16.msra.mxu0 0
    %1773 = vmatprep.mubr.bf16.mxu0 0
    %1774 = vmatmul.mubr.bf16.gmra.mrb[0].mxu0 %v1539
    %v1775 = vpop.f32.mrb[0].mxu0
    %v1776 = vadd.f32 0.0, %v1775
    %v1777 = vpop.f32.mrb[0].mxu0
    %v1778 = vpop.f32.mrb[0].mxu0
    %v1779 = vpop.f32.mrb[0].mxu0
    %1780 = vdwg.mxu0
    %v1781 = vlaneseq
    %v1782 = vshrl.u32 %v1781, 7
    %v1783 = vsub.s32 0, %v1782
    %v1784 = vrot.slane %v1493, %v1783
    %v1785 = vadd.f32 %v1784, %v1735
    %v1786 = vxor.u32 %v1785, 2147483648
    %v1787 = vmul.f32 %v1786, 1.442695
    %v1788 = vpow.pop %v1787
    %v1789 = vadd.f32 %v1788, 1.0
    %v1790 = vrcp.pop %v1789
    %v1791 = vmul.f32 1.0, %v1790
    %v1792 = vlaneseq
    %v1793 = vshrl.u32 %v1792, 7
    %v1794 = vsub.s32 0, %v1793
    %v1795 = vrot.slane %v1495, %v1794
    %v1796 = vadd.f32 %v1795, %v1737
    %v1797 = vxor.u32 %v1796, 2147483648
    %v1798 = vmul.f32 %v1797, 1.442695
    %v1799 = vpow.pop %v1798
    %v1800 = vadd.f32 %v1799, 1.0
    %v1801 = vrcp.pop %v1800
    %v1802 = vmul.f32 1.0, %v1801
    %v1804 = vlaneseq
    %v1805 = vshrl.u32 %v1804, 7
    %v1806 = vsub.s32 0, %v1805
    %v1807 = vrot.slane %v139, %v1806
    %v1809 = vadd.f32 %v1776, %v1807
    %v1810 = vmul.f32 %v1791, %v1809
    %v1811 = vlaneseq
    %v1812 = vshrl.u32 %v1811, 7
    %v1813 = vsub.s32 0, %v1812
    %v1814 = vrot.slane %v1534, %v1813
    %v1815 = vadd.f32 %v1814, %v1810
    %v1816 = vtanh.pop %v1815
    %v1817 = vsub.f32 1.0, %v1802
    %v1818 = vmul.f32 %v1817, %v1816
    %v1819 = vmul.f32 %v1802, %v1395
    %v1820 = vadd.f32 %v1818, %v1819
    %v1821 = vtanh.pop %v1820
    %v1822 = vpack.c.bf16 %v1821, %v1821
    %1823 = vmatprep.subr.bf16.mxu0 %v1653
    %1824 = vmatpush1.bf16.msra.mxu0 %v1652
    %1825 = vmatprep.subr.bf16.mxu0 %v1656
    %1826 = vmatpush1.bf16.msra.mxu0 %v1655
    %1827 = vmatprep.subr.bf16.mxu0 %v1659
    %1828 = vmatpush1.bf16.msra.mxu0 %v1658
    %1829 = vmatprep.subr.bf16.mxu0 %v1662
    %1830 = vmatpush1.bf16.msra.mxu0 %v1661
    %1831 = vmatprep.subr.bf16.mxu0 %v1665
    %1832 = vmatpush1.bf16.msra.mxu0 %v1664
    %1833 = vmatprep.subr.bf16.mxu0 %v1668
    %1834 = vmatpush1.bf16.msra.mxu0 %v1667
    %1835 = vmatprep.subr.bf16.mxu0 %v1671
    %1836 = vmatpush1.bf16.msra.mxu0 %v1670
    %1837 = vmatprep.subr.bf16.mxu0 %v1674
    %1838 = vmatpush1.bf16.msra.mxu0 %v1673
    %1839 = vmatprep.subr.bf16.mxu0 0
    %1840 = vmatpush1.bf16.msra.mxu0 0
    %1841 = vmatprep.subr.bf16.mxu0 0
    %1842 = vmatpush1.bf16.msra.mxu0 0
    %1843 = vmatprep.subr.bf16.mxu0 0
    %1844 = vmatpush1.bf16.msra.mxu0 0
    %1845 = vmatprep.subr.bf16.mxu0 0
    %1846 = vmatpush1.bf16.msra.mxu0 0
    %1847 = vmatprep.subr.bf16.mxu0 0
    %1848 = vmatpush1.bf16.msra.mxu0 0
    %1849 = vmatprep.subr.bf16.mxu0 0
    %1850 = vmatpush1.bf16.msra.mxu0 0
    %1851 = vmatprep.subr.bf16.mxu0 0
    %1852 = vmatpush1.bf16.msra.mxu0 0
    %1853 = vmatprep.subr.bf16.mxu0 0
    %1854 = vmatpush1.bf16.msra.mxu0 0
    %1855 = vmatprep.mubr.bf16.mxu0 0
    %1856 = vmatmul.mubr.bf16.gmra.mrb[0].mxu0 %v1822
    %v1857 = vpop.f32.mrb[0].mxu0
    %v1858 = vadd.f32 0.0, %v1857
    %v1859 = vpop.f32.mrb[0].mxu0
    %v1860 = vadd.f32 0.0, %v1859
    %v1861 = vpop.f32.mrb[0].mxu0
    %v1862 = vpop.f32.mrb[0].mxu0
    %1863 = vdwg.mxu0
    %1864 = vmatprep.subr.bf16.mxu0 0
    %1865 = vmatpush1.bf16.msra.mxu0 %v1654
    %1866 = vmatprep.subr.bf16.mxu0 0
    %1867 = vmatpush1.bf16.msra.mxu0 %v1657
    %1868 = vmatprep.subr.bf16.mxu0 0
    %1869 = vmatpush1.bf16.msra.mxu0 %v1660
    %1870 = vmatprep.subr.bf16.mxu0 0
    %1871 = vmatpush1.bf16.msra.mxu0 %v1663
    %1872 = vmatprep.subr.bf16.mxu0 0
    %1873 = vmatpush1.bf16.msra.mxu0 %v1666
    %1874 = vmatprep.subr.bf16.mxu0 0
    %1875 = vmatpush1.bf16.msra.mxu0 %v1669
    %1876 = vmatprep.subr.bf16.mxu0 0
    %1877 = vmatpush1.bf16.msra.mxu0 %v1672
    %1878 = vmatprep.subr.bf16.mxu0 0
    %1879 = vmatpush1.bf16.msra.mxu0 %v1675
    %1880 = vmatprep.subr.bf16.mxu0 0
    %1881 = vmatpush1.bf16.msra.mxu0 0
    %1882 = vmatprep.subr.bf16.mxu0 0
    %1883 = vmatpush1.bf16.msra.mxu0 0
    %1884 = vmatprep.subr.bf16.mxu0 0
    %1885 = vmatpush1.bf16.msra.mxu0 0
    %1886 = vmatprep.subr.bf16.mxu0 0
    %1887 = vmatpush1.bf16.msra.mxu0 0
    %1888 = vmatprep.subr.bf16.mxu0 0
    %1889 = vmatpush1.bf16.msra.mxu0 0
    %1890 = vmatprep.subr.bf16.mxu0 0
    %1891 = vmatpush1.bf16.msra.mxu0 0
    %1892 = vmatprep.subr.bf16.mxu0 0
    %1893 = vmatpush1.bf16.msra.mxu0 0
    %1894 = vmatprep.subr.bf16.mxu0 0
    %1895 = vmatpush1.bf16.msra.mxu0 0
    %1896 = vmatprep.mubr.bf16.mxu0 0
    %1897 = vmatmul.mubr.bf16.gmra.mrb[0].mxu0 %v1822
    %v1898 = vpop.f32.mrb[0].mxu0
    %v1899 = vadd.f32 0.0, %v1898
    %v1900 = vpop.f32.mrb[0].mxu0
    %v1901 = vpop.f32.mrb[0].mxu0
    %v1902 = vpop.f32.mrb[0].mxu0
    %1903 = vdwg.mxu0
    %v1904 = vlaneseq
    %v1905 = vshrl.u32 %v1904, 7
    %v1906 = vsub.s32 1, %v1905
    %v1907 = vrot.slane %v1493, %v1906
    %v1908 = vadd.f32 %v1907, %v1858
    %v1909 = vxor.u32 %v1908, 2147483648
    %v1910 = vmul.f32 %v1909, 1.442695
    %v1911 = vpow.pop %v1910
    %v1912 = vadd.f32 %v1911, 1.0
    %v1913 = vrcp.pop %v1912
    %v1914 = vmul.f32 1.0, %v1913
    %v1915 = vlaneseq
    %v1916 = vshrl.u32 %v1915, 7
    %v1917 = vsub.s32 1, %v1916
    %v1918 = vrot.slane %v1495, %v1917
    %v1919 = vadd.f32 %v1918, %v1860
    %v1920 = vxor.u32 %v1919, 2147483648
    %v1921 = vmul.f32 %v1920, 1.442695
    %v1922 = vpow.pop %v1921
    %v1923 = vadd.f32 %v1922, 1.0
    %v1924 = vrcp.pop %v1923
    %v1925 = vmul.f32 1.0, %v1924
    %v1926 = vadd.f32 %v1899, %v1807
    %v1927 = vmul.f32 %v1914, %v1926
    %v1928 = vlaneseq
    %v1929 = vshrl.u32 %v1928, 7
    %v1930 = vsub.s32 1, %v1929
    %v1931 = vrot.slane %v1534, %v1930
    %v1932 = vadd.f32 %v1931, %v1927
    %v1933 = vtanh.pop %v1932
    %v1934 = vsub.f32 1.0, %v1925
    %v1935 = vmul.f32 %v1934, %v1933
    %v1936 = vmul.f32 %v1925, %v1821
    %v1937 = vadd.f32 %v1935, %v1936
    %v1938 = vtanh.pop %v1937
    %v1939 = vpack.c.bf16 %v1938, %v1938
    %1940 = vmatprep.subr.bf16.mxu0 %v1653
    %1941 = vmatpush1.bf16.msra.mxu0 %v1652
    %1942 = vmatprep.subr.bf16.mxu0 %v1656
    %1943 = vmatpush1.bf16.msra.mxu0 %v1655
    %1944 = vmatprep.subr.bf16.mxu0 %v1659
    %1945 = vmatpush1.bf16.msra.mxu0 %v1658
    %1946 = vmatprep.subr.bf16.mxu0 %v1662
    %1947 = vmatpush1.bf16.msra.mxu0 %v1661
    %1948 = vmatprep.subr.bf16.mxu0 %v1665
    %1949 = vmatpush1.bf16.msra.mxu0 %v1664
    %1950 = vmatprep.subr.bf16.mxu0 %v1668
    %1951 = vmatpush1.bf16.msra.mxu0 %v1667
    %1952 = vmatprep.subr.bf16.mxu0 %v1671
    %1953 = vmatpush1.bf16.msra.mxu0 %v1670
    %1954 = vmatprep.subr.bf16.mxu0 %v1674
    %1955 = vmatpush1.bf16.msra.mxu0 %v1673
    %1956 = vmatprep.subr.bf16.mxu0 0
    %1957 = vmatpush1.bf16.msra.mxu0 0
    %1958 = vmatprep.subr.bf16.mxu0 0
    %1959 = vmatpush1.bf16.msra.mxu0 0
    %1960 = vmatprep.subr.bf16.mxu0 0
    %1961 = vmatpush1.bf16.msra.mxu0 0
    %1962 = vmatprep.subr.bf16.mxu0 0
    %1963 = vmatpush1.bf16.msra.mxu0 0
    %1964 = vmatprep.subr.bf16.mxu0 0
    %1965 = vmatpush1.bf16.msra.mxu0 0
    %1966 = vmatprep.subr.bf16.mxu0 0
    %1967 = vmatpush1.bf16.msra.mxu0 0
    %1968 = vmatprep.subr.bf16.mxu0 0
    %1969 = vmatpush1.bf16.msra.mxu0 0
    %1970 = vmatprep.subr.bf16.mxu0 0
    %1971 = vmatpush1.bf16.msra.mxu0 0
    %1972 = vmatprep.mubr.bf16.mxu0 0
    %1973 = vmatmul.mubr.bf16.gmra.mrb[0].mxu0 %v1939
    %v1974 = vpop.f32.mrb[0].mxu0
    %v1975 = vadd.f32 0.0, %v1974
    %v1976 = vpop.f32.mrb[0].mxu0
    %v1977 = vadd.f32 0.0, %v1976
    %v1978 = vpop.f32.mrb[0].mxu0
    %v1979 = vpop.f32.mrb[0].mxu0
    %1980 = vdwg.mxu0
    %1981 = vmatprep.subr.bf16.mxu0 0
    %1982 = vmatpush1.bf16.msra.mxu0 %v1654
    %1983 = vmatprep.subr.bf16.mxu0 0
    %1984 = vmatpush1.bf16.msra.mxu0 %v1657
    %1985 = vmatprep.subr.bf16.mxu0 0
    %1986 = vmatpush1.bf16.msra.mxu0 %v1660
    %1987 = vmatprep.subr.bf16.mxu0 0
    %1988 = vmatpush1.bf16.msra.mxu0 %v1663
    %1989 = vmatprep.subr.bf16.mxu0 0
    %1990 = vmatpush1.bf16.msra.mxu0 %v1666
    %1991 = vmatprep.subr.bf16.mxu0 0
    %1992 = vmatpush1.bf16.msra.mxu0 %v1669
    %1993 = vmatprep.subr.bf16.mxu0 0
    %1994 = vmatpush1.bf16.msra.mxu0 %v1672
    %1995 = vmatprep.subr.bf16.mxu0 0
    %1996 = vmatpush1.bf16.msra.mxu0 %v1675
    %1997 = vmatprep.subr.bf16.mxu0 0
    %1998 = vmatpush1.bf16.msra.mxu0 0
    %1999 = vmatprep.subr.bf16.mxu0 0
    %2000 = vmatpush1.bf16.msra.mxu0 0
    %2001 = vmatprep.subr.bf16.mxu0 0
    %2002 = vmatpush1.bf16.msra.mxu0 0
    %2003 = vmatprep.subr.bf16.mxu0 0
    %2004 = vmatpush1.bf16.msra.mxu0 0
    %2005 = vmatprep.subr.bf16.mxu0 0
    %2006 = vmatpush1.bf16.msra.mxu0 0
    %2007 = vmatprep.subr.bf16.mxu0 0
    %2008 = vmatpush1.bf16.msra.mxu0 0
    %2009 = vmatprep.subr.bf16.mxu0 0
    %2010 = vmatpush1.bf16.msra.mxu0 0
    %2011 = vmatprep.subr.bf16.mxu0 0
    %2012 = vmatpush1.bf16.msra.mxu0 0
    %2013 = vmatprep.mubr.bf16.mxu0 0
    %2014 = vmatmul.mubr.bf16.gmra.mrb[0].mxu0 %v1939
    %v2015 = vpop.f32.mrb[0].mxu0
    %v2016 = vadd.f32 0.0, %v2015
    %v2017 = vpop.f32.mrb[0].mxu0
    %v2018 = vpop.f32.mrb[0].mxu0
    %v2019 = vpop.f32.mrb[0].mxu0
    %2020 = vdwg.mxu0
    %v2021 = vlaneseq
    %v2022 = vshrl.u32 %v2021, 7
    %v2023 = vsub.s32 2, %v2022
    %v2024 = vrot.slane %v1493, %v2023
    %v2025 = vadd.f32 %v2024, %v1975
    %v2026 = vxor.u32 %v2025, 2147483648
    %v2027 = vmul.f32 %v2026, 1.442695
    %v2028 = vpow.pop %v2027
    %v2029 = vadd.f32 %v2028, 1.0
    %v2030 = vrcp.pop %v2029
    %v2031 = vmul.f32 1.0, %v2030
    %v2032 = vlaneseq
    %v2033 = vshrl.u32 %v2032, 7
    %v2034 = vsub.s32 2, %v2033
    %v2035 = vrot.slane %v1495, %v2034
    %v2036 = vadd.f32 %v2035, %v1977
    %v2037 = vxor.u32 %v2036, 2147483648
    %v2038 = vmul.f32 %v2037, 1.442695
    %v2039 = vpow.pop %v2038
    %v2040 = vadd.f32 %v2039, 1.0
    %v2041 = vrcp.pop %v2040
    %v2042 = vmul.f32 1.0, %v2041
    %v2043 = vadd.f32 %v2016, %v1807
    %v2044 = vmul.f32 %v2031, %v2043
    %v2045 = vlaneseq
    %v2046 = vshrl.u32 %v2045, 7
    %v2047 = vsub.s32 2, %v2046
    %v2048 = vrot.slane %v1534, %v2047
    %v2049 = vadd.f32 %v2048, %v2044
    %v2050 = vtanh.pop %v2049
    %v2051 = vsub.f32 1.0, %v2042
    %v2052 = vmul.f32 %v2051, %v2050
    %v2053 = vmul.f32 %v2042, %v1938
    %v2054 = vadd.f32 %v2052, %v2053
    %v2055 = vtanh.pop %v2054
    %v2056 = vpack.c.bf16 %v2055, %v2055
    %2057 = vmatprep.subr.bf16.mxu0 %v1653
    %2058 = vmatpush1.bf16.msra.mxu0 %v1652
    %2059 = vmatprep.subr.bf16.mxu0 %v1656
    %2060 = vmatpush1.bf16.msra.mxu0 %v1655
    %2061 = vmatprep.subr.bf16.mxu0 %v1659
    %2062 = vmatpush1.bf16.msra.mxu0 %v1658
    %2063 = vmatprep.subr.bf16.mxu0 %v1662
    %2064 = vmatpush1.bf16.msra.mxu0 %v1661
    %2065 = vmatprep.subr.bf16.mxu0 %v1665
    %2066 = vmatpush1.bf16.msra.mxu0 %v1664
    %2067 = vmatprep.subr.bf16.mxu0 %v1668
    %2068 = vmatpush1.bf16.msra.mxu0 %v1667
    %2069 = vmatprep.subr.bf16.mxu0 %v1671
    %2070 = vmatpush1.bf16.msra.mxu0 %v1670
    %2071 = vmatprep.subr.bf16.mxu0 %v1674
    %2072 = vmatpush1.bf16.msra.mxu0 %v1673
    %2073 = vmatprep.subr.bf16.mxu0 0
    %2074 = vmatpush1.bf16.msra.mxu0 0
    %2075 = vmatprep.subr.bf16.mxu0 0
    %2076 = vmatpush1.bf16.msra.mxu0 0
    %2077 = vmatprep.subr.bf16.mxu0 0
    %2078 = vmatpush1.bf16.msra.mxu0 0
    %2079 = vmatprep.subr.bf16.mxu0 0
    %2080 = vmatpush1.bf16.msra.mxu0 0
    %2081 = vmatprep.subr.bf16.mxu0 0
    %2082 = vmatpush1.bf16.msra.mxu0 0
    %2083 = vmatprep.subr.bf16.mxu0 0
    %2084 = vmatpush1.bf16.msra.mxu0 0
    %2085 = vmatprep.subr.bf16.mxu0 0
    %2086 = vmatpush1.bf16.msra.mxu0 0
    %2087 = vmatprep.subr.bf16.mxu0 0
    %2088 = vmatpush1.bf16.msra.mxu0 0
    %2089 = vmatprep.mubr.bf16.mxu0 0
    %2090 = vmatmul.mubr.bf16.gmra.mrb[0].mxu0 %v2056
    %v2091 = vpop.f32.mrb[0].mxu0
    %v2092 = vadd.f32 0.0, %v2091
    %v2093 = vpop.f32.mrb[0].mxu0
    %v2094 = vadd.f32 0.0, %v2093
    %v2095 = vpop.f32.mrb[0].mxu0
    %v2096 = vpop.f32.mrb[0].mxu0
    %2097 = vdwg.mxu0
    %2098 = vmatprep.subr.bf16.mxu0 0
    %2099 = vmatpush1.bf16.msra.mxu0 %v1654
    %2100 = vmatprep.subr.bf16.mxu0 0
    %2101 = vmatpush1.bf16.msra.mxu0 %v1657
    %2102 = vmatprep.subr.bf16.mxu0 0
    %2103 = vmatpush1.bf16.msra.mxu0 %v1660
    %2104 = vmatprep.subr.bf16.mxu0 0
    %2105 = vmatpush1.bf16.msra.mxu0 %v1663
    %2106 = vmatprep.subr.bf16.mxu0 0
    %2107 = vmatpush1.bf16.msra.mxu0 %v1666
    %2108 = vmatprep.subr.bf16.mxu0 0
    %2109 = vmatpush1.bf16.msra.mxu0 %v1669
    %2110 = vmatprep.subr.bf16.mxu0 0
    %2111 = vmatpush1.bf16.msra.mxu0 %v1672
    %2112 = vmatprep.subr.bf16.mxu0 0
    %2113 = vmatpush1.bf16.msra.mxu0 %v1675
    %2114 = vmatprep.subr.bf16.mxu0 0
    %2115 = vmatpush1.bf16.msra.mxu0 0
    %2116 = vmatprep.subr.bf16.mxu0 0
    %2117 = vmatpush1.bf16.msra.mxu0 0
    %2118 = vmatprep.subr.bf16.mxu0 0
    %2119 = vmatpush1.bf16.msra.mxu0 0
    %2120 = vmatprep.subr.bf16.mxu0 0
    %2121 = vmatpush1.bf16.msra.mxu0 0
    %2122 = vmatprep.subr.bf16.mxu0 0
    %2123 = vmatpush1.bf16.msra.mxu0 0
    %2124 = vmatprep.subr.bf16.mxu0 0
    %2125 = vmatpush1.bf16.msra.mxu0 0
    %2126 = vmatprep.subr.bf16.mxu0 0
    %2127 = vmatpush1.bf16.msra.mxu0 0
    %2128 = vmatprep.subr.bf16.mxu0 0
    %2129 = vmatpush1.bf16.msra.mxu0 0
    %2130 = vmatprep.mubr.bf16.mxu0 0
    %2131 = vmatmul.mubr.bf16.gmra.mrb[0].mxu0 %v2056
    %v2132 = vpop.f32.mrb[0].mxu0
    %v2133 = vadd.f32 0.0, %v2132
    %v2134 = vpop.f32.mrb[0].mxu0
    %v2135 = vpop.f32.mrb[0].mxu0
    %v2136 = vpop.f32.mrb[0].mxu0
    %2137 = vdwg.mxu0
    %v2138 = vlaneseq
    %v2139 = vshrl.u32 %v2138, 7
    %v2140 = vsub.s32 3, %v2139
    %v2141 = vrot.slane %v1493, %v2140
    %v2142 = vadd.f32 %v2141, %v2092
    %v2143 = vxor.u32 %v2142, 2147483648
    %v2144 = vmul.f32 %v2143, 1.442695
    %v2145 = vpow.pop %v2144
    %v2146 = vadd.f32 %v2145, 1.0
    %v2147 = vrcp.pop %v2146
    %v2148 = vmul.f32 1.0, %v2147
    %v2149 = vlaneseq
    %v2150 = vshrl.u32 %v2149, 7
    %v2151 = vsub.s32 3, %v2150
    %v2152 = vrot.slane %v1495, %v2151
    %v2153 = vadd.f32 %v2152, %v2094
    %v2154 = vxor.u32 %v2153, 2147483648
    %v2155 = vmul.f32 %v2154, 1.442695
    %v2156 = vpow.pop %v2155
    %v2157 = vadd.f32 %v2156, 1.0
    %v2158 = vrcp.pop %v2157
    %v2159 = vmul.f32 1.0, %v2158
    %v2160 = vadd.f32 %v2133, %v1807
    %v2161 = vmul.f32 %v2148, %v2160
    %v2162 = vlaneseq
    %v2163 = vshrl.u32 %v2162, 7
    %v2164 = vsub.s32 3, %v2163
    %v2165 = vrot.slane %v1534, %v2164
    %v2166 = vadd.f32 %v2165, %v2161
    %v2167 = vtanh.pop %v2166
    %v2168 = vsub.f32 1.0, %v2159
    %v2169 = vmul.f32 %v2168, %v2167
    %v2170 = vmul.f32 %v2159, %v2055
    %v2171 = vadd.f32 %v2169, %v2170
    %v2172 = vtanh.pop %v2171
    %v2173 = vpack.c.bf16 %v2172, %v2172
    %2174 = vmatprep.subr.bf16.mxu0 %v1653
    %2175 = vmatpush1.bf16.msra.mxu0 %v1652
    %2176 = vmatprep.subr.bf16.mxu0 %v1656
    %2177 = vmatpush1.bf16.msra.mxu0 %v1655
    %2178 = vmatprep.subr.bf16.mxu0 %v1659
    %2179 = vmatpush1.bf16.msra.mxu0 %v1658
    %2180 = vmatprep.subr.bf16.mxu0 %v1662
    %2181 = vmatpush1.bf16.msra.mxu0 %v1661
    %2182 = vmatprep.subr.bf16.mxu0 %v1665
    %2183 = vmatpush1.bf16.msra.mxu0 %v1664
    %2184 = vmatprep.subr.bf16.mxu0 %v1668
    %2185 = vmatpush1.bf16.msra.mxu0 %v1667
    %2186 = vmatprep.subr.bf16.mxu0 %v1671
    %2187 = vmatpush1.bf16.msra.mxu0 %v1670
    %2188 = vmatprep.subr.bf16.mxu0 %v1674
    %2189 = vmatpush1.bf16.msra.mxu0 %v1673
    %2190 = vmatprep.subr.bf16.mxu0 0
    %2191 = vmatpush1.bf16.msra.mxu0 0
    %2192 = vmatprep.subr.bf16.mxu0 0
    %2193 = vmatpush1.bf16.msra.mxu0 0
    %2194 = vmatprep.subr.bf16.mxu0 0
    %2195 = vmatpush1.bf16.msra.mxu0 0
    %2196 = vmatprep.subr.bf16.mxu0 0
    %2197 = vmatpush1.bf16.msra.mxu0 0
    %2198 = vmatprep.subr.bf16.mxu0 0
    %2199 = vmatpush1.bf16.msra.mxu0 0
    %2200 = vmatprep.subr.bf16.mxu0 0
    %2201 = vmatpush1.bf16.msra.mxu0 0
    %2202 = vmatprep.subr.bf16.mxu0 0
    %2203 = vmatpush1.bf16.msra.mxu0 0
    %2204 = vmatprep.subr.bf16.mxu0 0
    %2205 = vmatpush1.bf16.msra.mxu0 0
    %2206 = vmatprep.mubr.bf16.mxu0 0
    %2207 = vmatmul.mubr.bf16.gmra.mrb[0].mxu0 %v2173
    %v2208 = vpop.f32.mrb[0].mxu0
    %v2209 = vadd.f32 0.0, %v2208
    %v2210 = vpop.f32.mrb[0].mxu0
    %v2211 = vadd.f32 0.0, %v2210
    %v2212 = vpop.f32.mrb[0].mxu0
    %v2213 = vpop.f32.mrb[0].mxu0
    %2214 = vdwg.mxu0
    %2215 = vmatprep.subr.bf16.mxu0 0
    %2216 = vmatpush1.bf16.msra.mxu0 %v1654
    %2217 = vmatprep.subr.bf16.mxu0 0
    %2218 = vmatpush1.bf16.msra.mxu0 %v1657
    %2219 = vmatprep.subr.bf16.mxu0 0
    %2220 = vmatpush1.bf16.msra.mxu0 %v1660
    %2221 = vmatprep.subr.bf16.mxu0 0
    %2222 = vmatpush1.bf16.msra.mxu0 %v1663
    %2223 = vmatprep.subr.bf16.mxu0 0
    %2224 = vmatpush1.bf16.msra.mxu0 %v1666
    %2225 = vmatprep.subr.bf16.mxu0 0
    %2226 = vmatpush1.bf16.msra.mxu0 %v1669
    %2227 = vmatprep.subr.bf16.mxu0 0
    %2228 = vmatpush1.bf16.msra.mxu0 %v1672
    %2229 = vmatprep.subr.bf16.mxu0 0
    %2230 = vmatpush1.bf16.msra.mxu0 %v1675
    %2231 = vmatprep.subr.bf16.mxu0 0
    %2232 = vmatpush1.bf16.msra.mxu0 0
    %2233 = vmatprep.subr.bf16.mxu0 0
    %2234 = vmatpush1.bf16.msra.mxu0 0
    %2235 = vmatprep.subr.bf16.mxu0 0
    %2236 = vmatpush1.bf16.msra.mxu0 0
    %2237 = vmatprep.subr.bf16.mxu0 0
    %2238 = vmatpush1.bf16.msra.mxu0 0
    %2239 = vmatprep.subr.bf16.mxu0 0
    %2240 = vmatpush1.bf16.msra.mxu0 0
    %2241 = vmatprep.subr.bf16.mxu0 0
    %2242 = vmatpush1.bf16.msra.mxu0 0
    %2243 = vmatprep.subr.bf16.mxu0 0
    %2244 = vmatpush1.bf16.msra.mxu0 0
    %2245 = vmatprep.subr.bf16.mxu0 0
    %2246 = vmatpush1.bf16.msra.mxu0 0
    %2247 = vmatprep.mubr.bf16.mxu0 0
    %2248 = vmatmul.mubr.bf16.gmra.mrb[0].mxu0 %v2173
    %v2249 = vpop.f32.mrb[0].mxu0
    %v2250 = vadd.f32 0.0, %v2249
    %v2251 = vpop.f32.mrb[0].mxu0
    %v2252 = vpop.f32.mrb[0].mxu0
    %v2253 = vpop.f32.mrb[0].mxu0
    %2254 = vdwg.mxu0
    %v2255 = vlaneseq
    %v2256 = vshrl.u32 %v2255, 7
    %v2257 = vsub.s32 4, %v2256
    %v2258 = vrot.slane %v1493, %v2257
    %v2259 = vadd.f32 %v2258, %v2209
    %v2260 = vxor.u32 %v2259, 2147483648
    %v2261 = vmul.f32 %v2260, 1.442695
    %v2262 = vpow.pop %v2261
    %v2263 = vadd.f32 %v2262, 1.0
    %v2264 = vrcp.pop %v2263
    %v2265 = vmul.f32 1.0, %v2264
    %v2266 = vlaneseq
    %v2267 = vshrl.u32 %v2266, 7
    %v2268 = vsub.s32 4, %v2267
    %v2269 = vrot.slane %v1495, %v2268
    %v2270 = vadd.f32 %v2269, %v2211
    %v2271 = vxor.u32 %v2270, 2147483648
    %v2272 = vmul.f32 %v2271, 1.442695
    %v2273 = vpow.pop %v2272
    %v2274 = vadd.f32 %v2273, 1.0
    %v2275 = vrcp.pop %v2274
    %v2276 = vmul.f32 1.0, %v2275
    %v2277 = vadd.f32 %v2250, %v1807
    %v2278 = vmul.f32 %v2265, %v2277
    %v2279 = vlaneseq
    %v2280 = vshrl.u32 %v2279, 7
    %v2281 = vsub.s32 4, %v2280
    %v2282 = vrot.slane %v1534, %v2281
    %v2283 = vadd.f32 %v2282, %v2278
    %v2284 = vtanh.pop %v2283
    %v2285 = vsub.f32 1.0, %v2276
    %v2286 = vmul.f32 %v2285, %v2284
    %v2287 = vmul.f32 %v2276, %v2172
    %v2288 = vadd.f32 %v2286, %v2287
    %v2289 = vtanh.pop %v2288
    %v2290 = vpack.c.bf16 %v2289, %v2289
    %2291 = vmatprep.subr.bf16.mxu0 %v1653
    %2292 = vmatpush1.bf16.msra.mxu0 %v1652
    %2293 = vmatprep.subr.bf16.mxu0 %v1656
    %2294 = vmatpush1.bf16.msra.mxu0 %v1655
    %2295 = vmatprep.subr.bf16.mxu0 %v1659
    %2296 = vmatpush1.bf16.msra.mxu0 %v1658
    %2297 = vmatprep.subr.bf16.mxu0 %v1662
    %2298 = vmatpush1.bf16.msra.mxu0 %v1661
    %2299 = vmatprep.subr.bf16.mxu0 %v1665
    %2300 = vmatpush1.bf16.msra.mxu0 %v1664
    %2301 = vmatprep.subr.bf16.mxu0 %v1668
    %2302 = vmatpush1.bf16.msra.mxu0 %v1667
    %2303 = vmatprep.subr.bf16.mxu0 %v1671
    %2304 = vmatpush1.bf16.msra.mxu0 %v1670
    %2305 = vmatprep.subr.bf16.mxu0 %v1674
    %2306 = vmatpush1.bf16.msra.mxu0 %v1673
    %2307 = vmatprep.subr.bf16.mxu0 0
    %2308 = vmatpush1.bf16.msra.mxu0 0
    %2309 = vmatprep.subr.bf16.mxu0 0
    %2310 = vmatpush1.bf16.msra.mxu0 0
    %2311 = vmatprep.subr.bf16.mxu0 0
    %2312 = vmatpush1.bf16.msra.mxu0 0
    %2313 = vmatprep.subr.bf16.mxu0 0
    %2314 = vmatpush1.bf16.msra.mxu0 0
    %2315 = vmatprep.subr.bf16.mxu0 0
    %2316 = vmatpush1.bf16.msra.mxu0 0
    %2317 = vmatprep.subr.bf16.mxu0 0
    %2318 = vmatpush1.bf16.msra.mxu0 0
    %2319 = vmatprep.subr.bf16.mxu0 0
    %2320 = vmatpush1.bf16.msra.mxu0 0
    %2321 = vmatprep.subr.bf16.mxu0 0
    %2322 = vmatpush1.bf16.msra.mxu0 0
    %2323 = vmatprep.mubr.bf16.mxu0 0
    %2324 = vmatmul.mubr.bf16.gmra.mrb[0].mxu0 %v2290
    %v2325 = vpop.f32.mrb[0].mxu0
    %v2326 = vadd.f32 0.0, %v2325
    %v2327 = vpop.f32.mrb[0].mxu0
    %v2328 = vadd.f32 0.0, %v2327
    %v2329 = vpop.f32.mrb[0].mxu0
    %v2330 = vpop.f32.mrb[0].mxu0
    %2331 = vdwg.mxu0
    %2332 = vmatprep.subr.bf16.mxu0 0
    %2333 = vmatpush1.bf16.msra.mxu0 %v1654
    %2334 = vmatprep.subr.bf16.mxu0 0
    %2335 = vmatpush1.bf16.msra.mxu0 %v1657
    %2336 = vmatprep.subr.bf16.mxu0 0
    %2337 = vmatpush1.bf16.msra.mxu0 %v1660
    %2338 = vmatprep.subr.bf16.mxu0 0
    %2339 = vmatpush1.bf16.msra.mxu0 %v1663
    %2340 = vmatprep.subr.bf16.mxu0 0
    %2341 = vmatpush1.bf16.msra.mxu0 %v1666
    %2342 = vmatprep.subr.bf16.mxu0 0
    %2343 = vmatpush1.bf16.msra.mxu0 %v1669
    %2344 = vmatprep.subr.bf16.mxu0 0
    %2345 = vmatpush1.bf16.msra.mxu0 %v1672
    %2346 = vmatprep.subr.bf16.mxu0 0
    %2347 = vmatpush1.bf16.msra.mxu0 %v1675
    %2348 = vmatprep.subr.bf16.mxu0 0
    %2349 = vmatpush1.bf16.msra.mxu0 0
    %2350 = vmatprep.subr.bf16.mxu0 0
    %2351 = vmatpush1.bf16.msra.mxu0 0
    %2352 = vmatprep.subr.bf16.mxu0 0
    %2353 = vmatpush1.bf16.msra.mxu0 0
    %2354 = vmatprep.subr.bf16.mxu0 0
    %2355 = vmatpush1.bf16.msra.mxu0 0
    %2356 = vmatprep.subr.bf16.mxu0 0
    %2357 = vmatpush1.bf16.msra.mxu0 0
    %2358 = vmatprep.subr.bf16.mxu0 0
    %2359 = vmatpush1.bf16.msra.mxu0 0
    %2360 = vmatprep.subr.bf16.mxu0 0
    %2361 = vmatpush1.bf16.msra.mxu0 0
    %2362 = vmatprep.subr.bf16.mxu0 0
    %2363 = vmatpush1.bf16.msra.mxu0 0
    %2364 = vmatprep.mubr.bf16.mxu0 0
    %2365 = vmatmul.mubr.bf16.gmra.mrb[0].mxu0 %v2290
    %v2366 = vpop.f32.mrb[0].mxu0
    %v2367 = vadd.f32 0.0, %v2366
    %v2368 = vpop.f32.mrb[0].mxu0
    %v2369 = vpop.f32.mrb[0].mxu0
    %v2370 = vpop.f32.mrb[0].mxu0
    %2371 = vdwg.mxu0
    %v2372 = vlaneseq
    %v2373 = vshrl.u32 %v2372, 7
    %v2374 = vsub.s32 5, %v2373
    %v2375 = vrot.slane %v1493, %v2374
    %v2376 = vadd.f32 %v2375, %v2326
    %v2377 = vxor.u32 %v2376, 2147483648
    %v2378 = vmul.f32 %v2377, 1.442695
    %v2379 = vpow.pop %v2378
    %v2380 = vadd.f32 %v2379, 1.0
    %v2381 = vrcp.pop %v2380
    %v2382 = vmul.f32 1.0, %v2381
    %v2383 = vlaneseq
    %v2384 = vshrl.u32 %v2383, 7
    %v2385 = vsub.s32 5, %v2384
    %v2386 = vrot.slane %v1495, %v2385
    %v2387 = vadd.f32 %v2386, %v2328
    %v2388 = vxor.u32 %v2387, 2147483648
    %v2389 = vmul.f32 %v2388, 1.442695
    %v2390 = vpow.pop %v2389
    %v2391 = vadd.f32 %v2390, 1.0
    %v2392 = vrcp.pop %v2391
    %v2393 = vmul.f32 1.0, %v2392
    %v2394 = vadd.f32 %v2367, %v1807
    %v2395 = vmul.f32 %v2382, %v2394
    %v2396 = vlaneseq
    %v2397 = vshrl.u32 %v2396, 7
    %v2398 = vsub.s32 5, %v2397
    %v2399 = vrot.slane %v1534, %v2398
    %v2400 = vadd.f32 %v2399, %v2395
    %v2401 = vtanh.pop %v2400
    %v2402 = vsub.f32 1.0, %v2393
    %v2403 = vmul.f32 %v2402, %v2401
    %v2404 = vmul.f32 %v2393, %v2289
    %v2405 = vadd.f32 %v2403, %v2404
    %v2406 = vtanh.pop %v2405
    %v2407 = vpack.c.bf16 %v1938, %v1821
    %v2408 = vpack.c.bf16 %v2172, %v2055
    %v2409 = vpack.c.bf16 %v2406, %v2289
    %v2410 = vld [vmem:[#allocation13] sm:$0xf]
    %v2411 = vld [vmem:[#allocation13 + $0x4] sm:$0xf]
    %v2412 = vld [vmem:[#allocation13 + $0x8] sm:$0xf]
    %v2413 = vld [vmem:[#allocation13 + $0xc] sm:$0xf]
    %v2414 = vld [vmem:[#allocation13 + $0x10] sm:$0xf]
    %v2415 = vld [vmem:[#allocation13 + $0x14] sm:$0xf]
    %v2416 = vld [vmem:[#allocation13 + $0x18] sm:$0xf]
    %v2417 = vld [vmem:[#allocation13 + $0x1c] sm:$0xf]
    %v2418 = vld [vmem:[#allocation13 + $0x20] sm:$0xf]
    %v2419 = vld [vmem:[#allocation13 + $0x24] sm:$0xf]
    %v2420 = vld [vmem:[#allocation13 + $0x28] sm:$0xf]
    %v2421 = vld [vmem:[#allocation13 + $0x2c] sm:$0xf]
    %v2422 = vld [vmem:[#allocation13 + $0x30] sm:$0xf]
    %v2423 = vld [vmem:[#allocation13 + $0x34] sm:$0xf]
    %v2424 = vld [vmem:[#allocation13 + $0x38] sm:$0xf]
    %v2425 = vld [vmem:[#allocation13 + $0x3c] sm:$0xf]
    %v2426 = vld [vmem:[%s11] sm:$0x1]
    %v2428 = vlaneseq
    %v2429 = vshrl.u32 %v2428, 7
    %v2430 = vsub.s32 0, %v2429
    %v2431 = vrot.slane %v2426, %v2430
    %v2449 = vunpack.c.l.b16 %v2410
    %v2450 = vunpack.c.l.b16 %v2411
    %v2451 = vunpack.c.l.b16 %v2412
    %v2452 = vunpack.c.l.b16 %v2413
    %v2453 = vunpack.c.l.b16 %v2414
    %v2454 = vunpack.c.l.b16 %v2415
    %v2455 = vunpack.c.l.b16 %v2416
    %v2456 = vunpack.c.l.b16 %v2417
    %v2457 = vunpack.c.l.b16 %v2418
    %v2458 = vunpack.c.l.b16 %v2419
    %v2459 = vunpack.c.l.b16 %v2420
    %v2460 = vunpack.c.l.b16 %v2421
    %v2461 = vunpack.c.l.b16 %v2422
    %v2462 = vunpack.c.l.b16 %v2423
    %v2463 = vunpack.c.l.b16 %v2424
    %v2464 = vunpack.c.l.b16 %v2425
    %v2465 = vpack.c.b16 %v2450, %v2449
    %v2466 = vpack.c.b16 %v2452, %v2451
    %v2467 = vpack.c.b16 %v2454, %v2453
    %v2468 = vpack.c.b16 %v2456, %v2455
    %v2469 = vpack.c.b16 %v2458, %v2457
    %v2470 = vpack.c.b16 %v2460, %v2459
    %v2471 = vpack.c.b16 %v2462, %v2461
    %v2472 = vpack.c.b16 %v2464, %v2463
    %2481 = vmatprep.subr.bf16.mxu0 0
    %2482 = vmatpush1.bf16.msra.mxu0 %v2465
    %2483 = vmatprep.subr.bf16.mxu0 0
    %2484 = vmatpush1.bf16.msra.mxu0 %v2466
    %2485 = vmatprep.subr.bf16.mxu0 0
    %2486 = vmatpush1.bf16.msra.mxu0 %v2467
    %2487 = vmatprep.subr.bf16.mxu0 0
    %2488 = vmatpush1.bf16.msra.mxu0 %v2468
    %2489 = vmatprep.subr.bf16.mxu0 0
    %2490 = vmatpush1.bf16.msra.mxu0 %v2469
    %2491 = vmatprep.subr.bf16.mxu0 0
    %2492 = vmatpush1.bf16.msra.mxu0 %v2470
    %2493 = vmatprep.subr.bf16.mxu0 0
    %2494 = vmatpush1.bf16.msra.mxu0 %v2471
    %2495 = vmatprep.subr.bf16.mxu0 0
    %2496 = vmatpush1.bf16.msra.mxu0 %v2472
    %2497 = vmatprep.subr.bf16.mxu0 0
    %2498 = vmatpush1.bf16.msra.mxu0 0
    %2499 = vmatprep.subr.bf16.mxu0 0
    %2500 = vmatpush1.bf16.msra.mxu0 0
    %2501 = vmatprep.subr.bf16.mxu0 0
    %2502 = vmatpush1.bf16.msra.mxu0 0
    %2503 = vmatprep.subr.bf16.mxu0 0
    %2504 = vmatpush1.bf16.msra.mxu0 0
    %2505 = vmatprep.subr.bf16.mxu0 0
    %2506 = vmatpush1.bf16.msra.mxu0 0
    %2507 = vmatprep.subr.bf16.mxu0 0
    %2508 = vmatpush1.bf16.msra.mxu0 0
    %2509 = vmatprep.subr.bf16.mxu0 0
    %2510 = vmatpush1.bf16.msra.mxu0 0
    %2511 = vmatprep.subr.bf16.mxu0 0
    %2512 = vmatpush1.bf16.msra.mxu0 0
    %2513 = vmatprep.mubr.bf16.mxu0 0
    %2514 = vmatmul.mubr.bf16.gmra.mrb[0].mxu0 %v2407
    %v2515 = vpop.f32.mrb[0].mxu0
    %v2516 = vadd.f32 %v2431, %v2515
    %v2517 = vpop.f32.mrb[0].mxu0
    %v2518 = vpop.f32.mrb[0].mxu0
    %v2519 = vadd.f32 %v2431, %v2518
    %v2520 = vpop.f32.mrb[0].mxu0
    %2521 = vmatprep.mubr.bf16.mxu0 0
    %2522 = vmatmul.mubr.bf16.gmra.mrb[0].mxu0 %v2408
    %v2523 = vpop.f32.mrb[0].mxu0
    %v2524 = vadd.f32 %v2431, %v2523
    %v2525 = vpop.f32.mrb[0].mxu0
    %v2526 = vpop.f32.mrb[0].mxu0
    %v2527 = vadd.f32 %v2431, %v2526
    %v2528 = vpop.f32.mrb[0].mxu0
    %2529 = vmatprep.mubr.bf16.mxu0 0
    %2530 = vmatmul.mubr.bf16.gmra.mrb[0].mxu0 %v2409
    %v2531 = vpop.f32.mrb[0].mxu0
    %v2532 = vadd.f32 %v2431, %v2531
    %v2533 = vpop.f32.mrb[0].mxu0
    %v2534 = vpop.f32.mrb[0].mxu0
    %v2535 = vadd.f32 %v2431, %v2534
    %v2536 = vpop.f32.mrb[0].mxu0
    %2537 = vdwg.mxu0
    %v2538 = vand.u32 2147483647, %v2516
    %v2539 = vand.u32 2147483647, %v2519
    %v2540 = vand.u32 2147483647, %v2524
    %v2541 = vand.u32 2147483647, %v2527
    %v2542 = vand.u32 2147483647, %v2532
    %v2543 = vand.u32 2147483647, %v2535
    %v2544 = vsub.f32 0.0, %v2538
    %v2545 = vsub.f32 0.0, %v2539
    %v2546 = vsub.f32 0.0, %v2540
    %v2547 = vsub.f32 0.0, %v2541
    %v2548 = vsub.f32 0.0, %v2542
    %v2549 = vsub.f32 0.0, %v2543
    %v2550 = vmul.f32 %v2544, 1.442695
    %v2551 = vpow.pop %v2550
    %v2552 = vmul.f32 %v2545, 1.442695
    %v2553 = vpow.pop %v2552
    %v2554 = vmul.f32 %v2546, 1.442695
    %v2555 = vpow.pop %v2554
    %v2556 = vmul.f32 %v2547, 1.442695
    %v2557 = vpow.pop %v2556
    %v2558 = vmul.f32 %v2548, 1.442695
    %v2559 = vpow.pop %v2558
    %v2560 = vmul.f32 %v2549, 1.442695
    %v2561 = vpow.pop %v2560
    %v2562 = vadd.f32 %v2551, 1.0
    %v2563 = vadd.f32 %v2553, 1.0
    %v2564 = vadd.f32 %v2555, 1.0
    %v2565 = vadd.f32 %v2557, 1.0
    %v2566 = vadd.f32 %v2559, 1.0
    %v2567 = vadd.f32 %v2561, 1.0
    %v2568 = vlog2.pop %v2562
    %v2569 = vmul.f32 %v2568, 0.6931472
    %v2570 = vlog2.pop %v2563
    %v2571 = vmul.f32 %v2570, 0.6931472
    %v2572 = vlog2.pop %v2564
    %v2573 = vmul.f32 %v2572, 0.6931472
    %v2574 = vlog2.pop %v2565
    %v2575 = vmul.f32 %v2574, 0.6931472
    %v2576 = vlog2.pop %v2566
    %v2577 = vmul.f32 %v2576, 0.6931472
    %v2578 = vlog2.pop %v2567
    %v2579 = vmul.f32 %v2578, 0.6931472
    %v2580 = vmax.f32 %v2516, 0.0
    %v2581 = vmax.f32 %v2519, 0.0
    %v2582 = vmax.f32 %v2524, 0.0
    %v2583 = vmax.f32 %v2527, 0.0
    %v2584 = vmax.f32 %v2532, 0.0
    %v2585 = vmax.f32 %v2535, 0.0
    %v2586 = vadd.f32 %v2580, %v2569
    %v2587 = vadd.f32 %v2581, %v2571
    %v2588 = vadd.f32 %v2582, %v2573
    %v2589 = vadd.f32 %v2583, %v2575
    %v2590 = vadd.f32 %v2584, %v2577
    %v2591 = vadd.f32 %v2585, %v2579
    %v2592 = vsub.f32 0.0, %v2586
    %v2593 = vsub.f32 0.0, %v2587
    %v2594 = vsub.f32 0.0, %v2588
    %v2595 = vsub.f32 0.0, %v2589
    %v2596 = vsub.f32 0.0, %v2590
    %v2597 = vsub.f32 0.0, %v2591
    %v2598 = vsub.f32 0.0, %v2516
    %v2599 = vsub.f32 0.0, %v2519
    %v2600 = vsub.f32 0.0, %v2524
    %v2601 = vsub.f32 0.0, %v2527
    %v2602 = vsub.f32 0.0, %v2532
    %v2603 = vsub.f32 0.0, %v2535
    %v2604 = vmax.f32 %v2598, 0.0
    %v2605 = vmax.f32 %v2599, 0.0
    %v2606 = vmax.f32 %v2600, 0.0
    %v2607 = vmax.f32 %v2601, 0.0
    %v2608 = vmax.f32 %v2602, 0.0
    %v2609 = vmax.f32 %v2603, 0.0
    %v2610 = vadd.f32 %v2604, %v2569
    %v2611 = vadd.f32 %v2605, %v2571
    %v2612 = vadd.f32 %v2606, %v2573
    %v2613 = vadd.f32 %v2607, %v2575
    %v2614 = vadd.f32 %v2608, %v2577
    %v2615 = vadd.f32 %v2609, %v2579
    %v2616 = vsub.f32 0.0, %v2610
    %v2617 = vsub.f32 0.0, %v2611
    %v2618 = vsub.f32 0.0, %v2612
    %v2619 = vsub.f32 0.0, %v2613
    %v2620 = vsub.f32 0.0, %v2614
    %v2621 = vsub.f32 0.0, %v2615
    %v2622 = vlaneseq
    %v2623 = vand.u32 %v2622, 127
    %vm2624 = vcmp.eq.s32.totalorder %v2623, 0
    %v2625 = vsel %vm2624, %v2592, %v2616
    %v2626 = vsel %vm2624, %v2593, %v2617
    %v2627 = vsel %vm2624, %v2594, %v2618
    %v2628 = vsel %vm2624, %v2595, %v2619
    %v2629 = vsel %vm2624, %v2596, %v2620
    %v2630 = vsel %vm2624, %v2597, %v2621
    %2631 = vst [vmem:[#allocation14] sm:$0xff] %v2625
    %2632 = vst [vmem:[#allocation14 + $0x8] sm:$0xff] %v2626
    %2633 = vst [vmem:[#allocation14 + $0x10] sm:$0xff] %v2627
    %2634 = vst [vmem:[#allocation14 + $0x18] sm:$0xff] %v2628
    %2635 = vst [vmem:[#allocation14 + $0x20] sm:$0xff] %v2629
    %2636 = vst [vmem:[#allocation14 + $0x28] sm:$0xff] %v2630
    // Predicated region
    $region78: #{tpu_custom_call.1} parent=1 // pred_check
      _
    $region79: #{tpu_custom_call.1} parent=1 // pred_check_branch
      %2638 = sbr.rel (0) target = $region81
    $region80: #{tpu_custom_call.1} parent=1 // pred_region
      %s2640 = ssub.s32 768, 768
      %2641 = vsyncadd [#allocation4], %s2640
      %s2642 = sshll.u32 [#allocation14], 4
      %s2643 = int_to_ptr.vmem [resolvable:$true] %s2642
      %2648 = dma.vmem_to_hbm [thread:$0]  %s2643, 768, %s12, [#allocation4], 128, 128, 8
    $region81: #{tpu_custom_call.1} parent=1 // pred_fallthru
      _
    // Predicated region
    $region82: #{tpu_custom_call.1} parent=1 // pred_check
      _
    $region83: #{tpu_custom_call.1} parent=1 // pred_check_branch
      %2650 = sbr.rel (0) target = $region85
    $region84: #{tpu_custom_call.1} parent=1 // pred_region
      %2651 = dma.done [#allocation4], 768
    $region85: #{tpu_custom_call.1} parent=1 // pred_fallthru
      _
    %2652 = vsyncpa [#allocation3], 1
    %2653 = vsyncpa [#allocation6], 1
    %2654 = vsyncpa [#allocation9], 1
    %2655 = vsyncpa [#allocation12], 1
    %2656 = vsyncpa [#allocation4], 1

</llo_original>
